<compile_context>
chip_gen: v7x
topology: tpu7x:2x2x1
jax: 0.10.0
libtpu: 0.0.40
codegen_flags: <defaults>
</compile_context>

<pallas_src>
import jax
import jax.numpy as jnp
from jax.experimental import pallas as pl
from jax.experimental.pallas import tpu as pltpu


# ----------------------------- Pallas kernel --------------------------------

def _fused_lstm_kernel(xg1_ref, wblk_ref, w2ih_ref, b2_ref, out_ref):
    """Fused 2-layer LSTM recurrence (PyTorch gate order i, f, g, o).

    xg1_ref:  (B, T, 4H1)       pre-projected layer-1 gates (biases folded,
                                g-gate columns pre-scaled by 2)
    wblk_ref: (H1+H2p, 4H1+4H2p) block-diag [[W1_hh^T, 0], [0, W2_hh^T]]
                                (g-gate columns pre-scaled by 2)
    w2ih_ref: (H1, 4H2p)         W2_ih^T, gate-padded, g-gate scaled by 2
    b2_ref:   (1, 4H2p)          b2_ih + b2_hh, gate-padded, g-gate scaled
    out_ref:  (B, T*H2p)         layer-2 hidden states, lane-contiguous
    """
    B, T, G1 = xg1_ref.shape
    H1 = G1 // 4
    G2 = w2ih_ref.shape[1]
    H2p = G2 // 4

    wblk = wblk_ref[...]
    w2ih = w2ih_ref[...]
    # Broadcast the bias once (per-step adds would re-emit broadcast_in_dim
    # 12x inside the unrolled loop).
    b2 = jnp.broadcast_to(b2_ref[...], (B, G2))

    # State carried in registers.
    h1 = jnp.zeros((B, H1), jnp.float32)
    c1 = jnp.zeros((B, H1), jnp.float32)
    h2 = jnp.zeros((B, H2p), jnp.float32)
    c2 = jnp.zeros((B, H2p), jnp.float32)

    hs = []
    # Fully unrolled time loop (T is small and static) -> static indexing.
    for t in range(T):
        # Both previous-step recurrences in ONE block-diagonal matmul.
        rec = jnp.dot(jnp.concatenate([h1, h2], axis=-1), wblk,
                      preferred_element_type=jnp.float32)

        # ---- layer 1: one full-width sigmoid; tanh(g) = 2*sigmoid(2g) - 1 ----
        g1 = xg1_ref[:, t, :] + rec[:, :4 * H1]
        s1 = jax.nn.sigmoid(g1)
        c1 = s1[:, H1:2 * H1] * c1 + s1[:, :H1] * (2.0 * s1[:, 2 * H1:3 * H1] - 1.0)
        h1 = s1[:, 3 * H1:] * jnp.tanh(c1)

        # ---- layer 2 (dropout between layers is identity in eval mode) ----
        g2 = (rec[:, 4 * H1:]
              + jnp.dot(h1, w2ih, preferred_element_type=jnp.float32) + b2)
        s2 = jax.nn.sigmoid(g2)
        c2 = s2[:, H2p:2 * H2p] * c2 + s2[:, :H2p] * (2.0 * s2[:, 2 * H2p:3 * H2p] - 1.0)
        h2 = s2[:, 3 * H2p:] * jnp.tanh(c2)

        hs.append(h2)

    # Single lane-dense store of the whole output slab.
    out_ref[...] = jnp.concatenate(hs, axis=-1).astype(out_ref.dtype)


# ------------------------------ kernel wrapper -------------------------------

def fused_two_layer_lstm(x_btd, l1_w_ih, l1_w_hh, l1_b_ih, l1_b_hh,
                         l2_w_ih, l2_w_hh, l2_b_ih, l2_b_hh):
    """PyTorch-semantics stacked LSTM(D->H1) -> LSTM(H1->H2), batch_first."""
    B, T, D = x_btd.shape
    H1 = l1_w_hh.shape[1]
    H2 = l2_w_hh.shape[1]
    H2p = ((H2 + 31) // 32) * 32          # pad so 4*H2p is a multiple of 128
    f32 = jnp.float32

    x = x_btd.astype(f32)

    # g-gate columns scaled by 2 so one full-width sigmoid covers i,f,o and
    # tanh(g) is recovered as 2*sigmoid(2g) - 1 in the kernel.
    def gate_scale(h):
        return jnp.concatenate([jnp.ones((2 * h,), f32),
                                jnp.full((h,), 2.0, f32),
                                jnp.ones((h,), f32)])

    gs1 = gate_scale(H1)                  # (4H1,)
    gs2 = gate_scale(H2p)                 # (4H2p,)

    # Hoisted layer-1 input projection over all timesteps, biases folded.
    xg1 = (jnp.einsum('btd,gd->btg', x, l1_w_ih.astype(f32))
           + (l1_b_ih + l1_b_hh).astype(f32)[None, None, :]) * gs1[None, None, :]

    # Pad batch to a full sublane group (padded rows compute zeros; sliced off).
    B_pad = ((B + 7) // 8) * 8
    if B_pad != B:
        xg1 = jnp.pad(xg1, ((0, B_pad - B), (0, 0), (0, 0)))

    # Layer-1 recurrent weights (transposed, g-gate scaled).
    w1hh_t = l1_w_hh.astype(f32).T * gs1[None, :]                     # (H1, 4H1)

    # Layer-2 weights zero-padded per gate block H2 -> H2p.
    def pad_gates(w, in_pad):
        w = w.astype(f32).reshape(4, H2, -1)
        w = jnp.pad(w, ((0, 0), (0, H2p - H2), (0, in_pad)))
        return w.reshape(4 * H2p, -1)

    w2ih_t = pad_gates(l2_w_ih, 0).T * gs2[None, :]                   # (H1, 4H2p)
    w2hh_t = pad_gates(l2_w_hh, H2p - H2).T * gs2[None, :]            # (H2p, 4H2p)
    b2 = (jnp.pad((l2_b_ih + l2_b_hh).astype(f32).reshape(4, H2),
                  ((0, 0), (0, H2p - H2))).reshape(1, 4 * H2p) * gs2[None, :])

    # Block-diagonal previous-step recurrence matrix.
    wblk = jnp.zeros((H1 + H2p, 4 * H1 + 4 * H2p), f32)
    wblk = wblk.at[:H1, :4 * H1].set(w1hh_t)
    wblk = wblk.at[H1:, 4 * H1:].set(w2hh_t)

    out = pl.pallas_call(
        _fused_lstm_kernel,
        out_shape=jax.ShapeDtypeStruct((B_pad, T * H2p), f32),
        in_specs=[pl.BlockSpec(memory_space=pltpu.MemorySpace.VMEM)] * 4,
        out_specs=pl.BlockSpec(memory_space=pltpu.MemorySpace.VMEM),
    )(xg1, wblk, w2ih_t, b2)

    # Un-pad: (B_pad, T*H2p) -> (B, T, H2)
    return out.reshape(B_pad, T, H2p)[:B, :, :H2]


# ------------------------- parameter initialization -------------------------

def _xavier_uniform(key, shape):
    fan_out, fan_in = shape
    bound = (6.0 / (fan_in + fan_out)) ** 0.5
    return jax.random.uniform(key, shape, jnp.float32, -bound, bound)


def _orthogonal(key, shape):
    return jax.nn.initializers.orthogonal()(key, shape, jnp.float32)


def init_blackbox_lstm_params(key, num_classes, hidden_dim, input_dim):
    k1, k2, k3, k4 = jax.random.split(key, 4)
    return {
        # layer1: LSTM(input_dim -> hidden_dim)
        'l1_w_ih': _xavier_uniform(k1, (4 * hidden_dim, input_dim)),
        'l1_w_hh': _orthogonal(k2, (4 * hidden_dim, hidden_dim)),
        'l1_b_ih': jnp.zeros((4 * hidden_dim,), jnp.float32),
        'l1_b_hh': jnp.zeros((4 * hidden_dim,), jnp.float32),
        # layer2: LSTM(hidden_dim -> num_classes)
        'l2_w_ih': _xavier_uniform(k3, (4 * num_classes, hidden_dim)),
        'l2_w_hh': _orthogonal(k4, (4 * num_classes, num_classes)),
        'l2_b_ih': jnp.zeros((4 * num_classes,), jnp.float32),
        'l2_b_hh': jnp.zeros((4 * num_classes,), jnp.float32),
    }


# ------------------------------- forward pass --------------------------------

def blackbox_lstm_forward(params, input_images, input_labels):
    """Mirrors BlackBoxLSTM.forward with repr='' (default branch), eval mode."""
    input_labels = input_labels.at[:, -1, :, :].set(0.0)      # zero query labels
    x = jnp.concatenate([input_images, input_labels], axis=-1)
    B, K1, N, D = x.shape
    x = x.reshape(B, K1 * N, D)
    preds = fused_two_layer_lstm(
        x,
        params['l1_w_ih'], params['l1_w_hh'], params['l1_b_ih'], params['l1_b_hh'],
        params['l2_w_ih'], params['l2_w_hh'], params['l2_b_ih'], params['l2_b_hh'])
    return preds.reshape(B, K1, N, N)


# ---------------------------------- main -------------------------------------

if __name__ == "__main__":
    # Small shapes consistent with the module:
    #   B=2 tasks, K+1=3 shots, N=num_classes=4 ways,
    #   image feature dim = 12 -> layer1 input_dim = 12 + N = 16, hidden=32.
    B, K1, N, IMG_D, HIDDEN = 2, 3, 4, 12, 32
    num_classes = N
    input_dim = IMG_D + N

    key = jax.random.PRNGKey(0)
    k_params, k_img, k_lab = jax.random.split(key, 3)

    params = init_blackbox_lstm_params(k_params, num_classes, HIDDEN, input_dim)

    input_images = jax.random.normal(k_img, (B, K1, N, IMG_D), jnp.float32)
    label_idx = jax.random.randint(k_lab, (B, K1, N), 0, N)
    input_labels = jax.nn.one_hot(label_idx, N, dtype=jnp.float32)

    out = jax.jit(blackbox_lstm_forward)(params, input_images, input_labels)
    jax.block_until_ready(out)
    assert out.shape == (B, K1, N, N), out.shape
    print("KERNEL_OK")
</pallas_src>

<mosaic_0001>
module attributes {stable_mosaic.version = 11 : i64} {
  func.func @_fused_lstm_kernel(%arg0: memref<8x12x128xf32, #tpu.memory_space<vmem>>, %arg1: memref<64x256xf32, #tpu.memory_space<vmem>>, %arg2: memref<32x128xf32, #tpu.memory_space<vmem>>, %arg3: memref<1x128xf32, #tpu.memory_space<vmem>>, %arg4: memref<8x384xf32, #tpu.memory_space<vmem>>) attributes {dimension_semantics = [], scalar_prefetch = 0 : i64, scratch_operands = 0 : i64, tpu.core_type = #tpu.core_type<tc>} {
    %c0 = arith.constant 0 : index
    %c0_0 = arith.constant 0 : index
    %0 = vector.load %arg1[%c0, %c0_0] : memref<64x256xf32, #tpu.memory_space<vmem>>, vector<64x256xf32>
    %c0_1 = arith.constant 0 : index
    %c0_2 = arith.constant 0 : index
    %1 = vector.load %arg2[%c0_1, %c0_2] : memref<32x128xf32, #tpu.memory_space<vmem>>, vector<32x128xf32>
    %c0_3 = arith.constant 0 : index
    %c0_4 = arith.constant 0 : index
    %2 = vector.load %arg3[%c0_3, %c0_4] : memref<1x128xf32, #tpu.memory_space<vmem>>, vector<1x128xf32>
    %3 = vector.shape_cast %2 : vector<1x128xf32> to vector<1x128xf32>
    %4 = vector.broadcast %3 : vector<1x128xf32> to vector<8x128xf32>
    %cst = arith.constant 0.000000e+00 : f32
    %5 = vector.broadcast %cst : f32 to vector<8x32xf32>
    %cst_5 = arith.constant 0.000000e+00 : f32
    %6 = vector.broadcast %cst_5 : f32 to vector<8x32xf32>
    %cst_6 = arith.constant 0.000000e+00 : f32
    %7 = vector.broadcast %cst_6 : f32 to vector<8x32xf32>
    %cst_7 = arith.constant 0.000000e+00 : f32
    %8 = vector.broadcast %cst_7 : f32 to vector<8x32xf32>
    %9 = tpu.concatenate %5, %7 in 1 : vector<8x32xf32>, vector<8x32xf32> -> vector<8x64xf32>
    %cst_8 = arith.constant dense<0.000000e+00> : vector<8x256xf32>
    %10 = tpu.matmul %9, %0, %cst_8 {dimension_numbers = #tpu.dot_dimension_numbers<[1], [0], [0], [1], [0, 0, 1, 1], [], []>} : vector<8x64xf32>, vector<64x256xf32>, vector<8x256xf32> -> vector<8x256xf32>
    %c0_9 = arith.constant 0 : index
    %c0_10 = arith.constant 0 : index
    %c0_11 = arith.constant 0 : index
    %11 = vector.load %arg0[%c0_9, %c0_10, %c0_11] : memref<8x12x128xf32, #tpu.memory_space<vmem>>, vector<8x1x128xf32>
    %12 = vector.shape_cast %11 : vector<8x1x128xf32> to vector<8x128xf32>
    %13 = vector.extract_strided_slice %10 {offsets = [0, 0], sizes = [8, 128], strides = [1, 1]} : vector<8x256xf32> to vector<8x128xf32>
    %14 = arith.addf %12, %13 : vector<8x128xf32>
    %15 = arith.negf %14 : vector<8x128xf32>
    %16 = math.exp %15 : vector<8x128xf32>
    %cst_12 = arith.constant 1.000000e+00 : f32
    %17 = vector.broadcast %cst_12 : f32 to vector<8x128xf32>
    %18 = arith.addf %17, %16 : vector<8x128xf32>
    %19 = arith.divf %17, %18 : vector<8x128xf32>
    %20 = vector.extract_strided_slice %19 {offsets = [0, 32], sizes = [8, 32], strides = [1, 1]} : vector<8x128xf32> to vector<8x32xf32>
    %21 = arith.mulf %20, %6 : vector<8x32xf32>
    %22 = vector.extract_strided_slice %19 {offsets = [0, 0], sizes = [8, 32], strides = [1, 1]} : vector<8x128xf32> to vector<8x32xf32>
    %23 = vector.extract_strided_slice %19 {offsets = [0, 64], sizes = [8, 32], strides = [1, 1]} : vector<8x128xf32> to vector<8x32xf32>
    %cst_13 = arith.constant 2.000000e+00 : f32
    %24 = vector.broadcast %cst_13 : f32 to vector<8x32xf32>
    %25 = arith.mulf %24, %23 : vector<8x32xf32>
    %cst_14 = arith.constant 1.000000e+00 : f32
    %26 = vector.broadcast %cst_14 : f32 to vector<8x32xf32>
    %27 = arith.subf %25, %26 : vector<8x32xf32>
    %28 = arith.mulf %22, %27 : vector<8x32xf32>
    %29 = arith.addf %21, %28 : vector<8x32xf32>
    %30 = vector.extract_strided_slice %19 {offsets = [0, 96], sizes = [8, 32], strides = [1, 1]} : vector<8x128xf32> to vector<8x32xf32>
    %31 = math.tanh %29 : vector<8x32xf32>
    %32 = arith.mulf %30, %31 : vector<8x32xf32>
    %33 = vector.extract_strided_slice %10 {offsets = [0, 128], sizes = [8, 128], strides = [1, 1]} : vector<8x256xf32> to vector<8x128xf32>
    %cst_15 = arith.constant dense<0.000000e+00> : vector<8x128xf32>
    %34 = tpu.matmul %32, %1, %cst_15 {dimension_numbers = #tpu.dot_dimension_numbers<[1], [0], [0], [1], [0, 0, 1, 1], [], []>} : vector<8x32xf32>, vector<32x128xf32>, vector<8x128xf32> -> vector<8x128xf32>
    %35 = arith.addf %33, %34 : vector<8x128xf32>
    %36 = arith.addf %35, %4 : vector<8x128xf32>
    %37 = arith.negf %36 : vector<8x128xf32>
    %38 = math.exp %37 : vector<8x128xf32>
    %cst_16 = arith.constant 1.000000e+00 : f32
    %39 = vector.broadcast %cst_16 : f32 to vector<8x128xf32>
    %40 = arith.addf %39, %38 : vector<8x128xf32>
    %41 = arith.divf %39, %40 : vector<8x128xf32>
    %42 = vector.extract_strided_slice %41 {offsets = [0, 32], sizes = [8, 32], strides = [1, 1]} : vector<8x128xf32> to vector<8x32xf32>
    %43 = arith.mulf %42, %8 : vector<8x32xf32>
    %44 = vector.extract_strided_slice %41 {offsets = [0, 0], sizes = [8, 32], strides = [1, 1]} : vector<8x128xf32> to vector<8x32xf32>
    %45 = vector.extract_strided_slice %41 {offsets = [0, 64], sizes = [8, 32], strides = [1, 1]} : vector<8x128xf32> to vector<8x32xf32>
    %cst_17 = arith.constant 2.000000e+00 : f32
    %46 = vector.broadcast %cst_17 : f32 to vector<8x32xf32>
    %47 = arith.mulf %46, %45 : vector<8x32xf32>
    %cst_18 = arith.constant 1.000000e+00 : f32
    %48 = vector.broadcast %cst_18 : f32 to vector<8x32xf32>
    %49 = arith.subf %47, %48 : vector<8x32xf32>
    %50 = arith.mulf %44, %49 : vector<8x32xf32>
    %51 = arith.addf %43, %50 : vector<8x32xf32>
    %52 = vector.extract_strided_slice %41 {offsets = [0, 96], sizes = [8, 32], strides = [1, 1]} : vector<8x128xf32> to vector<8x32xf32>
    %53 = math.tanh %51 : vector<8x32xf32>
    %54 = arith.mulf %52, %53 : vector<8x32xf32>
    %55 = tpu.concatenate %32, %54 in 1 : vector<8x32xf32>, vector<8x32xf32> -> vector<8x64xf32>
    %cst_19 = arith.constant dense<0.000000e+00> : vector<8x256xf32>
    %56 = tpu.matmul %55, %0, %cst_19 {dimension_numbers = #tpu.dot_dimension_numbers<[1], [0], [0], [1], [0, 0, 1, 1], [], []>} : vector<8x64xf32>, vector<64x256xf32>, vector<8x256xf32> -> vector<8x256xf32>
    %c0_20 = arith.constant 0 : index
    %c1 = arith.constant 1 : index
    %c0_21 = arith.constant 0 : index
    %57 = vector.load %arg0[%c0_20, %c1, %c0_21] : memref<8x12x128xf32, #tpu.memory_space<vmem>>, vector<8x1x128xf32>
    %58 = vector.shape_cast %57 : vector<8x1x128xf32> to vector<8x128xf32>
    %59 = vector.extract_strided_slice %56 {offsets = [0, 0], sizes = [8, 128], strides = [1, 1]} : vector<8x256xf32> to vector<8x128xf32>
    %60 = arith.addf %58, %59 : vector<8x128xf32>
    %61 = arith.negf %60 : vector<8x128xf32>
    %62 = math.exp %61 : vector<8x128xf32>
    %cst_22 = arith.constant 1.000000e+00 : f32
    %63 = vector.broadcast %cst_22 : f32 to vector<8x128xf32>
    %64 = arith.addf %63, %62 : vector<8x128xf32>
    %65 = arith.divf %63, %64 : vector<8x128xf32>
    %66 = vector.extract_strided_slice %65 {offsets = [0, 32], sizes = [8, 32], strides = [1, 1]} : vector<8x128xf32> to vector<8x32xf32>
    %67 = arith.mulf %66, %29 : vector<8x32xf32>
    %68 = vector.extract_strided_slice %65 {offsets = [0, 0], sizes = [8, 32], strides = [1, 1]} : vector<8x128xf32> to vector<8x32xf32>
    %69 = vector.extract_strided_slice %65 {offsets = [0, 64], sizes = [8, 32], strides = [1, 1]} : vector<8x128xf32> to vector<8x32xf32>
    %cst_23 = arith.constant 2.000000e+00 : f32
    %70 = vector.broadcast %cst_23 : f32 to vector<8x32xf32>
    %71 = arith.mulf %70, %69 : vector<8x32xf32>
    %cst_24 = arith.constant 1.000000e+00 : f32
    %72 = vector.broadcast %cst_24 : f32 to vector<8x32xf32>
    %73 = arith.subf %71, %72 : vector<8x32xf32>
    %74 = arith.mulf %68, %73 : vector<8x32xf32>
    %75 = arith.addf %67, %74 : vector<8x32xf32>
    %76 = vector.extract_strided_slice %65 {offsets = [0, 96], sizes = [8, 32], strides = [1, 1]} : vector<8x128xf32> to vector<8x32xf32>
    %77 = math.tanh %75 : vector<8x32xf32>
    %78 = arith.mulf %76, %77 : vector<8x32xf32>
    %79 = vector.extract_strided_slice %56 {offsets = [0, 128], sizes = [8, 128], strides = [1, 1]} : vector<8x256xf32> to vector<8x128xf32>
    %cst_25 = arith.constant dense<0.000000e+00> : vector<8x128xf32>
    %80 = tpu.matmul %78, %1, %cst_25 {dimension_numbers = #tpu.dot_dimension_numbers<[1], [0], [0], [1], [0, 0, 1, 1], [], []>} : vector<8x32xf32>, vector<32x128xf32>, vector<8x128xf32> -> vector<8x128xf32>
    %81 = arith.addf %79, %80 : vector<8x128xf32>
    %82 = arith.addf %81, %4 : vector<8x128xf32>
    %83 = arith.negf %82 : vector<8x128xf32>
    %84 = math.exp %83 : vector<8x128xf32>
    %cst_26 = arith.constant 1.000000e+00 : f32
    %85 = vector.broadcast %cst_26 : f32 to vector<8x128xf32>
    %86 = arith.addf %85, %84 : vector<8x128xf32>
    %87 = arith.divf %85, %86 : vector<8x128xf32>
    %88 = vector.extract_strided_slice %87 {offsets = [0, 32], sizes = [8, 32], strides = [1, 1]} : vector<8x128xf32> to vector<8x32xf32>
    %89 = arith.mulf %88, %51 : vector<8x32xf32>
    %90 = vector.extract_strided_slice %87 {offsets = [0, 0], sizes = [8, 32], strides = [1, 1]} : vector<8x128xf32> to vector<8x32xf32>
    %91 = vector.extract_strided_slice %87 {offsets = [0, 64], sizes = [8, 32], strides = [1, 1]} : vector<8x128xf32> to vector<8x32xf32>
    %cst_27 = arith.constant 2.000000e+00 : f32
    %92 = vector.broadcast %cst_27 : f32 to vector<8x32xf32>
    %93 = arith.mulf %92, %91 : vector<8x32xf32>
    %cst_28 = arith.constant 1.000000e+00 : f32
    %94 = vector.broadcast %cst_28 : f32 to vector<8x32xf32>
    %95 = arith.subf %93, %94 : vector<8x32xf32>
    %96 = arith.mulf %90, %95 : vector<8x32xf32>
    %97 = arith.addf %89, %96 : vector<8x32xf32>
    %98 = vector.extract_strided_slice %87 {offsets = [0, 96], sizes = [8, 32], strides = [1, 1]} : vector<8x128xf32> to vector<8x32xf32>
    %99 = math.tanh %97 : vector<8x32xf32>
    %100 = arith.mulf %98, %99 : vector<8x32xf32>
    %101 = tpu.concatenate %78, %100 in 1 : vector<8x32xf32>, vector<8x32xf32> -> vector<8x64xf32>
    %cst_29 = arith.constant dense<0.000000e+00> : vector<8x256xf32>
    %102 = tpu.matmul %101, %0, %cst_29 {dimension_numbers = #tpu.dot_dimension_numbers<[1], [0], [0], [1], [0, 0, 1, 1], [], []>} : vector<8x64xf32>, vector<64x256xf32>, vector<8x256xf32> -> vector<8x256xf32>
    %c0_30 = arith.constant 0 : index
    %c2 = arith.constant 2 : index
    %c0_31 = arith.constant 0 : index
    %103 = vector.load %arg0[%c0_30, %c2, %c0_31] : memref<8x12x128xf32, #tpu.memory_space<vmem>>, vector<8x1x128xf32>
    %104 = vector.shape_cast %103 : vector<8x1x128xf32> to vector<8x128xf32>
    %105 = vector.extract_strided_slice %102 {offsets = [0, 0], sizes = [8, 128], strides = [1, 1]} : vector<8x256xf32> to vector<8x128xf32>
    %106 = arith.addf %104, %105 : vector<8x128xf32>
    %107 = arith.negf %106 : vector<8x128xf32>
    %108 = math.exp %107 : vector<8x128xf32>
    %cst_32 = arith.constant 1.000000e+00 : f32
    %109 = vector.broadcast %cst_32 : f32 to vector<8x128xf32>
    %110 = arith.addf %109, %108 : vector<8x128xf32>
    %111 = arith.divf %109, %110 : vector<8x128xf32>
    %112 = vector.extract_strided_slice %111 {offsets = [0, 32], sizes = [8, 32], strides = [1, 1]} : vector<8x128xf32> to vector<8x32xf32>
    %113 = arith.mulf %112, %75 : vector<8x32xf32>
    %114 = vector.extract_strided_slice %111 {offsets = [0, 0], sizes = [8, 32], strides = [1, 1]} : vector<8x128xf32> to vector<8x32xf32>
    %115 = vector.extract_strided_slice %111 {offsets = [0, 64], sizes = [8, 32], strides = [1, 1]} : vector<8x128xf32> to vector<8x32xf32>
    %cst_33 = arith.constant 2.000000e+00 : f32
    %116 = vector.broadcast %cst_33 : f32 to vector<8x32xf32>
    %117 = arith.mulf %116, %115 : vector<8x32xf32>
    %cst_34 = arith.constant 1.000000e+00 : f32
    %118 = vector.broadcast %cst_34 : f32 to vector<8x32xf32>
    %119 = arith.subf %117, %118 : vector<8x32xf32>
    %120 = arith.mulf %114, %119 : vector<8x32xf32>
    %121 = arith.addf %113, %120 : vector<8x32xf32>
    %122 = vector.extract_strided_slice %111 {offsets = [0, 96], sizes = [8, 32], strides = [1, 1]} : vector<8x128xf32> to vector<8x32xf32>
    %123 = math.tanh %121 : vector<8x32xf32>
    %124 = arith.mulf %122, %123 : vector<8x32xf32>
    %125 = vector.extract_strided_slice %102 {offsets = [0, 128], sizes = [8, 128], strides = [1, 1]} : vector<8x256xf32> to vector<8x128xf32>
    %cst_35 = arith.constant dense<0.000000e+00> : vector<8x128xf32>
    %126 = tpu.matmul %124, %1, %cst_35 {dimension_numbers = #tpu.dot_dimension_numbers<[1], [0], [0], [1], [0, 0, 1, 1], [], []>} : vector<8x32xf32>, vector<32x128xf32>, vector<8x128xf32> -> vector<8x128xf32>
    %127 = arith.addf %125, %126 : vector<8x128xf32>
    %128 = arith.addf %127, %4 : vector<8x128xf32>
    %129 = arith.negf %128 : vector<8x128xf32>
    %130 = math.exp %129 : vector<8x128xf32>
    %cst_36 = arith.constant 1.000000e+00 : f32
    %131 = vector.broadcast %cst_36 : f32 to vector<8x128xf32>
    %132 = arith.addf %131, %130 : vector<8x128xf32>
    %133 = arith.divf %131, %132 : vector<8x128xf32>
    %134 = vector.extract_strided_slice %133 {offsets = [0, 32], sizes = [8, 32], strides = [1, 1]} : vector<8x128xf32> to vector<8x32xf32>
    %135 = arith.mulf %134, %97 : vector<8x32xf32>
    %136 = vector.extract_strided_slice %133 {offsets = [0, 0], sizes = [8, 32], strides = [1, 1]} : vector<8x128xf32> to vector<8x32xf32>
    %137 = vector.extract_strided_slice %133 {offsets = [0, 64], sizes = [8, 32], strides = [1, 1]} : vector<8x128xf32> to vector<8x32xf32>
    %cst_37 = arith.constant 2.000000e+00 : f32
    %138 = vector.broadcast %cst_37 : f32 to vector<8x32xf32>
    %139 = arith.mulf %138, %137 : vector<8x32xf32>
    %cst_38 = arith.constant 1.000000e+00 : f32
    %140 = vector.broadcast %cst_38 : f32 to vector<8x32xf32>
    %141 = arith.subf %139, %140 : vector<8x32xf32>
    %142 = arith.mulf %136, %141 : vector<8x32xf32>
    %143 = arith.addf %135, %142 : vector<8x32xf32>
    %144 = vector.extract_strided_slice %133 {offsets = [0, 96], sizes = [8, 32], strides = [1, 1]} : vector<8x128xf32> to vector<8x32xf32>
    %145 = math.tanh %143 : vector<8x32xf32>
    %146 = arith.mulf %144, %145 : vector<8x32xf32>
    %147 = tpu.concatenate %124, %146 in 1 : vector<8x32xf32>, vector<8x32xf32> -> vector<8x64xf32>
    %cst_39 = arith.constant dense<0.000000e+00> : vector<8x256xf32>
    %148 = tpu.matmul %147, %0, %cst_39 {dimension_numbers = #tpu.dot_dimension_numbers<[1], [0], [0], [1], [0, 0, 1, 1], [], []>} : vector<8x64xf32>, vector<64x256xf32>, vector<8x256xf32> -> vector<8x256xf32>
    %c0_40 = arith.constant 0 : index
    %c3 = arith.constant 3 : index
    %c0_41 = arith.constant 0 : index
    %149 = vector.load %arg0[%c0_40, %c3, %c0_41] : memref<8x12x128xf32, #tpu.memory_space<vmem>>, vector<8x1x128xf32>
    %150 = vector.shape_cast %149 : vector<8x1x128xf32> to vector<8x128xf32>
    %151 = vector.extract_strided_slice %148 {offsets = [0, 0], sizes = [8, 128], strides = [1, 1]} : vector<8x256xf32> to vector<8x128xf32>
    %152 = arith.addf %150, %151 : vector<8x128xf32>
    %153 = arith.negf %152 : vector<8x128xf32>
    %154 = math.exp %153 : vector<8x128xf32>
    %cst_42 = arith.constant 1.000000e+00 : f32
    %155 = vector.broadcast %cst_42 : f32 to vector<8x128xf32>
    %156 = arith.addf %155, %154 : vector<8x128xf32>
    %157 = arith.divf %155, %156 : vector<8x128xf32>
    %158 = vector.extract_strided_slice %157 {offsets = [0, 32], sizes = [8, 32], strides = [1, 1]} : vector<8x128xf32> to vector<8x32xf32>
    %159 = arith.mulf %158, %121 : vector<8x32xf32>
    %160 = vector.extract_strided_slice %157 {offsets = [0, 0], sizes = [8, 32], strides = [1, 1]} : vector<8x128xf32> to vector<8x32xf32>
    %161 = vector.extract_strided_slice %157 {offsets = [0, 64], sizes = [8, 32], strides = [1, 1]} : vector<8x128xf32> to vector<8x32xf32>
    %cst_43 = arith.constant 2.000000e+00 : f32
    %162 = vector.broadcast %cst_43 : f32 to vector<8x32xf32>
    %163 = arith.mulf %162, %161 : vector<8x32xf32>
    %cst_44 = arith.constant 1.000000e+00 : f32
    %164 = vector.broadcast %cst_44 : f32 to vector<8x32xf32>
    %165 = arith.subf %163, %164 : vector<8x32xf32>
    %166 = arith.mulf %160, %165 : vector<8x32xf32>
    %167 = arith.addf %159, %166 : vector<8x32xf32>
    %168 = vector.extract_strided_slice %157 {offsets = [0, 96], sizes = [8, 32], strides = [1, 1]} : vector<8x128xf32> to vector<8x32xf32>
    %169 = math.tanh %167 : vector<8x32xf32>
    %170 = arith.mulf %168, %169 : vector<8x32xf32>
    %171 = vector.extract_strided_slice %148 {offsets = [0, 128], sizes = [8, 128], strides = [1, 1]} : vector<8x256xf32> to vector<8x128xf32>
    %cst_45 = arith.constant dense<0.000000e+00> : vector<8x128xf32>
    %172 = tpu.matmul %170, %1, %cst_45 {dimension_numbers = #tpu.dot_dimension_numbers<[1], [0], [0], [1], [0, 0, 1, 1], [], []>} : vector<8x32xf32>, vector<32x128xf32>, vector<8x128xf32> -> vector<8x128xf32>
    %173 = arith.addf %171, %172 : vector<8x128xf32>
    %174 = arith.addf %173, %4 : vector<8x128xf32>
    %175 = arith.negf %174 : vector<8x128xf32>
    %176 = math.exp %175 : vector<8x128xf32>
    %cst_46 = arith.constant 1.000000e+00 : f32
    %177 = vector.broadcast %cst_46 : f32 to vector<8x128xf32>
    %178 = arith.addf %177, %176 : vector<8x128xf32>
    %179 = arith.divf %177, %178 : vector<8x128xf32>
    %180 = vector.extract_strided_slice %179 {offsets = [0, 32], sizes = [8, 32], strides = [1, 1]} : vector<8x128xf32> to vector<8x32xf32>
    %181 = arith.mulf %180, %143 : vector<8x32xf32>
    %182 = vector.extract_strided_slice %179 {offsets = [0, 0], sizes = [8, 32], strides = [1, 1]} : vector<8x128xf32> to vector<8x32xf32>
    %183 = vector.extract_strided_slice %179 {offsets = [0, 64], sizes = [8, 32], strides = [1, 1]} : vector<8x128xf32> to vector<8x32xf32>
    %cst_47 = arith.constant 2.000000e+00 : f32
    %184 = vector.broadcast %cst_47 : f32 to vector<8x32xf32>
    %185 = arith.mulf %184, %183 : vector<8x32xf32>
    %cst_48 = arith.constant 1.000000e+00 : f32
    %186 = vector.broadcast %cst_48 : f32 to vector<8x32xf32>
    %187 = arith.subf %185, %186 : vector<8x32xf32>
    %188 = arith.mulf %182, %187 : vector<8x32xf32>
    %189 = arith.addf %181, %188 : vector<8x32xf32>
    %190 = vector.extract_strided_slice %179 {offsets = [0, 96], sizes = [8, 32], strides = [1, 1]} : vector<8x128xf32> to vector<8x32xf32>
    %191 = math.tanh %189 : vector<8x32xf32>
    %192 = arith.mulf %190, %191 : vector<8x32xf32>
    %193 = tpu.concatenate %170, %192 in 1 : vector<8x32xf32>, vector<8x32xf32> -> vector<8x64xf32>
    %cst_49 = arith.constant dense<0.000000e+00> : vector<8x256xf32>
    %194 = tpu.matmul %193, %0, %cst_49 {dimension_numbers = #tpu.dot_dimension_numbers<[1], [0], [0], [1], [0, 0, 1, 1], [], []>} : vector<8x64xf32>, vector<64x256xf32>, vector<8x256xf32> -> vector<8x256xf32>
    %c0_50 = arith.constant 0 : index
    %c4 = arith.constant 4 : index
    %c0_51 = arith.constant 0 : index
    %195 = vector.load %arg0[%c0_50, %c4, %c0_51] : memref<8x12x128xf32, #tpu.memory_space<vmem>>, vector<8x1x128xf32>
    %196 = vector.shape_cast %195 : vector<8x1x128xf32> to vector<8x128xf32>
    %197 = vector.extract_strided_slice %194 {offsets = [0, 0], sizes = [8, 128], strides = [1, 1]} : vector<8x256xf32> to vector<8x128xf32>
    %198 = arith.addf %196, %197 : vector<8x128xf32>
    %199 = arith.negf %198 : vector<8x128xf32>
    %200 = math.exp %199 : vector<8x128xf32>
    %cst_52 = arith.constant 1.000000e+00 : f32
    %201 = vector.broadcast %cst_52 : f32 to vector<8x128xf32>
    %202 = arith.addf %201, %200 : vector<8x128xf32>
    %203 = arith.divf %201, %202 : vector<8x128xf32>
    %204 = vector.extract_strided_slice %203 {offsets = [0, 32], sizes = [8, 32], strides = [1, 1]} : vector<8x128xf32> to vector<8x32xf32>
    %205 = arith.mulf %204, %167 : vector<8x32xf32>
    %206 = vector.extract_strided_slice %203 {offsets = [0, 0], sizes = [8, 32], strides = [1, 1]} : vector<8x128xf32> to vector<8x32xf32>
    %207 = vector.extract_strided_slice %203 {offsets = [0, 64], sizes = [8, 32], strides = [1, 1]} : vector<8x128xf32> to vector<8x32xf32>
    %cst_53 = arith.constant 2.000000e+00 : f32
    %208 = vector.broadcast %cst_53 : f32 to vector<8x32xf32>
    %209 = arith.mulf %208, %207 : vector<8x32xf32>
    %cst_54 = arith.constant 1.000000e+00 : f32
    %210 = vector.broadcast %cst_54 : f32 to vector<8x32xf32>
    %211 = arith.subf %209, %210 : vector<8x32xf32>
    %212 = arith.mulf %206, %211 : vector<8x32xf32>
    %213 = arith.addf %205, %212 : vector<8x32xf32>
    %214 = vector.extract_strided_slice %203 {offsets = [0, 96], sizes = [8, 32], strides = [1, 1]} : vector<8x128xf32> to vector<8x32xf32>
    %215 = math.tanh %213 : vector<8x32xf32>
    %216 = arith.mulf %214, %215 : vector<8x32xf32>
    %217 = vector.extract_strided_slice %194 {offsets = [0, 128], sizes = [8, 128], strides = [1, 1]} : vector<8x256xf32> to vector<8x128xf32>
    %cst_55 = arith.constant dense<0.000000e+00> : vector<8x128xf32>
    %218 = tpu.matmul %216, %1, %cst_55 {dimension_numbers = #tpu.dot_dimension_numbers<[1], [0], [0], [1], [0, 0, 1, 1], [], []>} : vector<8x32xf32>, vector<32x128xf32>, vector<8x128xf32> -> vector<8x128xf32>
    %219 = arith.addf %217, %218 : vector<8x128xf32>
    %220 = arith.addf %219, %4 : vector<8x128xf32>
    %221 = arith.negf %220 : vector<8x128xf32>
    %222 = math.exp %221 : vector<8x128xf32>
    %cst_56 = arith.constant 1.000000e+00 : f32
    %223 = vector.broadcast %cst_56 : f32 to vector<8x128xf32>
    %224 = arith.addf %223, %222 : vector<8x128xf32>
    %225 = arith.divf %223, %224 : vector<8x128xf32>
    %226 = vector.extract_strided_slice %225 {offsets = [0, 32], sizes = [8, 32], strides = [1, 1]} : vector<8x128xf32> to vector<8x32xf32>
    %227 = arith.mulf %226, %189 : vector<8x32xf32>
    %228 = vector.extract_strided_slice %225 {offsets = [0, 0], sizes = [8, 32], strides = [1, 1]} : vector<8x128xf32> to vector<8x32xf32>
    %229 = vector.extract_strided_slice %225 {offsets = [0, 64], sizes = [8, 32], strides = [1, 1]} : vector<8x128xf32> to vector<8x32xf32>
    %cst_57 = arith.constant 2.000000e+00 : f32
    %230 = vector.broadcast %cst_57 : f32 to vector<8x32xf32>
    %231 = arith.mulf %230, %229 : vector<8x32xf32>
    %cst_58 = arith.constant 1.000000e+00 : f32
    %232 = vector.broadcast %cst_58 : f32 to vector<8x32xf32>
    %233 = arith.subf %231, %232 : vector<8x32xf32>
    %234 = arith.mulf %228, %233 : vector<8x32xf32>
    %235 = arith.addf %227, %234 : vector<8x32xf32>
    %236 = vector.extract_strided_slice %225 {offsets = [0, 96], sizes = [8, 32], strides = [1, 1]} : vector<8x128xf32> to vector<8x32xf32>
    %237 = math.tanh %235 : vector<8x32xf32>
    %238 = arith.mulf %236, %237 : vector<8x32xf32>
    %239 = tpu.concatenate %216, %238 in 1 : vector<8x32xf32>, vector<8x32xf32> -> vector<8x64xf32>
    %cst_59 = arith.constant dense<0.000000e+00> : vector<8x256xf32>
    %240 = tpu.matmul %239, %0, %cst_59 {dimension_numbers = #tpu.dot_dimension_numbers<[1], [0], [0], [1], [0, 0, 1, 1], [], []>} : vector<8x64xf32>, vector<64x256xf32>, vector<8x256xf32> -> vector<8x256xf32>
    %c0_60 = arith.constant 0 : index
    %c5 = arith.constant 5 : index
    %c0_61 = arith.constant 0 : index
    %241 = vector.load %arg0[%c0_60, %c5, %c0_61] : memref<8x12x128xf32, #tpu.memory_space<vmem>>, vector<8x1x128xf32>
    %242 = vector.shape_cast %241 : vector<8x1x128xf32> to vector<8x128xf32>
    %243 = vector.extract_strided_slice %240 {offsets = [0, 0], sizes = [8, 128], strides = [1, 1]} : vector<8x256xf32> to vector<8x128xf32>
    %244 = arith.addf %242, %243 : vector<8x128xf32>
    %245 = arith.negf %244 : vector<8x128xf32>
    %246 = math.exp %245 : vector<8x128xf32>
    %cst_62 = arith.constant 1.000000e+00 : f32
    %247 = vector.broadcast %cst_62 : f32 to vector<8x128xf32>
    %248 = arith.addf %247, %246 : vector<8x128xf32>
    %249 = arith.divf %247, %248 : vector<8x128xf32>
    %250 = vector.extract_strided_slice %249 {offsets = [0, 32], sizes = [8, 32], strides = [1, 1]} : vector<8x128xf32> to vector<8x32xf32>
    %251 = arith.mulf %250, %213 : vector<8x32xf32>
    %252 = vector.extract_strided_slice %249 {offsets = [0, 0], sizes = [8, 32], strides = [1, 1]} : vector<8x128xf32> to vector<8x32xf32>
    %253 = vector.extract_strided_slice %249 {offsets = [0, 64], sizes = [8, 32], strides = [1, 1]} : vector<8x128xf32> to vector<8x32xf32>
    %cst_63 = arith.constant 2.000000e+00 : f32
    %254 = vector.broadcast %cst_63 : f32 to vector<8x32xf32>
    %255 = arith.mulf %254, %253 : vector<8x32xf32>
    %cst_64 = arith.constant 1.000000e+00 : f32
    %256 = vector.broadcast %cst_64 : f32 to vector<8x32xf32>
    %257 = arith.subf %255, %256 : vector<8x32xf32>
    %258 = arith.mulf %252, %257 : vector<8x32xf32>
    %259 = arith.addf %251, %258 : vector<8x32xf32>
    %260 = vector.extract_strided_slice %249 {offsets = [0, 96], sizes = [8, 32], strides = [1, 1]} : vector<8x128xf32> to vector<8x32xf32>
    %261 = math.tanh %259 : vector<8x32xf32>
    %262 = arith.mulf %260, %261 : vector<8x32xf32>
    %263 = vector.extract_strided_slice %240 {offsets = [0, 128], sizes = [8, 128], strides = [1, 1]} : vector<8x256xf32> to vector<8x128xf32>
    %cst_65 = arith.constant dense<0.000000e+00> : vector<8x128xf32>
    %264 = tpu.matmul %262, %1, %cst_65 {dimension_numbers = #tpu.dot_dimension_numbers<[1], [0], [0], [1], [0, 0, 1, 1], [], []>} : vector<8x32xf32>, vector<32x128xf32>, vector<8x128xf32> -> vector<8x128xf32>
    %265 = arith.addf %263, %264 : vector<8x128xf32>
    %266 = arith.addf %265, %4 : vector<8x128xf32>
    %267 = arith.negf %266 : vector<8x128xf32>
    %268 = math.exp %267 : vector<8x128xf32>
    %cst_66 = arith.constant 1.000000e+00 : f32
    %269 = vector.broadcast %cst_66 : f32 to vector<8x128xf32>
    %270 = arith.addf %269, %268 : vector<8x128xf32>
    %271 = arith.divf %269, %270 : vector<8x128xf32>
    %272 = vector.extract_strided_slice %271 {offsets = [0, 32], sizes = [8, 32], strides = [1, 1]} : vector<8x128xf32> to vector<8x32xf32>
    %273 = arith.mulf %272, %235 : vector<8x32xf32>
    %274 = vector.extract_strided_slice %271 {offsets = [0, 0], sizes = [8, 32], strides = [1, 1]} : vector<8x128xf32> to vector<8x32xf32>
    %275 = vector.extract_strided_slice %271 {offsets = [0, 64], sizes = [8, 32], strides = [1, 1]} : vector<8x128xf32> to vector<8x32xf32>
    %cst_67 = arith.constant 2.000000e+00 : f32
    %276 = vector.broadcast %cst_67 : f32 to vector<8x32xf32>
    %277 = arith.mulf %276, %275 : vector<8x32xf32>
    %cst_68 = arith.constant 1.000000e+00 : f32
    %278 = vector.broadcast %cst_68 : f32 to vector<8x32xf32>
    %279 = arith.subf %277, %278 : vector<8x32xf32>
    %280 = arith.mulf %274, %279 : vector<8x32xf32>
    %281 = arith.addf %273, %280 : vector<8x32xf32>
    %282 = vector.extract_strided_slice %271 {offsets = [0, 96], sizes = [8, 32], strides = [1, 1]} : vector<8x128xf32> to vector<8x32xf32>
    %283 = math.tanh %281 : vector<8x32xf32>
    %284 = arith.mulf %282, %283 : vector<8x32xf32>
    %285 = tpu.concatenate %262, %284 in 1 : vector<8x32xf32>, vector<8x32xf32> -> vector<8x64xf32>
    %cst_69 = arith.constant dense<0.000000e+00> : vector<8x256xf32>
    %286 = tpu.matmul %285, %0, %cst_69 {dimension_numbers = #tpu.dot_dimension_numbers<[1], [0], [0], [1], [0, 0, 1, 1], [], []>} : vector<8x64xf32>, vector<64x256xf32>, vector<8x256xf32> -> vector<8x256xf32>
    %c0_70 = arith.constant 0 : index
    %c6 = arith.constant 6 : index
    %c0_71 = arith.constant 0 : index
    %287 = vector.load %arg0[%c0_70, %c6, %c0_71] : memref<8x12x128xf32, #tpu.memory_space<vmem>>, vector<8x1x128xf32>
    %288 = vector.shape_cast %287 : vector<8x1x128xf32> to vector<8x128xf32>
    %289 = vector.extract_strided_slice %286 {offsets = [0, 0], sizes = [8, 128], strides = [1, 1]} : vector<8x256xf32> to vector<8x128xf32>
    %290 = arith.addf %288, %289 : vector<8x128xf32>
    %291 = arith.negf %290 : vector<8x128xf32>
    %292 = math.exp %291 : vector<8x128xf32>
    %cst_72 = arith.constant 1.000000e+00 : f32
    %293 = vector.broadcast %cst_72 : f32 to vector<8x128xf32>
    %294 = arith.addf %293, %292 : vector<8x128xf32>
    %295 = arith.divf %293, %294 : vector<8x128xf32>
    %296 = vector.extract_strided_slice %295 {offsets = [0, 32], sizes = [8, 32], strides = [1, 1]} : vector<8x128xf32> to vector<8x32xf32>
    %297 = arith.mulf %296, %259 : vector<8x32xf32>
    %298 = vector.extract_strided_slice %295 {offsets = [0, 0], sizes = [8, 32], strides = [1, 1]} : vector<8x128xf32> to vector<8x32xf32>
    %299 = vector.extract_strided_slice %295 {offsets = [0, 64], sizes = [8, 32], strides = [1, 1]} : vector<8x128xf32> to vector<8x32xf32>
    %cst_73 = arith.constant 2.000000e+00 : f32
    %300 = vector.broadcast %cst_73 : f32 to vector<8x32xf32>
    %301 = arith.mulf %300, %299 : vector<8x32xf32>
    %cst_74 = arith.constant 1.000000e+00 : f32
    %302 = vector.broadcast %cst_74 : f32 to vector<8x32xf32>
    %303 = arith.subf %301, %302 : vector<8x32xf32>
    %304 = arith.mulf %298, %303 : vector<8x32xf32>
    %305 = arith.addf %297, %304 : vector<8x32xf32>
    %306 = vector.extract_strided_slice %295 {offsets = [0, 96], sizes = [8, 32], strides = [1, 1]} : vector<8x128xf32> to vector<8x32xf32>
    %307 = math.tanh %305 : vector<8x32xf32>
    %308 = arith.mulf %306, %307 : vector<8x32xf32>
    %309 = vector.extract_strided_slice %286 {offsets = [0, 128], sizes = [8, 128], strides = [1, 1]} : vector<8x256xf32> to vector<8x128xf32>
    %cst_75 = arith.constant dense<0.000000e+00> : vector<8x128xf32>
    %310 = tpu.matmul %308, %1, %cst_75 {dimension_numbers = #tpu.dot_dimension_numbers<[1], [0], [0], [1], [0, 0, 1, 1], [], []>} : vector<8x32xf32>, vector<32x128xf32>, vector<8x128xf32> -> vector<8x128xf32>
    %311 = arith.addf %309, %310 : vector<8x128xf32>
    %312 = arith.addf %311, %4 : vector<8x128xf32>
    %313 = arith.negf %312 : vector<8x128xf32>
    %314 = math.exp %313 : vector<8x128xf32>
    %cst_76 = arith.constant 1.000000e+00 : f32
    %315 = vector.broadcast %cst_76 : f32 to vector<8x128xf32>
    %316 = arith.addf %315, %314 : vector<8x128xf32>
    %317 = arith.divf %315, %316 : vector<8x128xf32>
    %318 = vector.extract_strided_slice %317 {offsets = [0, 32], sizes = [8, 32], strides = [1, 1]} : vector<8x128xf32> to vector<8x32xf32>
    %319 = arith.mulf %318, %281 : vector<8x32xf32>
    %320 = vector.extract_strided_slice %317 {offsets = [0, 0], sizes = [8, 32], strides = [1, 1]} : vector<8x128xf32> to vector<8x32xf32>
    %321 = vector.extract_strided_slice %317 {offsets = [0, 64], sizes = [8, 32], strides = [1, 1]} : vector<8x128xf32> to vector<8x32xf32>
    %cst_77 = arith.constant 2.000000e+00 : f32
    %322 = vector.broadcast %cst_77 : f32 to vector<8x32xf32>
    %323 = arith.mulf %322, %321 : vector<8x32xf32>
    %cst_78 = arith.constant 1.000000e+00 : f32
    %324 = vector.broadcast %cst_78 : f32 to vector<8x32xf32>
    %325 = arith.subf %323, %324 : vector<8x32xf32>
    %326 = arith.mulf %320, %325 : vector<8x32xf32>
    %327 = arith.addf %319, %326 : vector<8x32xf32>
    %328 = vector.extract_strided_slice %317 {offsets = [0, 96], sizes = [8, 32], strides = [1, 1]} : vector<8x128xf32> to vector<8x32xf32>
    %329 = math.tanh %327 : vector<8x32xf32>
    %330 = arith.mulf %328, %329 : vector<8x32xf32>
    %331 = tpu.concatenate %308, %330 in 1 : vector<8x32xf32>, vector<8x32xf32> -> vector<8x64xf32>
    %cst_79 = arith.constant dense<0.000000e+00> : vector<8x256xf32>
    %332 = tpu.matmul %331, %0, %cst_79 {dimension_numbers = #tpu.dot_dimension_numbers<[1], [0], [0], [1], [0, 0, 1, 1], [], []>} : vector<8x64xf32>, vector<64x256xf32>, vector<8x256xf32> -> vector<8x256xf32>
    %c0_80 = arith.constant 0 : index
    %c7 = arith.constant 7 : index
    %c0_81 = arith.constant 0 : index
    %333 = vector.load %arg0[%c0_80, %c7, %c0_81] : memref<8x12x128xf32, #tpu.memory_space<vmem>>, vector<8x1x128xf32>
    %334 = vector.shape_cast %333 : vector<8x1x128xf32> to vector<8x128xf32>
    %335 = vector.extract_strided_slice %332 {offsets = [0, 0], sizes = [8, 128], strides = [1, 1]} : vector<8x256xf32> to vector<8x128xf32>
    %336 = arith.addf %334, %335 : vector<8x128xf32>
    %337 = arith.negf %336 : vector<8x128xf32>
    %338 = math.exp %337 : vector<8x128xf32>
    %cst_82 = arith.constant 1.000000e+00 : f32
    %339 = vector.broadcast %cst_82 : f32 to vector<8x128xf32>
    %340 = arith.addf %339, %338 : vector<8x128xf32>
    %341 = arith.divf %339, %340 : vector<8x128xf32>
    %342 = vector.extract_strided_slice %341 {offsets = [0, 32], sizes = [8, 32], strides = [1, 1]} : vector<8x128xf32> to vector<8x32xf32>
    %343 = arith.mulf %342, %305 : vector<8x32xf32>
    %344 = vector.extract_strided_slice %341 {offsets = [0, 0], sizes = [8, 32], strides = [1, 1]} : vector<8x128xf32> to vector<8x32xf32>
    %345 = vector.extract_strided_slice %341 {offsets = [0, 64], sizes = [8, 32], strides = [1, 1]} : vector<8x128xf32> to vector<8x32xf32>
    %cst_83 = arith.constant 2.000000e+00 : f32
    %346 = vector.broadcast %cst_83 : f32 to vector<8x32xf32>
    %347 = arith.mulf %346, %345 : vector<8x32xf32>
    %cst_84 = arith.constant 1.000000e+00 : f32
    %348 = vector.broadcast %cst_84 : f32 to vector<8x32xf32>
    %349 = arith.subf %347, %348 : vector<8x32xf32>
    %350 = arith.mulf %344, %349 : vector<8x32xf32>
    %351 = arith.addf %343, %350 : vector<8x32xf32>
    %352 = vector.extract_strided_slice %341 {offsets = [0, 96], sizes = [8, 32], strides = [1, 1]} : vector<8x128xf32> to vector<8x32xf32>
    %353 = math.tanh %351 : vector<8x32xf32>
    %354 = arith.mulf %352, %353 : vector<8x32xf32>
    %355 = vector.extract_strided_slice %332 {offsets = [0, 128], sizes = [8, 128], strides = [1, 1]} : vector<8x256xf32> to vector<8x128xf32>
    %cst_85 = arith.constant dense<0.000000e+00> : vector<8x128xf32>
    %356 = tpu.matmul %354, %1, %cst_85 {dimension_numbers = #tpu.dot_dimension_numbers<[1], [0], [0], [1], [0, 0, 1, 1], [], []>} : vector<8x32xf32>, vector<32x128xf32>, vector<8x128xf32> -> vector<8x128xf32>
    %357 = arith.addf %355, %356 : vector<8x128xf32>
    %358 = arith.addf %357, %4 : vector<8x128xf32>
    %359 = arith.negf %358 : vector<8x128xf32>
    %360 = math.exp %359 : vector<8x128xf32>
    %cst_86 = arith.constant 1.000000e+00 : f32
    %361 = vector.broadcast %cst_86 : f32 to vector<8x128xf32>
    %362 = arith.addf %361, %360 : vector<8x128xf32>
    %363 = arith.divf %361, %362 : vector<8x128xf32>
    %364 = vector.extract_strided_slice %363 {offsets = [0, 32], sizes = [8, 32], strides = [1, 1]} : vector<8x128xf32> to vector<8x32xf32>
    %365 = arith.mulf %364, %327 : vector<8x32xf32>
    %366 = vector.extract_strided_slice %363 {offsets = [0, 0], sizes = [8, 32], strides = [1, 1]} : vector<8x128xf32> to vector<8x32xf32>
    %367 = vector.extract_strided_slice %363 {offsets = [0, 64], sizes = [8, 32], strides = [1, 1]} : vector<8x128xf32> to vector<8x32xf32>
    %cst_87 = arith.constant 2.000000e+00 : f32
    %368 = vector.broadcast %cst_87 : f32 to vector<8x32xf32>
    %369 = arith.mulf %368, %367 : vector<8x32xf32>
    %cst_88 = arith.constant 1.000000e+00 : f32
    %370 = vector.broadcast %cst_88 : f32 to vector<8x32xf32>
    %371 = arith.subf %369, %370 : vector<8x32xf32>
    %372 = arith.mulf %366, %371 : vector<8x32xf32>
    %373 = arith.addf %365, %372 : vector<8x32xf32>
    %374 = vector.extract_strided_slice %363 {offsets = [0, 96], sizes = [8, 32], strides = [1, 1]} : vector<8x128xf32> to vector<8x32xf32>
    %375 = math.tanh %373 : vector<8x32xf32>
    %376 = arith.mulf %374, %375 : vector<8x32xf32>
    %377 = tpu.concatenate %354, %376 in 1 : vector<8x32xf32>, vector<8x32xf32> -> vector<8x64xf32>
    %cst_89 = arith.constant dense<0.000000e+00> : vector<8x256xf32>
    %378 = tpu.matmul %377, %0, %cst_89 {dimension_numbers = #tpu.dot_dimension_numbers<[1], [0], [0], [1], [0, 0, 1, 1], [], []>} : vector<8x64xf32>, vector<64x256xf32>, vector<8x256xf32> -> vector<8x256xf32>
    %c0_90 = arith.constant 0 : index
    %c8 = arith.constant 8 : index
    %c0_91 = arith.constant 0 : index
    %379 = vector.load %arg0[%c0_90, %c8, %c0_91] : memref<8x12x128xf32, #tpu.memory_space<vmem>>, vector<8x1x128xf32>
    %380 = vector.shape_cast %379 : vector<8x1x128xf32> to vector<8x128xf32>
    %381 = vector.extract_strided_slice %378 {offsets = [0, 0], sizes = [8, 128], strides = [1, 1]} : vector<8x256xf32> to vector<8x128xf32>
    %382 = arith.addf %380, %381 : vector<8x128xf32>
    %383 = arith.negf %382 : vector<8x128xf32>
    %384 = math.exp %383 : vector<8x128xf32>
    %cst_92 = arith.constant 1.000000e+00 : f32
    %385 = vector.broadcast %cst_92 : f32 to vector<8x128xf32>
    %386 = arith.addf %385, %384 : vector<8x128xf32>
    %387 = arith.divf %385, %386 : vector<8x128xf32>
    %388 = vector.extract_strided_slice %387 {offsets = [0, 32], sizes = [8, 32], strides = [1, 1]} : vector<8x128xf32> to vector<8x32xf32>
    %389 = arith.mulf %388, %351 : vector<8x32xf32>
    %390 = vector.extract_strided_slice %387 {offsets = [0, 0], sizes = [8, 32], strides = [1, 1]} : vector<8x128xf32> to vector<8x32xf32>
    %391 = vector.extract_strided_slice %387 {offsets = [0, 64], sizes = [8, 32], strides = [1, 1]} : vector<8x128xf32> to vector<8x32xf32>
    %cst_93 = arith.constant 2.000000e+00 : f32
    %392 = vector.broadcast %cst_93 : f32 to vector<8x32xf32>
    %393 = arith.mulf %392, %391 : vector<8x32xf32>
    %cst_94 = arith.constant 1.000000e+00 : f32
    %394 = vector.broadcast %cst_94 : f32 to vector<8x32xf32>
    %395 = arith.subf %393, %394 : vector<8x32xf32>
    %396 = arith.mulf %390, %395 : vector<8x32xf32>
    %397 = arith.addf %389, %396 : vector<8x32xf32>
    %398 = vector.extract_strided_slice %387 {offsets = [0, 96], sizes = [8, 32], strides = [1, 1]} : vector<8x128xf32> to vector<8x32xf32>
    %399 = math.tanh %397 : vector<8x32xf32>
    %400 = arith.mulf %398, %399 : vector<8x32xf32>
    %401 = vector.extract_strided_slice %378 {offsets = [0, 128], sizes = [8, 128], strides = [1, 1]} : vector<8x256xf32> to vector<8x128xf32>
    %cst_95 = arith.constant dense<0.000000e+00> : vector<8x128xf32>
    %402 = tpu.matmul %400, %1, %cst_95 {dimension_numbers = #tpu.dot_dimension_numbers<[1], [0], [0], [1], [0, 0, 1, 1], [], []>} : vector<8x32xf32>, vector<32x128xf32>, vector<8x128xf32> -> vector<8x128xf32>
    %403 = arith.addf %401, %402 : vector<8x128xf32>
    %404 = arith.addf %403, %4 : vector<8x128xf32>
    %405 = arith.negf %404 : vector<8x128xf32>
    %406 = math.exp %405 : vector<8x128xf32>
    %cst_96 = arith.constant 1.000000e+00 : f32
    %407 = vector.broadcast %cst_96 : f32 to vector<8x128xf32>
    %408 = arith.addf %407, %406 : vector<8x128xf32>
    %409 = arith.divf %407, %408 : vector<8x128xf32>
    %410 = vector.extract_strided_slice %409 {offsets = [0, 32], sizes = [8, 32], strides = [1, 1]} : vector<8x128xf32> to vector<8x32xf32>
    %411 = arith.mulf %410, %373 : vector<8x32xf32>
    %412 = vector.extract_strided_slice %409 {offsets = [0, 0], sizes = [8, 32], strides = [1, 1]} : vector<8x128xf32> to vector<8x32xf32>
    %413 = vector.extract_strided_slice %409 {offsets = [0, 64], sizes = [8, 32], strides = [1, 1]} : vector<8x128xf32> to vector<8x32xf32>
    %cst_97 = arith.constant 2.000000e+00 : f32
    %414 = vector.broadcast %cst_97 : f32 to vector<8x32xf32>
    %415 = arith.mulf %414, %413 : vector<8x32xf32>
    %cst_98 = arith.constant 1.000000e+00 : f32
    %416 = vector.broadcast %cst_98 : f32 to vector<8x32xf32>
    %417 = arith.subf %415, %416 : vector<8x32xf32>
    %418 = arith.mulf %412, %417 : vector<8x32xf32>
    %419 = arith.addf %411, %418 : vector<8x32xf32>
    %420 = vector.extract_strided_slice %409 {offsets = [0, 96], sizes = [8, 32], strides = [1, 1]} : vector<8x128xf32> to vector<8x32xf32>
    %421 = math.tanh %419 : vector<8x32xf32>
    %422 = arith.mulf %420, %421 : vector<8x32xf32>
    %423 = tpu.concatenate %400, %422 in 1 : vector<8x32xf32>, vector<8x32xf32> -> vector<8x64xf32>
    %cst_99 = arith.constant dense<0.000000e+00> : vector<8x256xf32>
    %424 = tpu.matmul %423, %0, %cst_99 {dimension_numbers = #tpu.dot_dimension_numbers<[1], [0], [0], [1], [0, 0, 1, 1], [], []>} : vector<8x64xf32>, vector<64x256xf32>, vector<8x256xf32> -> vector<8x256xf32>
    %c0_100 = arith.constant 0 : index
    %c9 = arith.constant 9 : index
    %c0_101 = arith.constant 0 : index
    %425 = vector.load %arg0[%c0_100, %c9, %c0_101] : memref<8x12x128xf32, #tpu.memory_space<vmem>>, vector<8x1x128xf32>
    %426 = vector.shape_cast %425 : vector<8x1x128xf32> to vector<8x128xf32>
    %427 = vector.extract_strided_slice %424 {offsets = [0, 0], sizes = [8, 128], strides = [1, 1]} : vector<8x256xf32> to vector<8x128xf32>
    %428 = arith.addf %426, %427 : vector<8x128xf32>
    %429 = arith.negf %428 : vector<8x128xf32>
    %430 = math.exp %429 : vector<8x128xf32>
    %cst_102 = arith.constant 1.000000e+00 : f32
    %431 = vector.broadcast %cst_102 : f32 to vector<8x128xf32>
    %432 = arith.addf %431, %430 : vector<8x128xf32>
    %433 = arith.divf %431, %432 : vector<8x128xf32>
    %434 = vector.extract_strided_slice %433 {offsets = [0, 32], sizes = [8, 32], strides = [1, 1]} : vector<8x128xf32> to vector<8x32xf32>
    %435 = arith.mulf %434, %397 : vector<8x32xf32>
    %436 = vector.extract_strided_slice %433 {offsets = [0, 0], sizes = [8, 32], strides = [1, 1]} : vector<8x128xf32> to vector<8x32xf32>
    %437 = vector.extract_strided_slice %433 {offsets = [0, 64], sizes = [8, 32], strides = [1, 1]} : vector<8x128xf32> to vector<8x32xf32>
    %cst_103 = arith.constant 2.000000e+00 : f32
    %438 = vector.broadcast %cst_103 : f32 to vector<8x32xf32>
    %439 = arith.mulf %438, %437 : vector<8x32xf32>
    %cst_104 = arith.constant 1.000000e+00 : f32
    %440 = vector.broadcast %cst_104 : f32 to vector<8x32xf32>
    %441 = arith.subf %439, %440 : vector<8x32xf32>
    %442 = arith.mulf %436, %441 : vector<8x32xf32>
    %443 = arith.addf %435, %442 : vector<8x32xf32>
    %444 = vector.extract_strided_slice %433 {offsets = [0, 96], sizes = [8, 32], strides = [1, 1]} : vector<8x128xf32> to vector<8x32xf32>
    %445 = math.tanh %443 : vector<8x32xf32>
    %446 = arith.mulf %444, %445 : vector<8x32xf32>
    %447 = vector.extract_strided_slice %424 {offsets = [0, 128], sizes = [8, 128], strides = [1, 1]} : vector<8x256xf32> to vector<8x128xf32>
    %cst_105 = arith.constant dense<0.000000e+00> : vector<8x128xf32>
    %448 = tpu.matmul %446, %1, %cst_105 {dimension_numbers = #tpu.dot_dimension_numbers<[1], [0], [0], [1], [0, 0, 1, 1], [], []>} : vector<8x32xf32>, vector<32x128xf32>, vector<8x128xf32> -> vector<8x128xf32>
    %449 = arith.addf %447, %448 : vector<8x128xf32>
    %450 = arith.addf %449, %4 : vector<8x128xf32>
    %451 = arith.negf %450 : vector<8x128xf32>
    %452 = math.exp %451 : vector<8x128xf32>
    %cst_106 = arith.constant 1.000000e+00 : f32
    %453 = vector.broadcast %cst_106 : f32 to vector<8x128xf32>
    %454 = arith.addf %453, %452 : vector<8x128xf32>
    %455 = arith.divf %453, %454 : vector<8x128xf32>
    %456 = vector.extract_strided_slice %455 {offsets = [0, 32], sizes = [8, 32], strides = [1, 1]} : vector<8x128xf32> to vector<8x32xf32>
    %457 = arith.mulf %456, %419 : vector<8x32xf32>
    %458 = vector.extract_strided_slice %455 {offsets = [0, 0], sizes = [8, 32], strides = [1, 1]} : vector<8x128xf32> to vector<8x32xf32>
    %459 = vector.extract_strided_slice %455 {offsets = [0, 64], sizes = [8, 32], strides = [1, 1]} : vector<8x128xf32> to vector<8x32xf32>
    %cst_107 = arith.constant 2.000000e+00 : f32
    %460 = vector.broadcast %cst_107 : f32 to vector<8x32xf32>
    %461 = arith.mulf %460, %459 : vector<8x32xf32>
    %cst_108 = arith.constant 1.000000e+00 : f32
    %462 = vector.broadcast %cst_108 : f32 to vector<8x32xf32>
    %463 = arith.subf %461, %462 : vector<8x32xf32>
    %464 = arith.mulf %458, %463 : vector<8x32xf32>
    %465 = arith.addf %457, %464 : vector<8x32xf32>
    %466 = vector.extract_strided_slice %455 {offsets = [0, 96], sizes = [8, 32], strides = [1, 1]} : vector<8x128xf32> to vector<8x32xf32>
    %467 = math.tanh %465 : vector<8x32xf32>
    %468 = arith.mulf %466, %467 : vector<8x32xf32>
    %469 = tpu.concatenate %446, %468 in 1 : vector<8x32xf32>, vector<8x32xf32> -> vector<8x64xf32>
    %cst_109 = arith.constant dense<0.000000e+00> : vector<8x256xf32>
    %470 = tpu.matmul %469, %0, %cst_109 {dimension_numbers = #tpu.dot_dimension_numbers<[1], [0], [0], [1], [0, 0, 1, 1], [], []>} : vector<8x64xf32>, vector<64x256xf32>, vector<8x256xf32> -> vector<8x256xf32>
    %c0_110 = arith.constant 0 : index
    %c10 = arith.constant 10 : index
    %c0_111 = arith.constant 0 : index
    %471 = vector.load %arg0[%c0_110, %c10, %c0_111] : memref<8x12x128xf32, #tpu.memory_space<vmem>>, vector<8x1x128xf32>
    %472 = vector.shape_cast %471 : vector<8x1x128xf32> to vector<8x128xf32>
    %473 = vector.extract_strided_slice %470 {offsets = [0, 0], sizes = [8, 128], strides = [1, 1]} : vector<8x256xf32> to vector<8x128xf32>
    %474 = arith.addf %472, %473 : vector<8x128xf32>
    %475 = arith.negf %474 : vector<8x128xf32>
    %476 = math.exp %475 : vector<8x128xf32>
    %cst_112 = arith.constant 1.000000e+00 : f32
    %477 = vector.broadcast %cst_112 : f32 to vector<8x128xf32>
    %478 = arith.addf %477, %476 : vector<8x128xf32>
    %479 = arith.divf %477, %478 : vector<8x128xf32>
    %480 = vector.extract_strided_slice %479 {offsets = [0, 32], sizes = [8, 32], strides = [1, 1]} : vector<8x128xf32> to vector<8x32xf32>
    %481 = arith.mulf %480, %443 : vector<8x32xf32>
    %482 = vector.extract_strided_slice %479 {offsets = [0, 0], sizes = [8, 32], strides = [1, 1]} : vector<8x128xf32> to vector<8x32xf32>
    %483 = vector.extract_strided_slice %479 {offsets = [0, 64], sizes = [8, 32], strides = [1, 1]} : vector<8x128xf32> to vector<8x32xf32>
    %cst_113 = arith.constant 2.000000e+00 : f32
    %484 = vector.broadcast %cst_113 : f32 to vector<8x32xf32>
    %485 = arith.mulf %484, %483 : vector<8x32xf32>
    %cst_114 = arith.constant 1.000000e+00 : f32
    %486 = vector.broadcast %cst_114 : f32 to vector<8x32xf32>
    %487 = arith.subf %485, %486 : vector<8x32xf32>
    %488 = arith.mulf %482, %487 : vector<8x32xf32>
    %489 = arith.addf %481, %488 : vector<8x32xf32>
    %490 = vector.extract_strided_slice %479 {offsets = [0, 96], sizes = [8, 32], strides = [1, 1]} : vector<8x128xf32> to vector<8x32xf32>
    %491 = math.tanh %489 : vector<8x32xf32>
    %492 = arith.mulf %490, %491 : vector<8x32xf32>
    %493 = vector.extract_strided_slice %470 {offsets = [0, 128], sizes = [8, 128], strides = [1, 1]} : vector<8x256xf32> to vector<8x128xf32>
    %cst_115 = arith.constant dense<0.000000e+00> : vector<8x128xf32>
    %494 = tpu.matmul %492, %1, %cst_115 {dimension_numbers = #tpu.dot_dimension_numbers<[1], [0], [0], [1], [0, 0, 1, 1], [], []>} : vector<8x32xf32>, vector<32x128xf32>, vector<8x128xf32> -> vector<8x128xf32>
    %495 = arith.addf %493, %494 : vector<8x128xf32>
    %496 = arith.addf %495, %4 : vector<8x128xf32>
    %497 = arith.negf %496 : vector<8x128xf32>
    %498 = math.exp %497 : vector<8x128xf32>
    %cst_116 = arith.constant 1.000000e+00 : f32
    %499 = vector.broadcast %cst_116 : f32 to vector<8x128xf32>
    %500 = arith.addf %499, %498 : vector<8x128xf32>
    %501 = arith.divf %499, %500 : vector<8x128xf32>
    %502 = vector.extract_strided_slice %501 {offsets = [0, 32], sizes = [8, 32], strides = [1, 1]} : vector<8x128xf32> to vector<8x32xf32>
    %503 = arith.mulf %502, %465 : vector<8x32xf32>
    %504 = vector.extract_strided_slice %501 {offsets = [0, 0], sizes = [8, 32], strides = [1, 1]} : vector<8x128xf32> to vector<8x32xf32>
    %505 = vector.extract_strided_slice %501 {offsets = [0, 64], sizes = [8, 32], strides = [1, 1]} : vector<8x128xf32> to vector<8x32xf32>
    %cst_117 = arith.constant 2.000000e+00 : f32
    %506 = vector.broadcast %cst_117 : f32 to vector<8x32xf32>
    %507 = arith.mulf %506, %505 : vector<8x32xf32>
    %cst_118 = arith.constant 1.000000e+00 : f32
    %508 = vector.broadcast %cst_118 : f32 to vector<8x32xf32>
    %509 = arith.subf %507, %508 : vector<8x32xf32>
    %510 = arith.mulf %504, %509 : vector<8x32xf32>
    %511 = arith.addf %503, %510 : vector<8x32xf32>
    %512 = vector.extract_strided_slice %501 {offsets = [0, 96], sizes = [8, 32], strides = [1, 1]} : vector<8x128xf32> to vector<8x32xf32>
    %513 = math.tanh %511 : vector<8x32xf32>
    %514 = arith.mulf %512, %513 : vector<8x32xf32>
    %515 = tpu.concatenate %492, %514 in 1 : vector<8x32xf32>, vector<8x32xf32> -> vector<8x64xf32>
    %cst_119 = arith.constant dense<0.000000e+00> : vector<8x256xf32>
    %516 = tpu.matmul %515, %0, %cst_119 {dimension_numbers = #tpu.dot_dimension_numbers<[1], [0], [0], [1], [0, 0, 1, 1], [], []>} : vector<8x64xf32>, vector<64x256xf32>, vector<8x256xf32> -> vector<8x256xf32>
    %c0_120 = arith.constant 0 : index
    %c11 = arith.constant 11 : index
    %c0_121 = arith.constant 0 : index
    %517 = vector.load %arg0[%c0_120, %c11, %c0_121] : memref<8x12x128xf32, #tpu.memory_space<vmem>>, vector<8x1x128xf32>
    %518 = vector.shape_cast %517 : vector<8x1x128xf32> to vector<8x128xf32>
    %519 = vector.extract_strided_slice %516 {offsets = [0, 0], sizes = [8, 128], strides = [1, 1]} : vector<8x256xf32> to vector<8x128xf32>
    %520 = arith.addf %518, %519 : vector<8x128xf32>
    %521 = arith.negf %520 : vector<8x128xf32>
    %522 = math.exp %521 : vector<8x128xf32>
    %cst_122 = arith.constant 1.000000e+00 : f32
    %523 = vector.broadcast %cst_122 : f32 to vector<8x128xf32>
    %524 = arith.addf %523, %522 : vector<8x128xf32>
    %525 = arith.divf %523, %524 : vector<8x128xf32>
    %526 = vector.extract_strided_slice %525 {offsets = [0, 32], sizes = [8, 32], strides = [1, 1]} : vector<8x128xf32> to vector<8x32xf32>
    %527 = arith.mulf %526, %489 : vector<8x32xf32>
    %528 = vector.extract_strided_slice %525 {offsets = [0, 0], sizes = [8, 32], strides = [1, 1]} : vector<8x128xf32> to vector<8x32xf32>
    %529 = vector.extract_strided_slice %525 {offsets = [0, 64], sizes = [8, 32], strides = [1, 1]} : vector<8x128xf32> to vector<8x32xf32>
    %cst_123 = arith.constant 2.000000e+00 : f32
    %530 = vector.broadcast %cst_123 : f32 to vector<8x32xf32>
    %531 = arith.mulf %530, %529 : vector<8x32xf32>
    %cst_124 = arith.constant 1.000000e+00 : f32
    %532 = vector.broadcast %cst_124 : f32 to vector<8x32xf32>
    %533 = arith.subf %531, %532 : vector<8x32xf32>
    %534 = arith.mulf %528, %533 : vector<8x32xf32>
    %535 = arith.addf %527, %534 : vector<8x32xf32>
    %536 = vector.extract_strided_slice %525 {offsets = [0, 96], sizes = [8, 32], strides = [1, 1]} : vector<8x128xf32> to vector<8x32xf32>
    %537 = math.tanh %535 : vector<8x32xf32>
    %538 = arith.mulf %536, %537 : vector<8x32xf32>
    %539 = vector.extract_strided_slice %516 {offsets = [0, 128], sizes = [8, 128], strides = [1, 1]} : vector<8x256xf32> to vector<8x128xf32>
    %cst_125 = arith.constant dense<0.000000e+00> : vector<8x128xf32>
    %540 = tpu.matmul %538, %1, %cst_125 {dimension_numbers = #tpu.dot_dimension_numbers<[1], [0], [0], [1], [0, 0, 1, 1], [], []>} : vector<8x32xf32>, vector<32x128xf32>, vector<8x128xf32> -> vector<8x128xf32>
    %541 = arith.addf %539, %540 : vector<8x128xf32>
    %542 = arith.addf %541, %4 : vector<8x128xf32>
    %543 = arith.negf %542 : vector<8x128xf32>
    %544 = math.exp %543 : vector<8x128xf32>
    %cst_126 = arith.constant 1.000000e+00 : f32
    %545 = vector.broadcast %cst_126 : f32 to vector<8x128xf32>
    %546 = arith.addf %545, %544 : vector<8x128xf32>
    %547 = arith.divf %545, %546 : vector<8x128xf32>
    %548 = vector.extract_strided_slice %547 {offsets = [0, 32], sizes = [8, 32], strides = [1, 1]} : vector<8x128xf32> to vector<8x32xf32>
    %549 = arith.mulf %548, %511 : vector<8x32xf32>
    %550 = vector.extract_strided_slice %547 {offsets = [0, 0], sizes = [8, 32], strides = [1, 1]} : vector<8x128xf32> to vector<8x32xf32>
    %551 = vector.extract_strided_slice %547 {offsets = [0, 64], sizes = [8, 32], strides = [1, 1]} : vector<8x128xf32> to vector<8x32xf32>
    %cst_127 = arith.constant 2.000000e+00 : f32
    %552 = vector.broadcast %cst_127 : f32 to vector<8x32xf32>
    %553 = arith.mulf %552, %551 : vector<8x32xf32>
    %cst_128 = arith.constant 1.000000e+00 : f32
    %554 = vector.broadcast %cst_128 : f32 to vector<8x32xf32>
    %555 = arith.subf %553, %554 : vector<8x32xf32>
    %556 = arith.mulf %550, %555 : vector<8x32xf32>
    %557 = arith.addf %549, %556 : vector<8x32xf32>
    %558 = vector.extract_strided_slice %547 {offsets = [0, 96], sizes = [8, 32], strides = [1, 1]} : vector<8x128xf32> to vector<8x32xf32>
    %559 = math.tanh %557 : vector<8x32xf32>
    %560 = arith.mulf %558, %559 : vector<8x32xf32>
    %561 = tpu.concatenate %54, %100, %146, %192, %238, %284, %330, %376, %422, %468, %514, %560 in 1 : vector<8x32xf32>, vector<8x32xf32>, vector<8x32xf32>, vector<8x32xf32>, vector<8x32xf32>, vector<8x32xf32>, vector<8x32xf32>, vector<8x32xf32>, vector<8x32xf32>, vector<8x32xf32>, vector<8x32xf32>, vector<8x32xf32> -> vector<8x384xf32>
    %c0_129 = arith.constant 0 : index
    %c0_130 = arith.constant 0 : index
    %562 = vector.load %arg4[%c0_129, %c0_130] : memref<8x384xf32, #tpu.memory_space<vmem>>, vector<8x384xf32>
    tpu.vector_store %arg4[%c0_129, %c0_130], %561 {strides = array<i32>} : memref<8x384xf32, #tpu.memory_space<vmem>>, vector<8x384xf32>,
    return
  }
}

</mosaic_0001>

<llo_original>
// kernel: blackbox_lstm_forward.1
$region0: #{blackbox_lstm_forward.1}
  #allocation0 [shape = 'u32[]', space=smem, size = 0x4, offset = 0x4, fixed_abs, tag = 'smem constant byte address 0x4 - core index']
  #allocation1 [shape = 'u32[144,128]{1,0:T(1,128)}', space=vmem, size = 0x12000, scoped, tag = 'internal scratch']
  %s0 = inlined_call_operand.vmem [shape: f32[8,12,128], index: 0, kind: input, shape index: {}]
  %s1 = inlined_call_operand.vmem [shape: f32[64,256], index: 1, kind: input, shape index: {}]
  %s2 = inlined_call_operand.vmem [shape: f32[32,128], index: 2, kind: input, shape index: {}]
  %s3 = inlined_call_operand.vmem [shape: f32[1,128], index: 3, kind: input, shape index: {}]
  %s4 = inlined_call_operand.vmem [shape: f32[8,384], index: 4, kind: output, shape index: {}]
  %s5 = sld [smem:[#allocation0]]
  $region26: #{blackbox_lstm_forward.1} parent=0
    _
  %s7 = ssub.s32 1, %s5
  %s8 = scalar_select 0, %s7, %s5
  // Predicated region
  $region2: #{blackbox_lstm_forward.1} parent=0 // pred_check
    _
  $region3: #{blackbox_lstm_forward.1} parent=0 // pred_check_branch
    %10 = sbr.rel (0) target = $region5
  $region4: #{blackbox_lstm_forward.1} parent=0 // pred_region
    _
  $region5: #{blackbox_lstm_forward.1} parent=0 // pred_fallthru
    _
  // Predicated region
  $region6: #{blackbox_lstm_forward.1} parent=0 // pred_check
    _
  $region7: #{blackbox_lstm_forward.1} parent=0 // pred_check_branch
    %12 = sbr.rel (0) target = $region9
  $region8: #{blackbox_lstm_forward.1} parent=0 // pred_region
    _
  $region9: #{blackbox_lstm_forward.1} parent=0 // pred_fallthru
    _
  // Predicated region
  $region10: #{blackbox_lstm_forward.1} parent=0 // pred_check
    _
  $region11: #{blackbox_lstm_forward.1} parent=0 // pred_check_branch
    %14 = sbr.rel (0) target = $region13
  $region12: #{blackbox_lstm_forward.1} parent=0 // pred_region
    _
  $region13: #{blackbox_lstm_forward.1} parent=0 // pred_fallthru
    _
  // Predicated region
  $region14: #{blackbox_lstm_forward.1} parent=0 // pred_check
    _
  $region15: #{blackbox_lstm_forward.1} parent=0 // pred_check_branch
    %16 = sbr.rel (0) target = $region17
  $region16: #{blackbox_lstm_forward.1} parent=0 // pred_region
    _
  $region17: #{blackbox_lstm_forward.1} parent=0 // pred_fallthru
    _
  %v17 = vld [vmem:[%s1] sm:$0xff]
  %v18 = vld [vmem:[%s1 + $0x8] sm:$0xff]
  %v19 = vld [vmem:[%s1 + $0x10] sm:$0xff]
  %v20 = vld [vmem:[%s1 + $0x18] sm:$0xff]
  %v21 = vld [vmem:[%s1 + $0x20] sm:$0xff]
  %v22 = vld [vmem:[%s1 + $0x28] sm:$0xff]
  %v23 = vld [vmem:[%s1 + $0x30] sm:$0xff]
  %v24 = vld [vmem:[%s1 + $0x38] sm:$0xff]
  %v25 = vld [vmem:[%s1 + $0x40] sm:$0xff]
  %v26 = vld [vmem:[%s1 + $0x48] sm:$0xff]
  %v27 = vld [vmem:[%s1 + $0x50] sm:$0xff]
  %v28 = vld [vmem:[%s1 + $0x58] sm:$0xff]
  %v29 = vld [vmem:[%s1 + $0x60] sm:$0xff]
  %v30 = vld [vmem:[%s1 + $0x68] sm:$0xff]
  %v31 = vld [vmem:[%s1 + $0x70] sm:$0xff]
  %v32 = vld [vmem:[%s1 + $0x78] sm:$0xff]
  %v33 = vld [vmem:[%s2] sm:$0xff]
  %v34 = vld [vmem:[%s2 + $0x8] sm:$0xff]
  %v35 = vld [vmem:[%s2 + $0x10] sm:$0xff]
  %v36 = vld [vmem:[%s2 + $0x18] sm:$0xff]
  %v37 = vld [vmem:[%s3] sm:$0x1]
  %v39 = vlaneseq
  %v40 = vshrl.u32 %v39, 7
  %v41 = vsub.s32 0, %v40
  %v42 = vrot.slane %v37, %v41
  %vm44 = vcmask 523264
  %v46 = vsel %vm44, 0.0, 0
  %48 = vmatprep.subr.mxu0 %v18
  %49 = vmatpush1.msra.mxu0 %v17
  %50 = vmatprep.subr.mxu0 %v20
  %51 = vmatpush1.msra.mxu0 %v19
  %52 = vmatprep.subr.mxu0 %v22
  %53 = vmatpush1.msra.mxu0 %v21
  %54 = vmatprep.subr.mxu0 %v24
  %55 = vmatpush1.msra.mxu0 %v23
  %56 = vmatprep.subr.mxu0 %v26
  %57 = vmatpush1.msra.mxu0 %v25
  %58 = vmatprep.subr.mxu0 %v28
  %59 = vmatpush1.msra.mxu0 %v27
  %60 = vmatprep.subr.mxu0 %v30
  %61 = vmatpush1.msra.mxu0 %v29
  %62 = vmatprep.subr.mxu0 %v32
  %63 = vmatpush1.msra.mxu0 %v31
  %64 = vmatprep.subr.mxu0 0.0
  %65 = vmatpush1.msra.mxu0 0.0
  %66 = vmatprep.subr.mxu0 0.0
  %67 = vmatpush1.msra.mxu0 0.0
  %68 = vmatprep.subr.mxu0 0.0
  %69 = vmatpush1.msra.mxu0 0.0
  %70 = vmatprep.subr.mxu0 0.0
  %71 = vmatpush1.msra.mxu0 0.0
  %72 = vmatprep.subr.mxu0 0.0
  %73 = vmatpush1.msra.mxu0 0.0
  %74 = vmatprep.subr.mxu0 0.0
  %75 = vmatpush1.msra.mxu0 0.0
  %76 = vmatprep.subr.mxu0 0.0
  %77 = vmatpush1.msra.mxu0 0.0
  %78 = vmatprep.subr.mxu0 0.0
  %79 = vmatpush1.msra.mxu0 0.0
  %80 = vmatprep.subr.mxu0 0.0
  %81 = vmatpush1.msra.mxu0 0.0
  %82 = vmatprep.subr.mxu0 0.0
  %83 = vmatpush1.msra.mxu0 0.0
  %84 = vmatprep.subr.mxu0 0.0
  %85 = vmatpush1.msra.mxu0 0.0
  %86 = vmatprep.subr.mxu0 0.0
  %87 = vmatpush1.msra.mxu0 0.0
  %88 = vmatprep.subr.mxu0 0.0
  %89 = vmatpush1.msra.mxu0 0.0
  %90 = vmatprep.subr.mxu0 0.0
  %91 = vmatpush1.msra.mxu0 0.0
  %92 = vmatprep.subr.mxu0 0.0
  %93 = vmatpush1.msra.mxu0 0.0
  %94 = vmatprep.subr.mxu0 0.0
  %95 = vmatpush1.msra.mxu0 0.0
  %96 = vmatprep.subr.mxu0 0.0
  %97 = vmatpush1.msra.mxu0 0.0
  %98 = vmatprep.subr.mxu0 0.0
  %99 = vmatpush1.msra.mxu0 0.0
  %100 = vmatprep.subr.mxu0 0.0
  %101 = vmatpush1.msra.mxu0 0.0
  %102 = vmatprep.subr.mxu0 0.0
  %103 = vmatpush1.msra.mxu0 0.0
  %104 = vmatprep.subr.mxu0 0.0
  %105 = vmatpush1.msra.mxu0 0.0
  %106 = vmatprep.subr.mxu0 0.0
  %107 = vmatpush1.msra.mxu0 0.0
  %108 = vmatprep.subr.mxu0 0.0
  %109 = vmatpush1.msra.mxu0 0.0
  %110 = vmatprep.subr.mxu0 0.0
  %111 = vmatpush1.msra.mxu0 0.0
  %112 = vmatprep.mubr.f32.mxu0 0.0
  %113 = vmatmul.mubr.f32.gmra.mrb[0].mxu0 %v46
  %v114 = vpop.f32.mrb[0].mxu0
  %v115 = vadd.f32 0.0, %v114
  %v116 = vpop.f32.mrb[0].mxu0
  %v117 = vadd.f32 0.0, %v116
  %118 = vdwg.mxu0
  %v119 = vld [vmem:[%s0] sm:$0x1]
  %v120 = vld [vmem:[%s0 + $0x10] sm:$0x1]
  %v121 = vld [vmem:[%s0 + $0x20] sm:$0x1]
  %v122 = vld [vmem:[%s0 + $0x30] sm:$0x1]
  %v123 = vld [vmem:[%s0 + $0x40] sm:$0x1]
  %v124 = vld [vmem:[%s0 + $0x50] sm:$0x1]
  %v125 = vld [vmem:[%s0 + $0x60] sm:$0x1]
  %v126 = vld [vmem:[%s0 + $0x70] sm:$0x1]
  %v128 = vrot.slane %v115, 1
  %v129 = vrot.slane %v115, 2
  %v130 = vrot.slane %v115, 3
  %v131 = vrot.slane %v115, 4
  %v132 = vrot.slane %v115, 5
  %v133 = vrot.slane %v115, 6
  %v134 = vrot.slane %v115, 7
  %v143 = vadd.f32 %v119, %v115
  %v144 = vadd.f32 %v120, %v128
  %v145 = vadd.f32 %v121, %v129
  %v146 = vadd.f32 %v122, %v130
  %v147 = vadd.f32 %v123, %v131
  %v148 = vadd.f32 %v124, %v132
  %v149 = vadd.f32 %v125, %v133
  %v150 = vadd.f32 %v126, %v134
  %v151 = vxor.u32 %v143, 2147483648
  %v152 = vxor.u32 %v144, 2147483648
  %v153 = vxor.u32 %v145, 2147483648
  %v154 = vxor.u32 %v146, 2147483648
  %v155 = vxor.u32 %v147, 2147483648
  %v156 = vxor.u32 %v148, 2147483648
  %v157 = vxor.u32 %v149, 2147483648
  %v158 = vxor.u32 %v150, 2147483648
  %v159 = vmul.f32 %v151, 1.442695
  %v160 = vpow.pop %v159
  %v161 = vmul.f32 %v152, 1.442695
  %v162 = vpow.pop %v161
  %v163 = vmul.f32 %v153, 1.442695
  %v164 = vpow.pop %v163
  %v165 = vmul.f32 %v154, 1.442695
  %v166 = vpow.pop %v165
  %v167 = vmul.f32 %v155, 1.442695
  %v168 = vpow.pop %v167
  %v169 = vmul.f32 %v156, 1.442695
  %v170 = vpow.pop %v169
  %v171 = vmul.f32 %v157, 1.442695
  %v172 = vpow.pop %v171
  %v173 = vmul.f32 %v158, 1.442695
  %v174 = vpow.pop %v173
  %v175 = vadd.f32 %v160, 1.0
  %v176 = vadd.f32 %v162, 1.0
  %v177 = vadd.f32 %v164, 1.0
  %v178 = vadd.f32 %v166, 1.0
  %v179 = vadd.f32 %v168, 1.0
  %v180 = vadd.f32 %v170, 1.0
  %v181 = vadd.f32 %v172, 1.0
  %v182 = vadd.f32 %v174, 1.0
  %v183 = vrcp.pop %v175
  %v184 = vmul.f32 1.0, %v183
  %v185 = vrcp.pop %v176
  %v186 = vmul.f32 1.0, %v185
  %v187 = vrcp.pop %v177
  %v188 = vmul.f32 1.0, %v187
  %v189 = vrcp.pop %v178
  %v190 = vmul.f32 1.0, %v189
  %v191 = vrcp.pop %v179
  %v192 = vmul.f32 1.0, %v191
  %v193 = vrcp.pop %v180
  %v194 = vmul.f32 1.0, %v193
  %v195 = vrcp.pop %v181
  %v196 = vmul.f32 1.0, %v195
  %v197 = vrcp.pop %v182
  %v198 = vmul.f32 1.0, %v197
  %v199 = vmul.f32 %v184, 0.0
  %v200 = vmul.f32 %v186, 0.0
  %v201 = vmul.f32 %v188, 0.0
  %v202 = vmul.f32 %v190, 0.0
  %v203 = vmul.f32 %v192, 0.0
  %v204 = vmul.f32 %v194, 0.0
  %v205 = vmul.f32 %v196, 0.0
  %v206 = vmul.f32 %v198, 0.0
  %v207 = vmul.f32 %v184, 2.0
  %v208 = vmul.f32 %v186, 2.0
  %v209 = vmul.f32 %v188, 2.0
  %v210 = vmul.f32 %v190, 2.0
  %v211 = vmul.f32 %v192, 2.0
  %v212 = vmul.f32 %v194, 2.0
  %v213 = vmul.f32 %v196, 2.0
  %v214 = vmul.f32 %v198, 2.0
  %v215 = vsub.f32 %v207, 1.0
  %v216 = vsub.f32 %v208, 1.0
  %v217 = vsub.f32 %v209, 1.0
  %v218 = vsub.f32 %v210, 1.0
  %v219 = vsub.f32 %v211, 1.0
  %v220 = vsub.f32 %v212, 1.0
  %v221 = vsub.f32 %v213, 1.0
  %v222 = vsub.f32 %v214, 1.0
  %231 = vrot.lane.b32.xlu0 %v215, 64
  %v232 = vpop.permute.xlu0 %231
  %233 = vrot.lane.b32.xlu0 %v216, 64
  %v234 = vpop.permute.xlu0 %233
  %235 = vrot.lane.b32.xlu0 %v217, 64
  %v236 = vpop.permute.xlu0 %235
  %237 = vrot.lane.b32.xlu0 %v218, 64
  %v238 = vpop.permute.xlu0 %237
  %239 = vrot.lane.b32.xlu0 %v219, 64
  %v240 = vpop.permute.xlu0 %239
  %241 = vrot.lane.b32.xlu0 %v220, 64
  %v242 = vpop.permute.xlu0 %241
  %243 = vrot.lane.b32.xlu0 %v221, 64
  %v244 = vpop.permute.xlu0 %243
  %245 = vrot.lane.b32.xlu0 %v222, 64
  %v246 = vpop.permute.xlu0 %245
  %v255 = vmul.f32 %v184, %v232
  %v256 = vmul.f32 %v186, %v234
  %v257 = vmul.f32 %v188, %v236
  %v258 = vmul.f32 %v190, %v238
  %v259 = vmul.f32 %v192, %v240
  %v260 = vmul.f32 %v194, %v242
  %v261 = vmul.f32 %v196, %v244
  %v262 = vmul.f32 %v198, %v246
  %271 = vrot.lane.b32.xlu0 %v255, 32
  %v272 = vpop.permute.xlu0 %271
  %273 = vrot.lane.b32.xlu0 %v256, 32
  %v274 = vpop.permute.xlu0 %273
  %275 = vrot.lane.b32.xlu0 %v257, 32
  %v276 = vpop.permute.xlu0 %275
  %277 = vrot.lane.b32.xlu0 %v258, 32
  %v278 = vpop.permute.xlu0 %277
  %279 = vrot.lane.b32.xlu0 %v259, 32
  %v280 = vpop.permute.xlu0 %279
  %281 = vrot.lane.b32.xlu0 %v260, 32
  %v282 = vpop.permute.xlu0 %281
  %283 = vrot.lane.b32.xlu0 %v261, 32
  %v284 = vpop.permute.xlu0 %283
  %285 = vrot.lane.b32.xlu0 %v262, 32
  %v286 = vpop.permute.xlu0 %285
  %v295 = vadd.f32 %v199, %v272
  %v296 = vadd.f32 %v200, %v274
  %v297 = vadd.f32 %v201, %v276
  %v298 = vadd.f32 %v202, %v278
  %v299 = vadd.f32 %v203, %v280
  %v300 = vadd.f32 %v204, %v282
  %v301 = vadd.f32 %v205, %v284
  %v302 = vadd.f32 %v206, %v286
  %v303 = vtanh.pop %v295
  %v304 = vtanh.pop %v296
  %v305 = vtanh.pop %v297
  %v306 = vtanh.pop %v298
  %v307 = vtanh.pop %v299
  %v308 = vtanh.pop %v300
  %v309 = vtanh.pop %v301
  %v310 = vtanh.pop %v302
  %319 = vrot.lane.b32.xlu0 %v303, 64
  %v320 = vpop.permute.xlu0 %319
  %321 = vrot.lane.b32.xlu0 %v304, 64
  %v322 = vpop.permute.xlu0 %321
  %323 = vrot.lane.b32.xlu0 %v305, 64
  %v324 = vpop.permute.xlu0 %323
  %325 = vrot.lane.b32.xlu0 %v306, 64
  %v326 = vpop.permute.xlu0 %325
  %327 = vrot.lane.b32.xlu0 %v307, 64
  %v328 = vpop.permute.xlu0 %327
  %329 = vrot.lane.b32.xlu0 %v308, 64
  %v330 = vpop.permute.xlu0 %329
  %331 = vrot.lane.b32.xlu0 %v309, 64
  %v332 = vpop.permute.xlu0 %331
  %333 = vrot.lane.b32.xlu0 %v310, 64
  %v334 = vpop.permute.xlu0 %333
  %v343 = vmul.f32 %v184, %v320
  %v344 = vmul.f32 %v186, %v322
  %v345 = vmul.f32 %v188, %v324
  %v346 = vmul.f32 %v190, %v326
  %v347 = vmul.f32 %v192, %v328
  %v348 = vmul.f32 %v194, %v330
  %v349 = vmul.f32 %v196, %v332
  %v350 = vmul.f32 %v198, %v334
  %v359 = vrot.slane %v344, 7
  %vm360 = vcmask 1041409
  %v361 = vsel %vm360, %v359, %v343
  %v362 = vrot.slane %v345, 6
  %vm363 = vcmask 1042434
  %v364 = vsel %vm363, %v362, %v361
  %v365 = vrot.slane %v346, 5
  %vm366 = vcmask 1043459
  %v367 = vsel %vm366, %v365, %v364
  %v368 = vrot.slane %v347, 4
  %vm369 = vcmask 1044484
  %v370 = vsel %vm369, %v368, %v367
  %v371 = vrot.slane %v348, 3
  %vm372 = vcmask 1045509
  %v373 = vsel %vm372, %v371, %v370
  %v374 = vrot.slane %v349, 2
  %vm375 = vcmask 1046534
  %v376 = vsel %vm375, %v374, %v373
  %v377 = vrot.slane %v350, 1
  %vm378 = vcmask 1047559
  %v379 = vsel %vm378, %v377, %v376
  %380 = vrot.lane.b32.xlu0 %v379, 32
  %v381 = vpop.permute.xlu0 %380
  %vm382 = vcmask 261120
  %v383 = vsel %vm382, %v381, 0
  %385 = vmatprep.subr.mxu0 0.0
  %386 = vmatpush1.msra.mxu0 %v33
  %387 = vmatprep.subr.mxu0 0.0
  %388 = vmatpush1.msra.mxu0 %v34
  %389 = vmatprep.subr.mxu0 0.0
  %390 = vmatpush1.msra.mxu0 %v35
  %391 = vmatprep.subr.mxu0 0.0
  %392 = vmatpush1.msra.mxu0 %v36
  %393 = vmatprep.subr.mxu0 0.0
  %394 = vmatpush1.msra.mxu0 0.0
  %395 = vmatprep.subr.mxu0 0.0
  %396 = vmatpush1.msra.mxu0 0.0
  %397 = vmatprep.subr.mxu0 0.0
  %398 = vmatpush1.msra.mxu0 0.0
  %399 = vmatprep.subr.mxu0 0.0
  %400 = vmatpush1.msra.mxu0 0.0
  %401 = vmatprep.subr.mxu0 0.0
  %402 = vmatpush1.msra.mxu0 0.0
  %403 = vmatprep.subr.mxu0 0.0
  %404 = vmatpush1.msra.mxu0 0.0
  %405 = vmatprep.subr.mxu0 0.0
  %406 = vmatpush1.msra.mxu0 0.0
  %407 = vmatprep.subr.mxu0 0.0
  %408 = vmatpush1.msra.mxu0 0.0
  %409 = vmatprep.subr.mxu0 0.0
  %410 = vmatpush1.msra.mxu0 0.0
  %411 = vmatprep.subr.mxu0 0.0
  %412 = vmatpush1.msra.mxu0 0.0
  %413 = vmatprep.subr.mxu0 0.0
  %414 = vmatpush1.msra.mxu0 0.0
  %415 = vmatprep.subr.mxu0 0.0
  %416 = vmatpush1.msra.mxu0 0.0
  %417 = vmatprep.subr.mxu0 0.0
  %418 = vmatpush1.msra.mxu0 0.0
  %419 = vmatprep.subr.mxu0 0.0
  %420 = vmatpush1.msra.mxu0 0.0
  %421 = vmatprep.subr.mxu0 0.0
  %422 = vmatpush1.msra.mxu0 0.0
  %423 = vmatprep.subr.mxu0 0.0
  %424 = vmatpush1.msra.mxu0 0.0
  %425 = vmatprep.subr.mxu0 0.0
  %426 = vmatpush1.msra.mxu0 0.0
  %427 = vmatprep.subr.mxu0 0.0
  %428 = vmatpush1.msra.mxu0 0.0
  %429 = vmatprep.subr.mxu0 0.0
  %430 = vmatpush1.msra.mxu0 0.0
  %431 = vmatprep.subr.mxu0 0.0
  %432 = vmatpush1.msra.mxu0 0.0
  %433 = vmatprep.subr.mxu0 0.0
  %434 = vmatpush1.msra.mxu0 0.0
  %435 = vmatprep.subr.mxu0 0.0
  %436 = vmatpush1.msra.mxu0 0.0
  %437 = vmatprep.subr.mxu0 0.0
  %438 = vmatpush1.msra.mxu0 0.0
  %439 = vmatprep.subr.mxu0 0.0
  %440 = vmatpush1.msra.mxu0 0.0
  %441 = vmatprep.subr.mxu0 0.0
  %442 = vmatpush1.msra.mxu0 0.0
  %443 = vmatprep.subr.mxu0 0.0
  %444 = vmatpush1.msra.mxu0 0.0
  %445 = vmatprep.subr.mxu0 0.0
  %446 = vmatpush1.msra.mxu0 0.0
  %447 = vmatprep.subr.mxu0 0.0
  %448 = vmatpush1.msra.mxu0 0.0
  %449 = vmatprep.mubr.f32.mxu0 0.0
  %450 = vmatmul.mubr.f32.gmra.mrb[0].mxu0 %v383
  %v451 = vpop.f32.mrb[0].mxu0
  %v452 = vadd.f32 0.0, %v451
  %v453 = vpop.f32.mrb[0].mxu0
  %454 = vdwg.mxu0
  %v455 = vadd.f32 %v117, %v452
  %v456 = vadd.f32 %v455, %v42
  %v457 = vxor.u32 %v456, 2147483648
  %v458 = vmul.f32 %v457, 1.442695
  %v459 = vpow.pop %v458
  %v460 = vadd.f32 %v459, 1.0
  %v461 = vrcp.pop %v460
  %v462 = vmul.f32 1.0, %v461
  %v463 = vmul.f32 %v462, 0.0
  %v464 = vmul.f32 %v462, 2.0
  %v465 = vsub.f32 %v464, 1.0
  %467 = vrot.lane.b32.xlu0 %v465, 64
  %v468 = vpop.permute.xlu0 %467
  %v470 = vmul.f32 %v462, %v468
  %472 = vrot.lane.b32.xlu0 %v470, 32
  %v473 = vpop.permute.xlu0 %472
  %v475 = vadd.f32 %v463, %v473
  %v476 = vtanh.pop %v475
  %478 = vrot.lane.b32.xlu0 %v476, 64
  %v479 = vpop.permute.xlu0 %478
  %v481 = vmul.f32 %v462, %v479
  %484 = vrot.lane.b32.xlu0 %v481, 64
  %v485 = vpop.permute.xlu0 %484
  %v487 = vsel %vm382, %v381, %v485
  %v489 = vsel %vm44, %v487, 0
  %491 = vmatprep.subr.mxu0 %v18
  %492 = vmatpush1.msra.mxu0 %v17
  %493 = vmatprep.subr.mxu0 %v20
  %494 = vmatpush1.msra.mxu0 %v19
  %495 = vmatprep.subr.mxu0 %v22
  %496 = vmatpush1.msra.mxu0 %v21
  %497 = vmatprep.subr.mxu0 %v24
  %498 = vmatpush1.msra.mxu0 %v23
  %499 = vmatprep.subr.mxu0 %v26
  %500 = vmatpush1.msra.mxu0 %v25
  %501 = vmatprep.subr.mxu0 %v28
  %502 = vmatpush1.msra.mxu0 %v27
  %503 = vmatprep.subr.mxu0 %v30
  %504 = vmatpush1.msra.mxu0 %v29
  %505 = vmatprep.subr.mxu0 %v32
  %506 = vmatpush1.msra.mxu0 %v31
  %507 = vmatprep.subr.mxu0 0.0
  %508 = vmatpush1.msra.mxu0 0.0
  %509 = vmatprep.subr.mxu0 0.0
  %510 = vmatpush1.msra.mxu0 0.0
  %511 = vmatprep.subr.mxu0 0.0
  %512 = vmatpush1.msra.mxu0 0.0
  %513 = vmatprep.subr.mxu0 0.0
  %514 = vmatpush1.msra.mxu0 0.0
  %515 = vmatprep.subr.mxu0 0.0
  %516 = vmatpush1.msra.mxu0 0.0
  %517 = vmatprep.subr.mxu0 0.0
  %518 = vmatpush1.msra.mxu0 0.0
  %519 = vmatprep.subr.mxu0 0.0
  %520 = vmatpush1.msra.mxu0 0.0
  %521 = vmatprep.subr.mxu0 0.0
  %522 = vmatpush1.msra.mxu0 0.0
  %523 = vmatprep.subr.mxu0 0.0
  %524 = vmatpush1.msra.mxu0 0.0
  %525 = vmatprep.subr.mxu0 0.0
  %526 = vmatpush1.msra.mxu0 0.0
  %527 = vmatprep.subr.mxu0 0.0
  %528 = vmatpush1.msra.mxu0 0.0
  %529 = vmatprep.subr.mxu0 0.0
  %530 = vmatpush1.msra.mxu0 0.0
  %531 = vmatprep.subr.mxu0 0.0
  %532 = vmatpush1.msra.mxu0 0.0
  %533 = vmatprep.subr.mxu0 0.0
  %534 = vmatpush1.msra.mxu0 0.0
  %535 = vmatprep.subr.mxu0 0.0
  %536 = vmatpush1.msra.mxu0 0.0
  %537 = vmatprep.subr.mxu0 0.0
  %538 = vmatpush1.msra.mxu0 0.0
  %539 = vmatprep.subr.mxu0 0.0
  %540 = vmatpush1.msra.mxu0 0.0
  %541 = vmatprep.subr.mxu0 0.0
  %542 = vmatpush1.msra.mxu0 0.0
  %543 = vmatprep.subr.mxu0 0.0
  %544 = vmatpush1.msra.mxu0 0.0
  %545 = vmatprep.subr.mxu0 0.0
  %546 = vmatpush1.msra.mxu0 0.0
  %547 = vmatprep.subr.mxu0 0.0
  %548 = vmatpush1.msra.mxu0 0.0
  %549 = vmatprep.subr.mxu0 0.0
  %550 = vmatpush1.msra.mxu0 0.0
  %551 = vmatprep.subr.mxu0 0.0
  %552 = vmatpush1.msra.mxu0 0.0
  %553 = vmatprep.subr.mxu0 0.0
  %554 = vmatpush1.msra.mxu0 0.0
  %555 = vmatprep.mubr.f32.mxu0 0.0
  %556 = vmatmul.mubr.f32.gmra.mrb[0].mxu0 %v489
  %v557 = vpop.f32.mrb[0].mxu0
  %v558 = vadd.f32 0.0, %v557
  %v559 = vpop.f32.mrb[0].mxu0
  %v560 = vadd.f32 0.0, %v559
  %561 = vdwg.mxu0
  %v562 = vld [vmem:[%s0 + $0x1] sm:$0x1]
  %v563 = vld [vmem:[%s0 + $0x11] sm:$0x1]
  %v564 = vld [vmem:[%s0 + $0x21] sm:$0x1]
  %v565 = vld [vmem:[%s0 + $0x31] sm:$0x1]
  %v566 = vld [vmem:[%s0 + $0x41] sm:$0x1]
  %v567 = vld [vmem:[%s0 + $0x51] sm:$0x1]
  %v568 = vld [vmem:[%s0 + $0x61] sm:$0x1]
  %v569 = vld [vmem:[%s0 + $0x71] sm:$0x1]
  %v571 = vrot.slane %v558, 1
  %v572 = vrot.slane %v558, 2
  %v573 = vrot.slane %v558, 3
  %v574 = vrot.slane %v558, 4
  %v575 = vrot.slane %v558, 5
  %v576 = vrot.slane %v558, 6
  %v577 = vrot.slane %v558, 7
  %v586 = vadd.f32 %v562, %v558
  %v587 = vadd.f32 %v563, %v571
  %v588 = vadd.f32 %v564, %v572
  %v589 = vadd.f32 %v565, %v573
  %v590 = vadd.f32 %v566, %v574
  %v591 = vadd.f32 %v567, %v575
  %v592 = vadd.f32 %v568, %v576
  %v593 = vadd.f32 %v569, %v577
  %v594 = vxor.u32 %v586, 2147483648
  %v595 = vxor.u32 %v587, 2147483648
  %v596 = vxor.u32 %v588, 2147483648
  %v597 = vxor.u32 %v589, 2147483648
  %v598 = vxor.u32 %v590, 2147483648
  %v599 = vxor.u32 %v591, 2147483648
  %v600 = vxor.u32 %v592, 2147483648
  %v601 = vxor.u32 %v593, 2147483648
  %v602 = vmul.f32 %v594, 1.442695
  %v603 = vpow.pop %v602
  %v604 = vmul.f32 %v595, 1.442695
  %v605 = vpow.pop %v604
  %v606 = vmul.f32 %v596, 1.442695
  %v607 = vpow.pop %v606
  %v608 = vmul.f32 %v597, 1.442695
  %v609 = vpow.pop %v608
  %v610 = vmul.f32 %v598, 1.442695
  %v611 = vpow.pop %v610
  %v612 = vmul.f32 %v599, 1.442695
  %v613 = vpow.pop %v612
  %v614 = vmul.f32 %v600, 1.442695
  %v615 = vpow.pop %v614
  %v616 = vmul.f32 %v601, 1.442695
  %v617 = vpow.pop %v616
  %v618 = vadd.f32 %v603, 1.0
  %v619 = vadd.f32 %v605, 1.0
  %v620 = vadd.f32 %v607, 1.0
  %v621 = vadd.f32 %v609, 1.0
  %v622 = vadd.f32 %v611, 1.0
  %v623 = vadd.f32 %v613, 1.0
  %v624 = vadd.f32 %v615, 1.0
  %v625 = vadd.f32 %v617, 1.0
  %v626 = vrcp.pop %v618
  %v627 = vmul.f32 1.0, %v626
  %v628 = vrcp.pop %v619
  %v629 = vmul.f32 1.0, %v628
  %v630 = vrcp.pop %v620
  %v631 = vmul.f32 1.0, %v630
  %v632 = vrcp.pop %v621
  %v633 = vmul.f32 1.0, %v632
  %v634 = vrcp.pop %v622
  %v635 = vmul.f32 1.0, %v634
  %v636 = vrcp.pop %v623
  %v637 = vmul.f32 1.0, %v636
  %v638 = vrcp.pop %v624
  %v639 = vmul.f32 1.0, %v638
  %v640 = vrcp.pop %v625
  %v641 = vmul.f32 1.0, %v640
  %v642 = vmul.f32 %v627, %v295
  %v643 = vmul.f32 %v629, %v296
  %v644 = vmul.f32 %v631, %v297
  %v645 = vmul.f32 %v633, %v298
  %v646 = vmul.f32 %v635, %v299
  %v647 = vmul.f32 %v637, %v300
  %v648 = vmul.f32 %v639, %v301
  %v649 = vmul.f32 %v641, %v302
  %v650 = vmul.f32 %v627, 2.0
  %v651 = vmul.f32 %v629, 2.0
  %v652 = vmul.f32 %v631, 2.0
  %v653 = vmul.f32 %v633, 2.0
  %v654 = vmul.f32 %v635, 2.0
  %v655 = vmul.f32 %v637, 2.0
  %v656 = vmul.f32 %v639, 2.0
  %v657 = vmul.f32 %v641, 2.0
  %v658 = vsub.f32 %v650, 1.0
  %v659 = vsub.f32 %v651, 1.0
  %v660 = vsub.f32 %v652, 1.0
  %v661 = vsub.f32 %v653, 1.0
  %v662 = vsub.f32 %v654, 1.0
  %v663 = vsub.f32 %v655, 1.0
  %v664 = vsub.f32 %v656, 1.0
  %v665 = vsub.f32 %v657, 1.0
  %674 = vrot.lane.b32.xlu0 %v658, 64
  %v675 = vpop.permute.xlu0 %674
  %676 = vrot.lane.b32.xlu0 %v659, 64
  %v677 = vpop.permute.xlu0 %676
  %678 = vrot.lane.b32.xlu0 %v660, 64
  %v679 = vpop.permute.xlu0 %678
  %680 = vrot.lane.b32.xlu0 %v661, 64
  %v681 = vpop.permute.xlu0 %680
  %682 = vrot.lane.b32.xlu0 %v662, 64
  %v683 = vpop.permute.xlu0 %682
  %684 = vrot.lane.b32.xlu0 %v663, 64
  %v685 = vpop.permute.xlu0 %684
  %686 = vrot.lane.b32.xlu0 %v664, 64
  %v687 = vpop.permute.xlu0 %686
  %688 = vrot.lane.b32.xlu0 %v665, 64
  %v689 = vpop.permute.xlu0 %688
  %v698 = vmul.f32 %v627, %v675
  %v699 = vmul.f32 %v629, %v677
  %v700 = vmul.f32 %v631, %v679
  %v701 = vmul.f32 %v633, %v681
  %v702 = vmul.f32 %v635, %v683
  %v703 = vmul.f32 %v637, %v685
  %v704 = vmul.f32 %v639, %v687
  %v705 = vmul.f32 %v641, %v689
  %714 = vrot.lane.b32.xlu0 %v698, 32
  %v715 = vpop.permute.xlu0 %714
  %716 = vrot.lane.b32.xlu0 %v699, 32
  %v717 = vpop.permute.xlu0 %716
  %718 = vrot.lane.b32.xlu0 %v700, 32
  %v719 = vpop.permute.xlu0 %718
  %720 = vrot.lane.b32.xlu0 %v701, 32
  %v721 = vpop.permute.xlu0 %720
  %722 = vrot.lane.b32.xlu0 %v702, 32
  %v723 = vpop.permute.xlu0 %722
  %724 = vrot.lane.b32.xlu0 %v703, 32
  %v725 = vpop.permute.xlu0 %724
  %726 = vrot.lane.b32.xlu0 %v704, 32
  %v727 = vpop.permute.xlu0 %726
  %728 = vrot.lane.b32.xlu0 %v705, 32
  %v729 = vpop.permute.xlu0 %728
  %v738 = vadd.f32 %v642, %v715
  %v739 = vadd.f32 %v643, %v717
  %v740 = vadd.f32 %v644, %v719
  %v741 = vadd.f32 %v645, %v721
  %v742 = vadd.f32 %v646, %v723
  %v743 = vadd.f32 %v647, %v725
  %v744 = vadd.f32 %v648, %v727
  %v745 = vadd.f32 %v649, %v729
  %v746 = vtanh.pop %v738
  %v747 = vtanh.pop %v739
  %v748 = vtanh.pop %v740
  %v749 = vtanh.pop %v741
  %v750 = vtanh.pop %v742
  %v751 = vtanh.pop %v743
  %v752 = vtanh.pop %v744
  %v753 = vtanh.pop %v745
  %762 = vrot.lane.b32.xlu0 %v746, 64
  %v763 = vpop.permute.xlu0 %762
  %764 = vrot.lane.b32.xlu0 %v747, 64
  %v765 = vpop.permute.xlu0 %764
  %766 = vrot.lane.b32.xlu0 %v748, 64
  %v767 = vpop.permute.xlu0 %766
  %768 = vrot.lane.b32.xlu0 %v749, 64
  %v769 = vpop.permute.xlu0 %768
  %770 = vrot.lane.b32.xlu0 %v750, 64
  %v771 = vpop.permute.xlu0 %770
  %772 = vrot.lane.b32.xlu0 %v751, 64
  %v773 = vpop.permute.xlu0 %772
  %774 = vrot.lane.b32.xlu0 %v752, 64
  %v775 = vpop.permute.xlu0 %774
  %776 = vrot.lane.b32.xlu0 %v753, 64
  %v777 = vpop.permute.xlu0 %776
  %v786 = vmul.f32 %v627, %v763
  %v787 = vmul.f32 %v629, %v765
  %v788 = vmul.f32 %v631, %v767
  %v789 = vmul.f32 %v633, %v769
  %v790 = vmul.f32 %v635, %v771
  %v791 = vmul.f32 %v637, %v773
  %v792 = vmul.f32 %v639, %v775
  %v793 = vmul.f32 %v641, %v777
  %v802 = vrot.slane %v787, 7
  %v803 = vsel %vm360, %v802, %v786
  %v804 = vrot.slane %v788, 6
  %v805 = vsel %vm363, %v804, %v803
  %v806 = vrot.slane %v789, 5
  %v807 = vsel %vm366, %v806, %v805
  %v808 = vrot.slane %v790, 4
  %v809 = vsel %vm369, %v808, %v807
  %v810 = vrot.slane %v791, 3
  %v811 = vsel %vm372, %v810, %v809
  %v812 = vrot.slane %v792, 2
  %v813 = vsel %vm375, %v812, %v811
  %v814 = vrot.slane %v793, 1
  %v815 = vsel %vm378, %v814, %v813
  %816 = vrot.lane.b32.xlu0 %v815, 32
  %v817 = vpop.permute.xlu0 %816
  %v818 = vsel %vm382, %v817, 0
  %820 = vmatprep.subr.mxu0 0.0
  %821 = vmatpush1.msra.mxu0 %v33
  %822 = vmatprep.subr.mxu0 0.0
  %823 = vmatpush1.msra.mxu0 %v34
  %824 = vmatprep.subr.mxu0 0.0
  %825 = vmatpush1.msra.mxu0 %v35
  %826 = vmatprep.subr.mxu0 0.0
  %827 = vmatpush1.msra.mxu0 %v36
  %828 = vmatprep.subr.mxu0 0.0
  %829 = vmatpush1.msra.mxu0 0.0
  %830 = vmatprep.subr.mxu0 0.0
  %831 = vmatpush1.msra.mxu0 0.0
  %832 = vmatprep.subr.mxu0 0.0
  %833 = vmatpush1.msra.mxu0 0.0
  %834 = vmatprep.subr.mxu0 0.0
  %835 = vmatpush1.msra.mxu0 0.0
  %836 = vmatprep.subr.mxu0 0.0
  %837 = vmatpush1.msra.mxu0 0.0
  %838 = vmatprep.subr.mxu0 0.0
  %839 = vmatpush1.msra.mxu0 0.0
  %840 = vmatprep.subr.mxu0 0.0
  %841 = vmatpush1.msra.mxu0 0.0
  %842 = vmatprep.subr.mxu0 0.0
  %843 = vmatpush1.msra.mxu0 0.0
  %844 = vmatprep.subr.mxu0 0.0
  %845 = vmatpush1.msra.mxu0 0.0
  %846 = vmatprep.subr.mxu0 0.0
  %847 = vmatpush1.msra.mxu0 0.0
  %848 = vmatprep.subr.mxu0 0.0
  %849 = vmatpush1.msra.mxu0 0.0
  %850 = vmatprep.subr.mxu0 0.0
  %851 = vmatpush1.msra.mxu0 0.0
  %852 = vmatprep.subr.mxu0 0.0
  %853 = vmatpush1.msra.mxu0 0.0
  %854 = vmatprep.subr.mxu0 0.0
  %855 = vmatpush1.msra.mxu0 0.0
  %856 = vmatprep.subr.mxu0 0.0
  %857 = vmatpush1.msra.mxu0 0.0
  %858 = vmatprep.subr.mxu0 0.0
  %859 = vmatpush1.msra.mxu0 0.0
  %860 = vmatprep.subr.mxu0 0.0
  %861 = vmatpush1.msra.mxu0 0.0
  %862 = vmatprep.subr.mxu0 0.0
  %863 = vmatpush1.msra.mxu0 0.0
  %864 = vmatprep.subr.mxu0 0.0
  %865 = vmatpush1.msra.mxu0 0.0
  %866 = vmatprep.subr.mxu0 0.0
  %867 = vmatpush1.msra.mxu0 0.0
  %868 = vmatprep.subr.mxu0 0.0
  %869 = vmatpush1.msra.mxu0 0.0
  %870 = vmatprep.subr.mxu0 0.0
  %871 = vmatpush1.msra.mxu0 0.0
  %872 = vmatprep.subr.mxu0 0.0
  %873 = vmatpush1.msra.mxu0 0.0
  %874 = vmatprep.subr.mxu0 0.0
  %875 = vmatpush1.msra.mxu0 0.0
  %876 = vmatprep.subr.mxu0 0.0
  %877 = vmatpush1.msra.mxu0 0.0
  %878 = vmatprep.subr.mxu0 0.0
  %879 = vmatpush1.msra.mxu0 0.0
  %880 = vmatprep.subr.mxu0 0.0
  %881 = vmatpush1.msra.mxu0 0.0
  %882 = vmatprep.subr.mxu0 0.0
  %883 = vmatpush1.msra.mxu0 0.0
  %884 = vmatprep.mubr.f32.mxu0 0.0
  %885 = vmatmul.mubr.f32.gmra.mrb[0].mxu0 %v818
  %v886 = vpop.f32.mrb[0].mxu0
  %v887 = vadd.f32 0.0, %v886
  %v888 = vpop.f32.mrb[0].mxu0
  %889 = vdwg.mxu0
  %v890 = vadd.f32 %v560, %v887
  %v891 = vadd.f32 %v890, %v42
  %v892 = vxor.u32 %v891, 2147483648
  %v893 = vmul.f32 %v892, 1.442695
  %v894 = vpow.pop %v893
  %v895 = vadd.f32 %v894, 1.0
  %v896 = vrcp.pop %v895
  %v897 = vmul.f32 1.0, %v896
  %v898 = vmul.f32 %v897, %v475
  %v899 = vmul.f32 %v897, 2.0
  %v900 = vsub.f32 %v899, 1.0
  %902 = vrot.lane.b32.xlu0 %v900, 64
  %v903 = vpop.permute.xlu0 %902
  %v905 = vmul.f32 %v897, %v903
  %907 = vrot.lane.b32.xlu0 %v905, 32
  %v908 = vpop.permute.xlu0 %907
  %v910 = vadd.f32 %v898, %v908
  %v911 = vtanh.pop %v910
  %913 = vrot.lane.b32.xlu0 %v911, 64
  %v914 = vpop.permute.xlu0 %913
  %v916 = vmul.f32 %v897, %v914
  %919 = vrot.lane.b32.xlu0 %v916, 64
  %v920 = vpop.permute.xlu0 %919
  %v922 = vsel %vm382, %v817, %v920
  %v924 = vsel %vm44, %v922, 0
  %926 = vmatprep.subr.mxu0 %v18
  %927 = vmatpush1.msra.mxu0 %v17
  %928 = vmatprep.subr.mxu0 %v20
  %929 = vmatpush1.msra.mxu0 %v19
  %930 = vmatprep.subr.mxu0 %v22
  %931 = vmatpush1.msra.mxu0 %v21
  %932 = vmatprep.subr.mxu0 %v24
  %933 = vmatpush1.msra.mxu0 %v23
  %934 = vmatprep.subr.mxu0 %v26
  %935 = vmatpush1.msra.mxu0 %v25
  %936 = vmatprep.subr.mxu0 %v28
  %937 = vmatpush1.msra.mxu0 %v27
  %938 = vmatprep.subr.mxu0 %v30
  %939 = vmatpush1.msra.mxu0 %v29
  %940 = vmatprep.subr.mxu0 %v32
  %941 = vmatpush1.msra.mxu0 %v31
  %942 = vmatprep.subr.mxu0 0.0
  %943 = vmatpush1.msra.mxu0 0.0
  %944 = vmatprep.subr.mxu0 0.0
  %945 = vmatpush1.msra.mxu0 0.0
  %946 = vmatprep.subr.mxu0 0.0
  %947 = vmatpush1.msra.mxu0 0.0
  %948 = vmatprep.subr.mxu0 0.0
  %949 = vmatpush1.msra.mxu0 0.0
  %950 = vmatprep.subr.mxu0 0.0
  %951 = vmatpush1.msra.mxu0 0.0
  %952 = vmatprep.subr.mxu0 0.0
  %953 = vmatpush1.msra.mxu0 0.0
  %954 = vmatprep.subr.mxu0 0.0
  %955 = vmatpush1.msra.mxu0 0.0
  %956 = vmatprep.subr.mxu0 0.0
  %957 = vmatpush1.msra.mxu0 0.0
  %958 = vmatprep.subr.mxu0 0.0
  %959 = vmatpush1.msra.mxu0 0.0
  %960 = vmatprep.subr.mxu0 0.0
  %961 = vmatpush1.msra.mxu0 0.0
  %962 = vmatprep.subr.mxu0 0.0
  %963 = vmatpush1.msra.mxu0 0.0
  %964 = vmatprep.subr.mxu0 0.0
  %965 = vmatpush1.msra.mxu0 0.0
  %966 = vmatprep.subr.mxu0 0.0
  %967 = vmatpush1.msra.mxu0 0.0
  %968 = vmatprep.subr.mxu0 0.0
  %969 = vmatpush1.msra.mxu0 0.0
  %970 = vmatprep.subr.mxu0 0.0
  %971 = vmatpush1.msra.mxu0 0.0
  %972 = vmatprep.subr.mxu0 0.0
  %973 = vmatpush1.msra.mxu0 0.0
  %974 = vmatprep.subr.mxu0 0.0
  %975 = vmatpush1.msra.mxu0 0.0
  %976 = vmatprep.subr.mxu0 0.0
  %977 = vmatpush1.msra.mxu0 0.0
  %978 = vmatprep.subr.mxu0 0.0
  %979 = vmatpush1.msra.mxu0 0.0
  %980 = vmatprep.subr.mxu0 0.0
  %981 = vmatpush1.msra.mxu0 0.0
  %982 = vmatprep.subr.mxu0 0.0
  %983 = vmatpush1.msra.mxu0 0.0
  %984 = vmatprep.subr.mxu0 0.0
  %985 = vmatpush1.msra.mxu0 0.0
  %986 = vmatprep.subr.mxu0 0.0
  %987 = vmatpush1.msra.mxu0 0.0
  %988 = vmatprep.subr.mxu0 0.0
  %989 = vmatpush1.msra.mxu0 0.0
  %990 = vmatprep.mubr.f32.mxu0 0.0
  %991 = vmatmul.mubr.f32.gmra.mrb[0].mxu0 %v924
  %v992 = vpop.f32.mrb[0].mxu0
  %v993 = vadd.f32 0.0, %v992
  %v994 = vpop.f32.mrb[0].mxu0
  %v995 = vadd.f32 0.0, %v994
  %996 = vdwg.mxu0
  %v997 = vld [vmem:[%s0 + $0x2] sm:$0x1]
  %v998 = vld [vmem:[%s0 + $0x12] sm:$0x1]
  %v999 = vld [vmem:[%s0 + $0x22] sm:$0x1]
  %v1000 = vld [vmem:[%s0 + $0x32] sm:$0x1]
  %v1001 = vld [vmem:[%s0 + $0x42] sm:$0x1]
  %v1002 = vld [vmem:[%s0 + $0x52] sm:$0x1]
  %v1003 = vld [vmem:[%s0 + $0x62] sm:$0x1]
  %v1004 = vld [vmem:[%s0 + $0x72] sm:$0x1]
  %v1006 = vrot.slane %v993, 1
  %v1007 = vrot.slane %v993, 2
  %v1008 = vrot.slane %v993, 3
  %v1009 = vrot.slane %v993, 4
  %v1010 = vrot.slane %v993, 5
  %v1011 = vrot.slane %v993, 6
  %v1012 = vrot.slane %v993, 7
  %v1021 = vadd.f32 %v997, %v993
  %v1022 = vadd.f32 %v998, %v1006
  %v1023 = vadd.f32 %v999, %v1007
  %v1024 = vadd.f32 %v1000, %v1008
  %v1025 = vadd.f32 %v1001, %v1009
  %v1026 = vadd.f32 %v1002, %v1010
  %v1027 = vadd.f32 %v1003, %v1011
  %v1028 = vadd.f32 %v1004, %v1012
  %v1029 = vxor.u32 %v1021, 2147483648
  %v1030 = vxor.u32 %v1022, 2147483648
  %v1031 = vxor.u32 %v1023, 2147483648
  %v1032 = vxor.u32 %v1024, 2147483648
  %v1033 = vxor.u32 %v1025, 2147483648
  %v1034 = vxor.u32 %v1026, 2147483648
  %v1035 = vxor.u32 %v1027, 2147483648
  %v1036 = vxor.u32 %v1028, 2147483648
  %v1037 = vmul.f32 %v1029, 1.442695
  %v1038 = vpow.pop %v1037
  %v1039 = vmul.f32 %v1030, 1.442695
  %v1040 = vpow.pop %v1039
  %v1041 = vmul.f32 %v1031, 1.442695
  %v1042 = vpow.pop %v1041
  %v1043 = vmul.f32 %v1032, 1.442695
  %v1044 = vpow.pop %v1043
  %v1045 = vmul.f32 %v1033, 1.442695
  %v1046 = vpow.pop %v1045
  %v1047 = vmul.f32 %v1034, 1.442695
  %v1048 = vpow.pop %v1047
  %v1049 = vmul.f32 %v1035, 1.442695
  %v1050 = vpow.pop %v1049
  %v1051 = vmul.f32 %v1036, 1.442695
  %v1052 = vpow.pop %v1051
  %v1053 = vadd.f32 %v1038, 1.0
  %v1054 = vadd.f32 %v1040, 1.0
  %v1055 = vadd.f32 %v1042, 1.0
  %v1056 = vadd.f32 %v1044, 1.0
  %v1057 = vadd.f32 %v1046, 1.0
  %v1058 = vadd.f32 %v1048, 1.0
  %v1059 = vadd.f32 %v1050, 1.0
  %v1060 = vadd.f32 %v1052, 1.0
  %v1061 = vrcp.pop %v1053
  %v1062 = vmul.f32 1.0, %v1061
  %v1063 = vrcp.pop %v1054
  %v1064 = vmul.f32 1.0, %v1063
  %v1065 = vrcp.pop %v1055
  %v1066 = vmul.f32 1.0, %v1065
  %v1067 = vrcp.pop %v1056
  %v1068 = vmul.f32 1.0, %v1067
  %v1069 = vrcp.pop %v1057
  %v1070 = vmul.f32 1.0, %v1069
  %v1071 = vrcp.pop %v1058
  %v1072 = vmul.f32 1.0, %v1071
  %v1073 = vrcp.pop %v1059
  %v1074 = vmul.f32 1.0, %v1073
  %v1075 = vrcp.pop %v1060
  %v1076 = vmul.f32 1.0, %v1075
  %v1077 = vmul.f32 %v1062, %v738
  %v1078 = vmul.f32 %v1064, %v739
  %v1079 = vmul.f32 %v1066, %v740
  %v1080 = vmul.f32 %v1068, %v741
  %v1081 = vmul.f32 %v1070, %v742
  %v1082 = vmul.f32 %v1072, %v743
  %v1083 = vmul.f32 %v1074, %v744
  %v1084 = vmul.f32 %v1076, %v745
  %v1085 = vmul.f32 %v1062, 2.0
  %v1086 = vmul.f32 %v1064, 2.0
  %v1087 = vmul.f32 %v1066, 2.0
  %v1088 = vmul.f32 %v1068, 2.0
  %v1089 = vmul.f32 %v1070, 2.0
  %v1090 = vmul.f32 %v1072, 2.0
  %v1091 = vmul.f32 %v1074, 2.0
  %v1092 = vmul.f32 %v1076, 2.0
  %v1093 = vsub.f32 %v1085, 1.0
  %v1094 = vsub.f32 %v1086, 1.0
  %v1095 = vsub.f32 %v1087, 1.0
  %v1096 = vsub.f32 %v1088, 1.0
  %v1097 = vsub.f32 %v1089, 1.0
  %v1098 = vsub.f32 %v1090, 1.0
  %v1099 = vsub.f32 %v1091, 1.0
  %v1100 = vsub.f32 %v1092, 1.0
  %1109 = vrot.lane.b32.xlu0 %v1093, 64
  %v1110 = vpop.permute.xlu0 %1109
  %1111 = vrot.lane.b32.xlu0 %v1094, 64
  %v1112 = vpop.permute.xlu0 %1111
  %1113 = vrot.lane.b32.xlu0 %v1095, 64
  %v1114 = vpop.permute.xlu0 %1113
  %1115 = vrot.lane.b32.xlu0 %v1096, 64
  %v1116 = vpop.permute.xlu0 %1115
  %1117 = vrot.lane.b32.xlu0 %v1097, 64
  %v1118 = vpop.permute.xlu0 %1117
  %1119 = vrot.lane.b32.xlu0 %v1098, 64
  %v1120 = vpop.permute.xlu0 %1119
  %1121 = vrot.lane.b32.xlu0 %v1099, 64
  %v1122 = vpop.permute.xlu0 %1121
  %1123 = vrot.lane.b32.xlu0 %v1100, 64
  %v1124 = vpop.permute.xlu0 %1123
  %v1133 = vmul.f32 %v1062, %v1110
  %v1134 = vmul.f32 %v1064, %v1112
  %v1135 = vmul.f32 %v1066, %v1114
  %v1136 = vmul.f32 %v1068, %v1116
  %v1137 = vmul.f32 %v1070, %v1118
  %v1138 = vmul.f32 %v1072, %v1120
  %v1139 = vmul.f32 %v1074, %v1122
  %v1140 = vmul.f32 %v1076, %v1124
  %1149 = vrot.lane.b32.xlu0 %v1133, 32
  %v1150 = vpop.permute.xlu0 %1149
  %1151 = vrot.lane.b32.xlu0 %v1134, 32
  %v1152 = vpop.permute.xlu0 %1151
  %1153 = vrot.lane.b32.xlu0 %v1135, 32
  %v1154 = vpop.permute.xlu0 %1153
  %1155 = vrot.lane.b32.xlu0 %v1136, 32
  %v1156 = vpop.permute.xlu0 %1155
  %1157 = vrot.lane.b32.xlu0 %v1137, 32
  %v1158 = vpop.permute.xlu0 %1157
  %1159 = vrot.lane.b32.xlu0 %v1138, 32
  %v1160 = vpop.permute.xlu0 %1159
  %1161 = vrot.lane.b32.xlu0 %v1139, 32
  %v1162 = vpop.permute.xlu0 %1161
  %1163 = vrot.lane.b32.xlu0 %v1140, 32
  %v1164 = vpop.permute.xlu0 %1163
  %v1173 = vadd.f32 %v1077, %v1150
  %v1174 = vadd.f32 %v1078, %v1152
  %v1175 = vadd.f32 %v1079, %v1154
  %v1176 = vadd.f32 %v1080, %v1156
  %v1177 = vadd.f32 %v1081, %v1158
  %v1178 = vadd.f32 %v1082, %v1160
  %v1179 = vadd.f32 %v1083, %v1162
  %v1180 = vadd.f32 %v1084, %v1164
  %v1181 = vtanh.pop %v1173
  %v1182 = vtanh.pop %v1174
  %v1183 = vtanh.pop %v1175
  %v1184 = vtanh.pop %v1176
  %v1185 = vtanh.pop %v1177
  %v1186 = vtanh.pop %v1178
  %v1187 = vtanh.pop %v1179
  %v1188 = vtanh.pop %v1180
  %1197 = vrot.lane.b32.xlu0 %v1181, 64
  %v1198 = vpop.permute.xlu0 %1197
  %1199 = vrot.lane.b32.xlu0 %v1182, 64
  %v1200 = vpop.permute.xlu0 %1199
  %1201 = vrot.lane.b32.xlu0 %v1183, 64
  %v1202 = vpop.permute.xlu0 %1201
  %1203 = vrot.lane.b32.xlu0 %v1184, 64
  %v1204 = vpop.permute.xlu0 %1203
  %1205 = vrot.lane.b32.xlu0 %v1185, 64
  %v1206 = vpop.permute.xlu0 %1205
  %1207 = vrot.lane.b32.xlu0 %v1186, 64
  %v1208 = vpop.permute.xlu0 %1207
  %1209 = vrot.lane.b32.xlu0 %v1187, 64
  %v1210 = vpop.permute.xlu0 %1209
  %1211 = vrot.lane.b32.xlu0 %v1188, 64
  %v1212 = vpop.permute.xlu0 %1211
  %v1221 = vmul.f32 %v1062, %v1198
  %v1222 = vmul.f32 %v1064, %v1200
  %v1223 = vmul.f32 %v1066, %v1202
  %v1224 = vmul.f32 %v1068, %v1204
  %v1225 = vmul.f32 %v1070, %v1206
  %v1226 = vmul.f32 %v1072, %v1208
  %v1227 = vmul.f32 %v1074, %v1210
  %v1228 = vmul.f32 %v1076, %v1212
  %v1237 = vrot.slane %v1222, 7
  %v1238 = vsel %vm360, %v1237, %v1221
  %v1239 = vrot.slane %v1223, 6
  %v1240 = vsel %vm363, %v1239, %v1238
  %v1241 = vrot.slane %v1224, 5
  %v1242 = vsel %vm366, %v1241, %v1240
  %v1243 = vrot.slane %v1225, 4
  %v1244 = vsel %vm369, %v1243, %v1242
  %v1245 = vrot.slane %v1226, 3
  %v1246 = vsel %vm372, %v1245, %v1244
  %v1247 = vrot.slane %v1227, 2
  %v1248 = vsel %vm375, %v1247, %v1246
  %v1249 = vrot.slane %v1228, 1
  %v1250 = vsel %vm378, %v1249, %v1248
  %1251 = vrot.lane.b32.xlu0 %v1250, 32
  %v1252 = vpop.permute.xlu0 %1251
  %v1253 = vsel %vm382, %v1252, 0
  %1255 = vmatprep.subr.mxu0 0.0
  %1256 = vmatpush1.msra.mxu0 %v33
  %1257 = vmatprep.subr.mxu0 0.0
  %1258 = vmatpush1.msra.mxu0 %v34
  %1259 = vmatprep.subr.mxu0 0.0
  %1260 = vmatpush1.msra.mxu0 %v35
  %1261 = vmatprep.subr.mxu0 0.0
  %1262 = vmatpush1.msra.mxu0 %v36
  %1263 = vmatprep.subr.mxu0 0.0
  %1264 = vmatpush1.msra.mxu0 0.0
  %1265 = vmatprep.subr.mxu0 0.0
  %1266 = vmatpush1.msra.mxu0 0.0
  %1267 = vmatprep.subr.mxu0 0.0
  %1268 = vmatpush1.msra.mxu0 0.0
  %1269 = vmatprep.subr.mxu0 0.0
  %1270 = vmatpush1.msra.mxu0 0.0
  %1271 = vmatprep.subr.mxu0 0.0
  %1272 = vmatpush1.msra.mxu0 0.0
  %1273 = vmatprep.subr.mxu0 0.0
  %1274 = vmatpush1.msra.mxu0 0.0
  %1275 = vmatprep.subr.mxu0 0.0
  %1276 = vmatpush1.msra.mxu0 0.0
  %1277 = vmatprep.subr.mxu0 0.0
  %1278 = vmatpush1.msra.mxu0 0.0
  %1279 = vmatprep.subr.mxu0 0.0
  %1280 = vmatpush1.msra.mxu0 0.0
  %1281 = vmatprep.subr.mxu0 0.0
  %1282 = vmatpush1.msra.mxu0 0.0
  %1283 = vmatprep.subr.mxu0 0.0
  %1284 = vmatpush1.msra.mxu0 0.0
  %1285 = vmatprep.subr.mxu0 0.0
  %1286 = vmatpush1.msra.mxu0 0.0
  %1287 = vmatprep.subr.mxu0 0.0
  %1288 = vmatpush1.msra.mxu0 0.0
  %1289 = vmatprep.subr.mxu0 0.0
  %1290 = vmatpush1.msra.mxu0 0.0
  %1291 = vmatprep.subr.mxu0 0.0
  %1292 = vmatpush1.msra.mxu0 0.0
  %1293 = vmatprep.subr.mxu0 0.0
  %1294 = vmatpush1.msra.mxu0 0.0
  %1295 = vmatprep.subr.mxu0 0.0
  %1296 = vmatpush1.msra.mxu0 0.0
  %1297 = vmatprep.subr.mxu0 0.0
  %1298 = vmatpush1.msra.mxu0 0.0
  %1299 = vmatprep.subr.mxu0 0.0
  %1300 = vmatpush1.msra.mxu0 0.0
  %1301 = vmatprep.subr.mxu0 0.0
  %1302 = vmatpush1.msra.mxu0 0.0
  %1303 = vmatprep.subr.mxu0 0.0
  %1304 = vmatpush1.msra.mxu0 0.0
  %1305 = vmatprep.subr.mxu0 0.0
  %1306 = vmatpush1.msra.mxu0 0.0
  %1307 = vmatprep.subr.mxu0 0.0
  %1308 = vmatpush1.msra.mxu0 0.0
  %1309 = vmatprep.subr.mxu0 0.0
  %1310 = vmatpush1.msra.mxu0 0.0
  %1311 = vmatprep.subr.mxu0 0.0
  %1312 = vmatpush1.msra.mxu0 0.0
  %1313 = vmatprep.subr.mxu0 0.0
  %1314 = vmatpush1.msra.mxu0 0.0
  %1315 = vmatprep.subr.mxu0 0.0
  %1316 = vmatpush1.msra.mxu0 0.0
  %1317 = vmatprep.subr.mxu0 0.0
  %1318 = vmatpush1.msra.mxu0 0.0
  %1319 = vmatprep.mubr.f32.mxu0 0.0
  %1320 = vmatmul.mubr.f32.gmra.mrb[0].mxu0 %v1253
  %v1321 = vpop.f32.mrb[0].mxu0
  %v1322 = vadd.f32 0.0, %v1321
  %v1323 = vpop.f32.mrb[0].mxu0
  %1324 = vdwg.mxu0
  %v1325 = vadd.f32 %v995, %v1322
  %v1326 = vadd.f32 %v1325, %v42
  %v1327 = vxor.u32 %v1326, 2147483648
  %v1328 = vmul.f32 %v1327, 1.442695
  %v1329 = vpow.pop %v1328
  %v1330 = vadd.f32 %v1329, 1.0
  %v1331 = vrcp.pop %v1330
  %v1332 = vmul.f32 1.0, %v1331
  %v1333 = vmul.f32 %v1332, %v910
  %v1334 = vmul.f32 %v1332, 2.0
  %v1335 = vsub.f32 %v1334, 1.0
  %1337 = vrot.lane.b32.xlu0 %v1335, 64
  %v1338 = vpop.permute.xlu0 %1337
  %v1340 = vmul.f32 %v1332, %v1338
  %1342 = vrot.lane.b32.xlu0 %v1340, 32
  %v1343 = vpop.permute.xlu0 %1342
  %v1345 = vadd.f32 %v1333, %v1343
  %v1346 = vtanh.pop %v1345
  %1348 = vrot.lane.b32.xlu0 %v1346, 64
  %v1349 = vpop.permute.xlu0 %1348
  %v1351 = vmul.f32 %v1332, %v1349
  %1354 = vrot.lane.b32.xlu0 %v1351, 64
  %v1355 = vpop.permute.xlu0 %1354
  %v1357 = vsel %vm382, %v1252, %v1355
  %v1359 = vsel %vm44, %v1357, 0
  %1361 = vmatprep.subr.mxu0 %v18
  %1362 = vmatpush1.msra.mxu0 %v17
  %1363 = vmatprep.subr.mxu0 %v20
  %1364 = vmatpush1.msra.mxu0 %v19
  %1365 = vmatprep.subr.mxu0 %v22
  %1366 = vmatpush1.msra.mxu0 %v21
  %1367 = vmatprep.subr.mxu0 %v24
  %1368 = vmatpush1.msra.mxu0 %v23
  %1369 = vmatprep.subr.mxu0 %v26
  %1370 = vmatpush1.msra.mxu0 %v25
  %1371 = vmatprep.subr.mxu0 %v28
  %1372 = vmatpush1.msra.mxu0 %v27
  %1373 = vmatprep.subr.mxu0 %v30
  %1374 = vmatpush1.msra.mxu0 %v29
  %1375 = vmatprep.subr.mxu0 %v32
  %1376 = vmatpush1.msra.mxu0 %v31
  %1377 = vmatprep.subr.mxu0 0.0
  %1378 = vmatpush1.msra.mxu0 0.0
  %1379 = vmatprep.subr.mxu0 0.0
  %1380 = vmatpush1.msra.mxu0 0.0
  %1381 = vmatprep.subr.mxu0 0.0
  %1382 = vmatpush1.msra.mxu0 0.0
  %1383 = vmatprep.subr.mxu0 0.0
  %1384 = vmatpush1.msra.mxu0 0.0
  %1385 = vmatprep.subr.mxu0 0.0
  %1386 = vmatpush1.msra.mxu0 0.0
  %1387 = vmatprep.subr.mxu0 0.0
  %1388 = vmatpush1.msra.mxu0 0.0
  %1389 = vmatprep.subr.mxu0 0.0
  %1390 = vmatpush1.msra.mxu0 0.0
  %1391 = vmatprep.subr.mxu0 0.0
  %1392 = vmatpush1.msra.mxu0 0.0
  %1393 = vmatprep.subr.mxu0 0.0
  %1394 = vmatpush1.msra.mxu0 0.0
  %1395 = vmatprep.subr.mxu0 0.0
  %1396 = vmatpush1.msra.mxu0 0.0
  %1397 = vmatprep.subr.mxu0 0.0
  %1398 = vmatpush1.msra.mxu0 0.0
  %1399 = vmatprep.subr.mxu0 0.0
  %1400 = vmatpush1.msra.mxu0 0.0
  %1401 = vmatprep.subr.mxu0 0.0
  %1402 = vmatpush1.msra.mxu0 0.0
  %1403 = vmatprep.subr.mxu0 0.0
  %1404 = vmatpush1.msra.mxu0 0.0
  %1405 = vmatprep.subr.mxu0 0.0
  %1406 = vmatpush1.msra.mxu0 0.0
  %1407 = vmatprep.subr.mxu0 0.0
  %1408 = vmatpush1.msra.mxu0 0.0
  %1409 = vmatprep.subr.mxu0 0.0
  %1410 = vmatpush1.msra.mxu0 0.0
  %1411 = vmatprep.subr.mxu0 0.0
  %1412 = vmatpush1.msra.mxu0 0.0
  %1413 = vmatprep.subr.mxu0 0.0
  %1414 = vmatpush1.msra.mxu0 0.0
  %1415 = vmatprep.subr.mxu0 0.0
  %1416 = vmatpush1.msra.mxu0 0.0
  %1417 = vmatprep.subr.mxu0 0.0
  %1418 = vmatpush1.msra.mxu0 0.0
  %1419 = vmatprep.subr.mxu0 0.0
  %1420 = vmatpush1.msra.mxu0 0.0
  %1421 = vmatprep.subr.mxu0 0.0
  %1422 = vmatpush1.msra.mxu0 0.0
  %1423 = vmatprep.subr.mxu0 0.0
  %1424 = vmatpush1.msra.mxu0 0.0
  %1425 = vmatprep.mubr.f32.mxu0 0.0
  %1426 = vmatmul.mubr.f32.gmra.mrb[0].mxu0 %v1359
  %v1427 = vpop.f32.mrb[0].mxu0
  %v1428 = vadd.f32 0.0, %v1427
  %v1429 = vpop.f32.mrb[0].mxu0
  %v1430 = vadd.f32 0.0, %v1429
  %1431 = vdwg.mxu0
  %v1432 = vld [vmem:[%s0 + $0x3] sm:$0x1]
  %v1433 = vld [vmem:[%s0 + $0x13] sm:$0x1]
  %v1434 = vld [vmem:[%s0 + $0x23] sm:$0x1]
  %v1435 = vld [vmem:[%s0 + $0x33] sm:$0x1]
  %v1436 = vld [vmem:[%s0 + $0x43] sm:$0x1]
  %v1437 = vld [vmem:[%s0 + $0x53] sm:$0x1]
  %v1438 = vld [vmem:[%s0 + $0x63] sm:$0x1]
  %v1439 = vld [vmem:[%s0 + $0x73] sm:$0x1]
  %v1441 = vrot.slane %v1428, 1
  %v1442 = vrot.slane %v1428, 2
  %v1443 = vrot.slane %v1428, 3
  %v1444 = vrot.slane %v1428, 4
  %v1445 = vrot.slane %v1428, 5
  %v1446 = vrot.slane %v1428, 6
  %v1447 = vrot.slane %v1428, 7
  %v1456 = vadd.f32 %v1432, %v1428
  %v1457 = vadd.f32 %v1433, %v1441
  %v1458 = vadd.f32 %v1434, %v1442
  %v1459 = vadd.f32 %v1435, %v1443
  %v1460 = vadd.f32 %v1436, %v1444
  %v1461 = vadd.f32 %v1437, %v1445
  %v1462 = vadd.f32 %v1438, %v1446
  %v1463 = vadd.f32 %v1439, %v1447
  %v1464 = vxor.u32 %v1456, 2147483648
  %v1465 = vxor.u32 %v1457, 2147483648
  %v1466 = vxor.u32 %v1458, 2147483648
  %v1467 = vxor.u32 %v1459, 2147483648
  %v1468 = vxor.u32 %v1460, 2147483648
  %v1469 = vxor.u32 %v1461, 2147483648
  %v1470 = vxor.u32 %v1462, 2147483648
  %v1471 = vxor.u32 %v1463, 2147483648
  %v1472 = vmul.f32 %v1464, 1.442695
  %v1473 = vpow.pop %v1472
  %v1474 = vmul.f32 %v1465, 1.442695
  %v1475 = vpow.pop %v1474
  %v1476 = vmul.f32 %v1466, 1.442695
  %v1477 = vpow.pop %v1476
  %v1478 = vmul.f32 %v1467, 1.442695
  %v1479 = vpow.pop %v1478
  %v1480 = vmul.f32 %v1468, 1.442695
  %v1481 = vpow.pop %v1480
  %v1482 = vmul.f32 %v1469, 1.442695
  %v1483 = vpow.pop %v1482
  %v1484 = vmul.f32 %v1470, 1.442695
  %v1485 = vpow.pop %v1484
  %v1486 = vmul.f32 %v1471, 1.442695
  %v1487 = vpow.pop %v1486
  %v1488 = vadd.f32 %v1473, 1.0
  %v1489 = vadd.f32 %v1475, 1.0
  %v1490 = vadd.f32 %v1477, 1.0
  %v1491 = vadd.f32 %v1479, 1.0
  %v1492 = vadd.f32 %v1481, 1.0
  %v1493 = vadd.f32 %v1483, 1.0
  %v1494 = vadd.f32 %v1485, 1.0
  %v1495 = vadd.f32 %v1487, 1.0
  %v1496 = vrcp.pop %v1488
  %v1497 = vmul.f32 1.0, %v1496
  %v1498 = vrcp.pop %v1489
  %v1499 = vmul.f32 1.0, %v1498
  %v1500 = vrcp.pop %v1490
  %v1501 = vmul.f32 1.0, %v1500
  %v1502 = vrcp.pop %v1491
  %v1503 = vmul.f32 1.0, %v1502
  %v1504 = vrcp.pop %v1492
  %v1505 = vmul.f32 1.0, %v1504
  %v1506 = vrcp.pop %v1493
  %v1507 = vmul.f32 1.0, %v1506
  %v1508 = vrcp.pop %v1494
  %v1509 = vmul.f32 1.0, %v1508
  %v1510 = vrcp.pop %v1495
  %v1511 = vmul.f32 1.0, %v1510
  %v1512 = vmul.f32 %v1497, %v1173
  %v1513 = vmul.f32 %v1499, %v1174
  %v1514 = vmul.f32 %v1501, %v1175
  %v1515 = vmul.f32 %v1503, %v1176
  %v1516 = vmul.f32 %v1505, %v1177
  %v1517 = vmul.f32 %v1507, %v1178
  %v1518 = vmul.f32 %v1509, %v1179
  %v1519 = vmul.f32 %v1511, %v1180
  %v1520 = vmul.f32 %v1497, 2.0
  %v1521 = vmul.f32 %v1499, 2.0
  %v1522 = vmul.f32 %v1501, 2.0
  %v1523 = vmul.f32 %v1503, 2.0
  %v1524 = vmul.f32 %v1505, 2.0
  %v1525 = vmul.f32 %v1507, 2.0
  %v1526 = vmul.f32 %v1509, 2.0
  %v1527 = vmul.f32 %v1511, 2.0
  %v1528 = vsub.f32 %v1520, 1.0
  %v1529 = vsub.f32 %v1521, 1.0
  %v1530 = vsub.f32 %v1522, 1.0
  %v1531 = vsub.f32 %v1523, 1.0
  %v1532 = vsub.f32 %v1524, 1.0
  %v1533 = vsub.f32 %v1525, 1.0
  %v1534 = vsub.f32 %v1526, 1.0
  %v1535 = vsub.f32 %v1527, 1.0
  %1544 = vrot.lane.b32.xlu0 %v1528, 64
  %v1545 = vpop.permute.xlu0 %1544
  %1546 = vrot.lane.b32.xlu0 %v1529, 64
  %v1547 = vpop.permute.xlu0 %1546
  %1548 = vrot.lane.b32.xlu0 %v1530, 64
  %v1549 = vpop.permute.xlu0 %1548
  %1550 = vrot.lane.b32.xlu0 %v1531, 64
  %v1551 = vpop.permute.xlu0 %1550
  %1552 = vrot.lane.b32.xlu0 %v1532, 64
  %v1553 = vpop.permute.xlu0 %1552
  %1554 = vrot.lane.b32.xlu0 %v1533, 64
  %v1555 = vpop.permute.xlu0 %1554
  %1556 = vrot.lane.b32.xlu0 %v1534, 64
  %v1557 = vpop.permute.xlu0 %1556
  %1558 = vrot.lane.b32.xlu0 %v1535, 64
  %v1559 = vpop.permute.xlu0 %1558
  %v1568 = vmul.f32 %v1497, %v1545
  %v1569 = vmul.f32 %v1499, %v1547
  %v1570 = vmul.f32 %v1501, %v1549
  %v1571 = vmul.f32 %v1503, %v1551
  %v1572 = vmul.f32 %v1505, %v1553
  %v1573 = vmul.f32 %v1507, %v1555
  %v1574 = vmul.f32 %v1509, %v1557
  %v1575 = vmul.f32 %v1511, %v1559
  %1584 = vrot.lane.b32.xlu0 %v1568, 32
  %v1585 = vpop.permute.xlu0 %1584
  %1586 = vrot.lane.b32.xlu0 %v1569, 32
  %v1587 = vpop.permute.xlu0 %1586
  %1588 = vrot.lane.b32.xlu0 %v1570, 32
  %v1589 = vpop.permute.xlu0 %1588
  %1590 = vrot.lane.b32.xlu0 %v1571, 32
  %v1591 = vpop.permute.xlu0 %1590
  %1592 = vrot.lane.b32.xlu0 %v1572, 32
  %v1593 = vpop.permute.xlu0 %1592
  %1594 = vrot.lane.b32.xlu0 %v1573, 32
  %v1595 = vpop.permute.xlu0 %1594
  %1596 = vrot.lane.b32.xlu0 %v1574, 32
  %v1597 = vpop.permute.xlu0 %1596
  %1598 = vrot.lane.b32.xlu0 %v1575, 32
  %v1599 = vpop.permute.xlu0 %1598
  %v1608 = vadd.f32 %v1512, %v1585
  %v1609 = vadd.f32 %v1513, %v1587
  %v1610 = vadd.f32 %v1514, %v1589
  %v1611 = vadd.f32 %v1515, %v1591
  %v1612 = vadd.f32 %v1516, %v1593
  %v1613 = vadd.f32 %v1517, %v1595
  %v1614 = vadd.f32 %v1518, %v1597
  %v1615 = vadd.f32 %v1519, %v1599
  %v1616 = vtanh.pop %v1608
  %v1617 = vtanh.pop %v1609
  %v1618 = vtanh.pop %v1610
  %v1619 = vtanh.pop %v1611
  %v1620 = vtanh.pop %v1612
  %v1621 = vtanh.pop %v1613
  %v1622 = vtanh.pop %v1614
  %v1623 = vtanh.pop %v1615
  %1632 = vrot.lane.b32.xlu0 %v1616, 64
  %v1633 = vpop.permute.xlu0 %1632
  %1634 = vrot.lane.b32.xlu0 %v1617, 64
  %v1635 = vpop.permute.xlu0 %1634
  %1636 = vrot.lane.b32.xlu0 %v1618, 64
  %v1637 = vpop.permute.xlu0 %1636
  %1638 = vrot.lane.b32.xlu0 %v1619, 64
  %v1639 = vpop.permute.xlu0 %1638
  %1640 = vrot.lane.b32.xlu0 %v1620, 64
  %v1641 = vpop.permute.xlu0 %1640
  %1642 = vrot.lane.b32.xlu0 %v1621, 64
  %v1643 = vpop.permute.xlu0 %1642
  %1644 = vrot.lane.b32.xlu0 %v1622, 64
  %v1645 = vpop.permute.xlu0 %1644
  %1646 = vrot.lane.b32.xlu0 %v1623, 64
  %v1647 = vpop.permute.xlu0 %1646
  %v1656 = vmul.f32 %v1497, %v1633
  %v1657 = vmul.f32 %v1499, %v1635
  %v1658 = vmul.f32 %v1501, %v1637
  %v1659 = vmul.f32 %v1503, %v1639
  %v1660 = vmul.f32 %v1505, %v1641
  %v1661 = vmul.f32 %v1507, %v1643
  %v1662 = vmul.f32 %v1509, %v1645
  %v1663 = vmul.f32 %v1511, %v1647
  %v1672 = vrot.slane %v1657, 7
  %v1673 = vsel %vm360, %v1672, %v1656
  %v1674 = vrot.slane %v1658, 6
  %v1675 = vsel %vm363, %v1674, %v1673
  %v1676 = vrot.slane %v1659, 5
  %v1677 = vsel %vm366, %v1676, %v1675
  %v1678 = vrot.slane %v1660, 4
  %v1679 = vsel %vm369, %v1678, %v1677
  %v1680 = vrot.slane %v1661, 3
  %v1681 = vsel %vm372, %v1680, %v1679
  %v1682 = vrot.slane %v1662, 2
  %v1683 = vsel %vm375, %v1682, %v1681
  %v1684 = vrot.slane %v1663, 1
  %v1685 = vsel %vm378, %v1684, %v1683
  %1686 = vrot.lane.b32.xlu0 %v1685, 32
  %v1687 = vpop.permute.xlu0 %1686
  %v1688 = vsel %vm382, %v1687, 0
  %1690 = vmatprep.subr.mxu0 0.0
  %1691 = vmatpush1.msra.mxu0 %v33
  %1692 = vmatprep.subr.mxu0 0.0
  %1693 = vmatpush1.msra.mxu0 %v34
  %1694 = vmatprep.subr.mxu0 0.0
  %1695 = vmatpush1.msra.mxu0 %v35
  %1696 = vmatprep.subr.mxu0 0.0
  %1697 = vmatpush1.msra.mxu0 %v36
  %1698 = vmatprep.subr.mxu0 0.0
  %1699 = vmatpush1.msra.mxu0 0.0
  %1700 = vmatprep.subr.mxu0 0.0
  %1701 = vmatpush1.msra.mxu0 0.0
  %1702 = vmatprep.subr.mxu0 0.0
  %1703 = vmatpush1.msra.mxu0 0.0
  %1704 = vmatprep.subr.mxu0 0.0
  %1705 = vmatpush1.msra.mxu0 0.0
  %1706 = vmatprep.subr.mxu0 0.0
  %1707 = vmatpush1.msra.mxu0 0.0
  %1708 = vmatprep.subr.mxu0 0.0
  %1709 = vmatpush1.msra.mxu0 0.0
  %1710 = vmatprep.subr.mxu0 0.0
  %1711 = vmatpush1.msra.mxu0 0.0
  %1712 = vmatprep.subr.mxu0 0.0
  %1713 = vmatpush1.msra.mxu0 0.0
  %1714 = vmatprep.subr.mxu0 0.0
  %1715 = vmatpush1.msra.mxu0 0.0
  %1716 = vmatprep.subr.mxu0 0.0
  %1717 = vmatpush1.msra.mxu0 0.0
  %1718 = vmatprep.subr.mxu0 0.0
  %1719 = vmatpush1.msra.mxu0 0.0
  %1720 = vmatprep.subr.mxu0 0.0
  %1721 = vmatpush1.msra.mxu0 0.0
  %1722 = vmatprep.subr.mxu0 0.0
  %1723 = vmatpush1.msra.mxu0 0.0
  %1724 = vmatprep.subr.mxu0 0.0
  %1725 = vmatpush1.msra.mxu0 0.0
  %1726 = vmatprep.subr.mxu0 0.0
  %1727 = vmatpush1.msra.mxu0 0.0
  %1728 = vmatprep.subr.mxu0 0.0
  %1729 = vmatpush1.msra.mxu0 0.0
  %1730 = vmatprep.subr.mxu0 0.0
  %1731 = vmatpush1.msra.mxu0 0.0
  %1732 = vmatprep.subr.mxu0 0.0
  %1733 = vmatpush1.msra.mxu0 0.0
  %1734 = vmatprep.subr.mxu0 0.0
  %1735 = vmatpush1.msra.mxu0 0.0
  %1736 = vmatprep.subr.mxu0 0.0
  %1737 = vmatpush1.msra.mxu0 0.0
  %1738 = vmatprep.subr.mxu0 0.0
  %1739 = vmatpush1.msra.mxu0 0.0
  %1740 = vmatprep.subr.mxu0 0.0
  %1741 = vmatpush1.msra.mxu0 0.0
  %1742 = vmatprep.subr.mxu0 0.0
  %1743 = vmatpush1.msra.mxu0 0.0
  %1744 = vmatprep.subr.mxu0 0.0
  %1745 = vmatpush1.msra.mxu0 0.0
  %1746 = vmatprep.subr.mxu0 0.0
  %1747 = vmatpush1.msra.mxu0 0.0
  %1748 = vmatprep.subr.mxu0 0.0
  %1749 = vmatpush1.msra.mxu0 0.0
  %1750 = vmatprep.subr.mxu0 0.0
  %1751 = vmatpush1.msra.mxu0 0.0
  %1752 = vmatprep.subr.mxu0 0.0
  %1753 = vmatpush1.msra.mxu0 0.0
  %1754 = vmatprep.mubr.f32.mxu0 0.0
  %1755 = vmatmul.mubr.f32.gmra.mrb[0].mxu0 %v1688
  %v1756 = vpop.f32.mrb[0].mxu0
  %v1757 = vadd.f32 0.0, %v1756
  %v1758 = vpop.f32.mrb[0].mxu0
  %1759 = vdwg.mxu0
  %v1760 = vadd.f32 %v1430, %v1757
  %v1761 = vadd.f32 %v1760, %v42
  %v1762 = vxor.u32 %v1761, 2147483648
  %v1763 = vmul.f32 %v1762, 1.442695
  %v1764 = vpow.pop %v1763
  %v1765 = vadd.f32 %v1764, 1.0
  %v1766 = vrcp.pop %v1765
  %v1767 = vmul.f32 1.0, %v1766
  %v1768 = vmul.f32 %v1767, %v1345
  %v1769 = vmul.f32 %v1767, 2.0
  %v1770 = vsub.f32 %v1769, 1.0
  %1772 = vrot.lane.b32.xlu0 %v1770, 64
  %v1773 = vpop.permute.xlu0 %1772
  %v1775 = vmul.f32 %v1767, %v1773
  %1777 = vrot.lane.b32.xlu0 %v1775, 32
  %v1778 = vpop.permute.xlu0 %1777
  %v1780 = vadd.f32 %v1768, %v1778
  %v1781 = vtanh.pop %v1780
  %1783 = vrot.lane.b32.xlu0 %v1781, 64
  %v1784 = vpop.permute.xlu0 %1783
  %v1786 = vmul.f32 %v1767, %v1784
  %1789 = vrot.lane.b32.xlu0 %v1786, 64
  %v1790 = vpop.permute.xlu0 %1789
  %v1792 = vsel %vm382, %v1687, %v1790
  %v1794 = vsel %vm44, %v1792, 0
  %1796 = vmatprep.subr.mxu0 %v18
  %1797 = vmatpush1.msra.mxu0 %v17
  %1798 = vmatprep.subr.mxu0 %v20
  %1799 = vmatpush1.msra.mxu0 %v19
  %1800 = vmatprep.subr.mxu0 %v22
  %1801 = vmatpush1.msra.mxu0 %v21
  %1802 = vmatprep.subr.mxu0 %v24
  %1803 = vmatpush1.msra.mxu0 %v23
  %1804 = vmatprep.subr.mxu0 %v26
  %1805 = vmatpush1.msra.mxu0 %v25
  %1806 = vmatprep.subr.mxu0 %v28
  %1807 = vmatpush1.msra.mxu0 %v27
  %1808 = vmatprep.subr.mxu0 %v30
  %1809 = vmatpush1.msra.mxu0 %v29
  %1810 = vmatprep.subr.mxu0 %v32
  %1811 = vmatpush1.msra.mxu0 %v31
  %1812 = vmatprep.subr.mxu0 0.0
  %1813 = vmatpush1.msra.mxu0 0.0
  %1814 = vmatprep.subr.mxu0 0.0
  %1815 = vmatpush1.msra.mxu0 0.0
  %1816 = vmatprep.subr.mxu0 0.0
  %1817 = vmatpush1.msra.mxu0 0.0
  %1818 = vmatprep.subr.mxu0 0.0
  %1819 = vmatpush1.msra.mxu0 0.0
  %1820 = vmatprep.subr.mxu0 0.0
  %1821 = vmatpush1.msra.mxu0 0.0
  %1822 = vmatprep.subr.mxu0 0.0
  %1823 = vmatpush1.msra.mxu0 0.0
  %1824 = vmatprep.subr.mxu0 0.0
  %1825 = vmatpush1.msra.mxu0 0.0
  %1826 = vmatprep.subr.mxu0 0.0
  %1827 = vmatpush1.msra.mxu0 0.0
  %1828 = vmatprep.subr.mxu0 0.0
  %1829 = vmatpush1.msra.mxu0 0.0
  %1830 = vmatprep.subr.mxu0 0.0
  %1831 = vmatpush1.msra.mxu0 0.0
  %1832 = vmatprep.subr.mxu0 0.0
  %1833 = vmatpush1.msra.mxu0 0.0
  %1834 = vmatprep.subr.mxu0 0.0
  %1835 = vmatpush1.msra.mxu0 0.0
  %1836 = vmatprep.subr.mxu0 0.0
  %1837 = vmatpush1.msra.mxu0 0.0
  %1838 = vmatprep.subr.mxu0 0.0
  %1839 = vmatpush1.msra.mxu0 0.0
  %1840 = vmatprep.subr.mxu0 0.0
  %1841 = vmatpush1.msra.mxu0 0.0
  %1842 = vmatprep.subr.mxu0 0.0
  %1843 = vmatpush1.msra.mxu0 0.0
  %1844 = vmatprep.subr.mxu0 0.0
  %1845 = vmatpush1.msra.mxu0 0.0
  %1846 = vmatprep.subr.mxu0 0.0
  %1847 = vmatpush1.msra.mxu0 0.0
  %1848 = vmatprep.subr.mxu0 0.0
  %1849 = vmatpush1.msra.mxu0 0.0
  %1850 = vmatprep.subr.mxu0 0.0
  %1851 = vmatpush1.msra.mxu0 0.0
  %1852 = vmatprep.subr.mxu0 0.0
  %1853 = vmatpush1.msra.mxu0 0.0
  %1854 = vmatprep.subr.mxu0 0.0
  %1855 = vmatpush1.msra.mxu0 0.0
  %1856 = vmatprep.subr.mxu0 0.0
  %1857 = vmatpush1.msra.mxu0 0.0
  %1858 = vmatprep.subr.mxu0 0.0
  %1859 = vmatpush1.msra.mxu0 0.0
  %1860 = vmatprep.mubr.f32.mxu0 0.0
  %1861 = vmatmul.mubr.f32.gmra.mrb[0].mxu0 %v1794
  %v1862 = vpop.f32.mrb[0].mxu0
  %v1863 = vadd.f32 0.0, %v1862
  %v1864 = vpop.f32.mrb[0].mxu0
  %v1865 = vadd.f32 0.0, %v1864
  %1866 = vdwg.mxu0
  %v1867 = vld [vmem:[%s0 + $0x4] sm:$0x1]
  %v1868 = vld [vmem:[%s0 + $0x14] sm:$0x1]
  %v1869 = vld [vmem:[%s0 + $0x24] sm:$0x1]
  %v1870 = vld [vmem:[%s0 + $0x34] sm:$0x1]
  %v1871 = vld [vmem:[%s0 + $0x44] sm:$0x1]
  %v1872 = vld [vmem:[%s0 + $0x54] sm:$0x1]
  %v1873 = vld [vmem:[%s0 + $0x64] sm:$0x1]
  %v1874 = vld [vmem:[%s0 + $0x74] sm:$0x1]
  %v1876 = vrot.slane %v1863, 1
  %v1877 = vrot.slane %v1863, 2
  %v1878 = vrot.slane %v1863, 3
  %v1879 = vrot.slane %v1863, 4
  %v1880 = vrot.slane %v1863, 5
  %v1881 = vrot.slane %v1863, 6
  %v1882 = vrot.slane %v1863, 7
  %v1891 = vadd.f32 %v1867, %v1863
  %v1892 = vadd.f32 %v1868, %v1876
  %v1893 = vadd.f32 %v1869, %v1877
  %v1894 = vadd.f32 %v1870, %v1878
  %v1895 = vadd.f32 %v1871, %v1879
  %v1896 = vadd.f32 %v1872, %v1880
  %v1897 = vadd.f32 %v1873, %v1881
  %v1898 = vadd.f32 %v1874, %v1882
  %v1899 = vxor.u32 %v1891, 2147483648
  %v1900 = vxor.u32 %v1892, 2147483648
  %v1901 = vxor.u32 %v1893, 2147483648
  %v1902 = vxor.u32 %v1894, 2147483648
  %v1903 = vxor.u32 %v1895, 2147483648
  %v1904 = vxor.u32 %v1896, 2147483648
  %v1905 = vxor.u32 %v1897, 2147483648
  %v1906 = vxor.u32 %v1898, 2147483648
  %v1907 = vmul.f32 %v1899, 1.442695
  %v1908 = vpow.pop %v1907
  %v1909 = vmul.f32 %v1900, 1.442695
  %v1910 = vpow.pop %v1909
  %v1911 = vmul.f32 %v1901, 1.442695
  %v1912 = vpow.pop %v1911
  %v1913 = vmul.f32 %v1902, 1.442695
  %v1914 = vpow.pop %v1913
  %v1915 = vmul.f32 %v1903, 1.442695
  %v1916 = vpow.pop %v1915
  %v1917 = vmul.f32 %v1904, 1.442695
  %v1918 = vpow.pop %v1917
  %v1919 = vmul.f32 %v1905, 1.442695
  %v1920 = vpow.pop %v1919
  %v1921 = vmul.f32 %v1906, 1.442695
  %v1922 = vpow.pop %v1921
  %v1923 = vadd.f32 %v1908, 1.0
  %v1924 = vadd.f32 %v1910, 1.0
  %v1925 = vadd.f32 %v1912, 1.0
  %v1926 = vadd.f32 %v1914, 1.0
  %v1927 = vadd.f32 %v1916, 1.0
  %v1928 = vadd.f32 %v1918, 1.0
  %v1929 = vadd.f32 %v1920, 1.0
  %v1930 = vadd.f32 %v1922, 1.0
  %v1931 = vrcp.pop %v1923
  %v1932 = vmul.f32 1.0, %v1931
  %v1933 = vrcp.pop %v1924
  %v1934 = vmul.f32 1.0, %v1933
  %v1935 = vrcp.pop %v1925
  %v1936 = vmul.f32 1.0, %v1935
  %v1937 = vrcp.pop %v1926
  %v1938 = vmul.f32 1.0, %v1937
  %v1939 = vrcp.pop %v1927
  %v1940 = vmul.f32 1.0, %v1939
  %v1941 = vrcp.pop %v1928
  %v1942 = vmul.f32 1.0, %v1941
  %v1943 = vrcp.pop %v1929
  %v1944 = vmul.f32 1.0, %v1943
  %v1945 = vrcp.pop %v1930
  %v1946 = vmul.f32 1.0, %v1945
  %v1947 = vmul.f32 %v1932, %v1608
  %v1948 = vmul.f32 %v1934, %v1609
  %v1949 = vmul.f32 %v1936, %v1610
  %v1950 = vmul.f32 %v1938, %v1611
  %v1951 = vmul.f32 %v1940, %v1612
  %v1952 = vmul.f32 %v1942, %v1613
  %v1953 = vmul.f32 %v1944, %v1614
  %v1954 = vmul.f32 %v1946, %v1615
  %v1955 = vmul.f32 %v1932, 2.0
  %v1956 = vmul.f32 %v1934, 2.0
  %v1957 = vmul.f32 %v1936, 2.0
  %v1958 = vmul.f32 %v1938, 2.0
  %v1959 = vmul.f32 %v1940, 2.0
  %v1960 = vmul.f32 %v1942, 2.0
  %v1961 = vmul.f32 %v1944, 2.0
  %v1962 = vmul.f32 %v1946, 2.0
  %v1963 = vsub.f32 %v1955, 1.0
  %v1964 = vsub.f32 %v1956, 1.0
  %v1965 = vsub.f32 %v1957, 1.0
  %v1966 = vsub.f32 %v1958, 1.0
  %v1967 = vsub.f32 %v1959, 1.0
  %v1968 = vsub.f32 %v1960, 1.0
  %v1969 = vsub.f32 %v1961, 1.0
  %v1970 = vsub.f32 %v1962, 1.0
  %1979 = vrot.lane.b32.xlu0 %v1963, 64
  %v1980 = vpop.permute.xlu0 %1979
  %1981 = vrot.lane.b32.xlu0 %v1964, 64
  %v1982 = vpop.permute.xlu0 %1981
  %1983 = vrot.lane.b32.xlu0 %v1965, 64
  %v1984 = vpop.permute.xlu0 %1983
  %1985 = vrot.lane.b32.xlu0 %v1966, 64
  %v1986 = vpop.permute.xlu0 %1985
  %1987 = vrot.lane.b32.xlu0 %v1967, 64
  %v1988 = vpop.permute.xlu0 %1987
  %1989 = vrot.lane.b32.xlu0 %v1968, 64
  %v1990 = vpop.permute.xlu0 %1989
  %1991 = vrot.lane.b32.xlu0 %v1969, 64
  %v1992 = vpop.permute.xlu0 %1991
  %1993 = vrot.lane.b32.xlu0 %v1970, 64
  %v1994 = vpop.permute.xlu0 %1993
  %v2003 = vmul.f32 %v1932, %v1980
  %v2004 = vmul.f32 %v1934, %v1982
  %v2005 = vmul.f32 %v1936, %v1984
  %v2006 = vmul.f32 %v1938, %v1986
  %v2007 = vmul.f32 %v1940, %v1988
  %v2008 = vmul.f32 %v1942, %v1990
  %v2009 = vmul.f32 %v1944, %v1992
  %v2010 = vmul.f32 %v1946, %v1994
  %2019 = vrot.lane.b32.xlu0 %v2003, 32
  %v2020 = vpop.permute.xlu0 %2019
  %2021 = vrot.lane.b32.xlu0 %v2004, 32
  %v2022 = vpop.permute.xlu0 %2021
  %2023 = vrot.lane.b32.xlu0 %v2005, 32
  %v2024 = vpop.permute.xlu0 %2023
  %2025 = vrot.lane.b32.xlu0 %v2006, 32
  %v2026 = vpop.permute.xlu0 %2025
  %2027 = vrot.lane.b32.xlu0 %v2007, 32
  %v2028 = vpop.permute.xlu0 %2027
  %2029 = vrot.lane.b32.xlu0 %v2008, 32
  %v2030 = vpop.permute.xlu0 %2029
  %2031 = vrot.lane.b32.xlu0 %v2009, 32
  %v2032 = vpop.permute.xlu0 %2031
  %2033 = vrot.lane.b32.xlu0 %v2010, 32
  %v2034 = vpop.permute.xlu0 %2033
  %v2043 = vadd.f32 %v1947, %v2020
  %v2044 = vadd.f32 %v1948, %v2022
  %v2045 = vadd.f32 %v1949, %v2024
  %v2046 = vadd.f32 %v1950, %v2026
  %v2047 = vadd.f32 %v1951, %v2028
  %v2048 = vadd.f32 %v1952, %v2030
  %v2049 = vadd.f32 %v1953, %v2032
  %v2050 = vadd.f32 %v1954, %v2034
  %v2051 = vtanh.pop %v2043
  %v2052 = vtanh.pop %v2044
  %v2053 = vtanh.pop %v2045
  %v2054 = vtanh.pop %v2046
  %v2055 = vtanh.pop %v2047
  %v2056 = vtanh.pop %v2048
  %v2057 = vtanh.pop %v2049
  %v2058 = vtanh.pop %v2050
  %2067 = vrot.lane.b32.xlu0 %v2051, 64
  %v2068 = vpop.permute.xlu0 %2067
  %2069 = vrot.lane.b32.xlu0 %v2052, 64
  %v2070 = vpop.permute.xlu0 %2069
  %2071 = vrot.lane.b32.xlu0 %v2053, 64
  %v2072 = vpop.permute.xlu0 %2071
  %2073 = vrot.lane.b32.xlu0 %v2054, 64
  %v2074 = vpop.permute.xlu0 %2073
  %2075 = vrot.lane.b32.xlu0 %v2055, 64
  %v2076 = vpop.permute.xlu0 %2075
  %2077 = vrot.lane.b32.xlu0 %v2056, 64
  %v2078 = vpop.permute.xlu0 %2077
  %2079 = vrot.lane.b32.xlu0 %v2057, 64
  %v2080 = vpop.permute.xlu0 %2079
  %2081 = vrot.lane.b32.xlu0 %v2058, 64
  %v2082 = vpop.permute.xlu0 %2081
  %v2091 = vmul.f32 %v1932, %v2068
  %v2092 = vmul.f32 %v1934, %v2070
  %v2093 = vmul.f32 %v1936, %v2072
  %v2094 = vmul.f32 %v1938, %v2074
  %v2095 = vmul.f32 %v1940, %v2076
  %v2096 = vmul.f32 %v1942, %v2078
  %v2097 = vmul.f32 %v1944, %v2080
  %v2098 = vmul.f32 %v1946, %v2082
  %v2107 = vrot.slane %v2092, 7
  %v2108 = vsel %vm360, %v2107, %v2091
  %v2109 = vrot.slane %v2093, 6
  %v2110 = vsel %vm363, %v2109, %v2108
  %v2111 = vrot.slane %v2094, 5
  %v2112 = vsel %vm366, %v2111, %v2110
  %v2113 = vrot.slane %v2095, 4
  %v2114 = vsel %vm369, %v2113, %v2112
  %v2115 = vrot.slane %v2096, 3
  %v2116 = vsel %vm372, %v2115, %v2114
  %v2117 = vrot.slane %v2097, 2
  %v2118 = vsel %vm375, %v2117, %v2116
  %v2119 = vrot.slane %v2098, 1
  %v2120 = vsel %vm378, %v2119, %v2118
  %2121 = vrot.lane.b32.xlu0 %v2120, 32
  %v2122 = vpop.permute.xlu0 %2121
  %v2123 = vsel %vm382, %v2122, 0
  %2125 = vmatprep.subr.mxu0 0.0
  %2126 = vmatpush1.msra.mxu0 %v33
  %2127 = vmatprep.subr.mxu0 0.0
  %2128 = vmatpush1.msra.mxu0 %v34
  %2129 = vmatprep.subr.mxu0 0.0
  %2130 = vmatpush1.msra.mxu0 %v35
  %2131 = vmatprep.subr.mxu0 0.0
  %2132 = vmatpush1.msra.mxu0 %v36
  %2133 = vmatprep.subr.mxu0 0.0
  %2134 = vmatpush1.msra.mxu0 0.0
  %2135 = vmatprep.subr.mxu0 0.0
  %2136 = vmatpush1.msra.mxu0 0.0
  %2137 = vmatprep.subr.mxu0 0.0
  %2138 = vmatpush1.msra.mxu0 0.0
  %2139 = vmatprep.subr.mxu0 0.0
  %2140 = vmatpush1.msra.mxu0 0.0
  %2141 = vmatprep.subr.mxu0 0.0
  %2142 = vmatpush1.msra.mxu0 0.0
  %2143 = vmatprep.subr.mxu0 0.0
  %2144 = vmatpush1.msra.mxu0 0.0
  %2145 = vmatprep.subr.mxu0 0.0
  %2146 = vmatpush1.msra.mxu0 0.0
  %2147 = vmatprep.subr.mxu0 0.0
  %2148 = vmatpush1.msra.mxu0 0.0
  %2149 = vmatprep.subr.mxu0 0.0
  %2150 = vmatpush1.msra.mxu0 0.0
  %2151 = vmatprep.subr.mxu0 0.0
  %2152 = vmatpush1.msra.mxu0 0.0
  %2153 = vmatprep.subr.mxu0 0.0
  %2154 = vmatpush1.msra.mxu0 0.0
  %2155 = vmatprep.subr.mxu0 0.0
  %2156 = vmatpush1.msra.mxu0 0.0
  %2157 = vmatprep.subr.mxu0 0.0
  %2158 = vmatpush1.msra.mxu0 0.0
  %2159 = vmatprep.subr.mxu0 0.0
  %2160 = vmatpush1.msra.mxu0 0.0
  %2161 = vmatprep.subr.mxu0 0.0
  %2162 = vmatpush1.msra.mxu0 0.0
  %2163 = vmatprep.subr.mxu0 0.0
  %2164 = vmatpush1.msra.mxu0 0.0
  %2165 = vmatprep.subr.mxu0 0.0
  %2166 = vmatpush1.msra.mxu0 0.0
  %2167 = vmatprep.subr.mxu0 0.0
  %2168 = vmatpush1.msra.mxu0 0.0
  %2169 = vmatprep.subr.mxu0 0.0
  %2170 = vmatpush1.msra.mxu0 0.0
  %2171 = vmatprep.subr.mxu0 0.0
  %2172 = vmatpush1.msra.mxu0 0.0
  %2173 = vmatprep.subr.mxu0 0.0
  %2174 = vmatpush1.msra.mxu0 0.0
  %2175 = vmatprep.subr.mxu0 0.0
  %2176 = vmatpush1.msra.mxu0 0.0
  %2177 = vmatprep.subr.mxu0 0.0
  %2178 = vmatpush1.msra.mxu0 0.0
  %2179 = vmatprep.subr.mxu0 0.0
  %2180 = vmatpush1.msra.mxu0 0.0
  %2181 = vmatprep.subr.mxu0 0.0
  %2182 = vmatpush1.msra.mxu0 0.0
  %2183 = vmatprep.subr.mxu0 0.0
  %2184 = vmatpush1.msra.mxu0 0.0
  %2185 = vmatprep.subr.mxu0 0.0
  %2186 = vmatpush1.msra.mxu0 0.0
  %2187 = vmatprep.subr.mxu0 0.0
  %2188 = vmatpush1.msra.mxu0 0.0
  %2189 = vmatprep.mubr.f32.mxu0 0.0
  %2190 = vmatmul.mubr.f32.gmra.mrb[0].mxu0 %v2123
  %v2191 = vpop.f32.mrb[0].mxu0
  %v2192 = vadd.f32 0.0, %v2191
  %v2193 = vpop.f32.mrb[0].mxu0
  %2194 = vdwg.mxu0
  %v2195 = vadd.f32 %v1865, %v2192
  %v2196 = vadd.f32 %v2195, %v42
  %v2197 = vxor.u32 %v2196, 2147483648
  %v2198 = vmul.f32 %v2197, 1.442695
  %v2199 = vpow.pop %v2198
  %v2200 = vadd.f32 %v2199, 1.0
  %v2201 = vrcp.pop %v2200
  %v2202 = vmul.f32 1.0, %v2201
  %v2203 = vmul.f32 %v2202, %v1780
  %v2204 = vmul.f32 %v2202, 2.0
  %v2205 = vsub.f32 %v2204, 1.0
  %2207 = vrot.lane.b32.xlu0 %v2205, 64
  %v2208 = vpop.permute.xlu0 %2207
  %v2210 = vmul.f32 %v2202, %v2208
  %2212 = vrot.lane.b32.xlu0 %v2210, 32
  %v2213 = vpop.permute.xlu0 %2212
  %v2215 = vadd.f32 %v2203, %v2213
  %v2216 = vtanh.pop %v2215
  %2218 = vrot.lane.b32.xlu0 %v2216, 64
  %v2219 = vpop.permute.xlu0 %2218
  %v2221 = vmul.f32 %v2202, %v2219
  %2224 = vrot.lane.b32.xlu0 %v2221, 64
  %v2225 = vpop.permute.xlu0 %2224
  %v2227 = vsel %vm382, %v2122, %v2225
  %v2229 = vsel %vm44, %v2227, 0
  %2231 = vmatprep.subr.mxu0 %v18
  %2232 = vmatpush1.msra.mxu0 %v17
  %2233 = vmatprep.subr.mxu0 %v20
  %2234 = vmatpush1.msra.mxu0 %v19
  %2235 = vmatprep.subr.mxu0 %v22
  %2236 = vmatpush1.msra.mxu0 %v21
  %2237 = vmatprep.subr.mxu0 %v24
  %2238 = vmatpush1.msra.mxu0 %v23
  %2239 = vmatprep.subr.mxu0 %v26
  %2240 = vmatpush1.msra.mxu0 %v25
  %2241 = vmatprep.subr.mxu0 %v28
  %2242 = vmatpush1.msra.mxu0 %v27
  %2243 = vmatprep.subr.mxu0 %v30
  %2244 = vmatpush1.msra.mxu0 %v29
  %2245 = vmatprep.subr.mxu0 %v32
  %2246 = vmatpush1.msra.mxu0 %v31
  %2247 = vmatprep.subr.mxu0 0.0
  %2248 = vmatpush1.msra.mxu0 0.0
  %2249 = vmatprep.subr.mxu0 0.0
  %2250 = vmatpush1.msra.mxu0 0.0
  %2251 = vmatprep.subr.mxu0 0.0
  %2252 = vmatpush1.msra.mxu0 0.0
  %2253 = vmatprep.subr.mxu0 0.0
  %2254 = vmatpush1.msra.mxu0 0.0
  %2255 = vmatprep.subr.mxu0 0.0
  %2256 = vmatpush1.msra.mxu0 0.0
  %2257 = vmatprep.subr.mxu0 0.0
  %2258 = vmatpush1.msra.mxu0 0.0
  %2259 = vmatprep.subr.mxu0 0.0
  %2260 = vmatpush1.msra.mxu0 0.0
  %2261 = vmatprep.subr.mxu0 0.0
  %2262 = vmatpush1.msra.mxu0 0.0
  %2263 = vmatprep.subr.mxu0 0.0
  %2264 = vmatpush1.msra.mxu0 0.0
  %2265 = vmatprep.subr.mxu0 0.0
  %2266 = vmatpush1.msra.mxu0 0.0
  %2267 = vmatprep.subr.mxu0 0.0
  %2268 = vmatpush1.msra.mxu0 0.0
  %2269 = vmatprep.subr.mxu0 0.0
  %2270 = vmatpush1.msra.mxu0 0.0
  %2271 = vmatprep.subr.mxu0 0.0
  %2272 = vmatpush1.msra.mxu0 0.0
  %2273 = vmatprep.subr.mxu0 0.0
  %2274 = vmatpush1.msra.mxu0 0.0
  %2275 = vmatprep.subr.mxu0 0.0
  %2276 = vmatpush1.msra.mxu0 0.0
  %2277 = vmatprep.subr.mxu0 0.0
  %2278 = vmatpush1.msra.mxu0 0.0
  %2279 = vmatprep.subr.mxu0 0.0
  %2280 = vmatpush1.msra.mxu0 0.0
  %2281 = vmatprep.subr.mxu0 0.0
  %2282 = vmatpush1.msra.mxu0 0.0
  %2283 = vmatprep.subr.mxu0 0.0
  %2284 = vmatpush1.msra.mxu0 0.0
  %2285 = vmatprep.subr.mxu0 0.0
  %2286 = vmatpush1.msra.mxu0 0.0
  %2287 = vmatprep.subr.mxu0 0.0
  %2288 = vmatpush1.msra.mxu0 0.0
  %2289 = vmatprep.subr.mxu0 0.0
  %2290 = vmatpush1.msra.mxu0 0.0
  %2291 = vmatprep.subr.mxu0 0.0
  %2292 = vmatpush1.msra.mxu0 0.0
  %2293 = vmatprep.subr.mxu0 0.0
  %2294 = vmatpush1.msra.mxu0 0.0
  %2295 = vmatprep.mubr.f32.mxu0 0.0
  %2296 = vmatmul.mubr.f32.gmra.mrb[0].mxu0 %v2229
  %v2297 = vpop.f32.mrb[0].mxu0
  %v2298 = vadd.f32 0.0, %v2297
  %v2299 = vpop.f32.mrb[0].mxu0
  %v2300 = vadd.f32 0.0, %v2299
  %2301 = vdwg.mxu0
  %v2302 = vld [vmem:[%s0 + $0x5] sm:$0x1]
  %v2303 = vld [vmem:[%s0 + $0x15] sm:$0x1]
  %v2304 = vld [vmem:[%s0 + $0x25] sm:$0x1]
  %v2305 = vld [vmem:[%s0 + $0x35] sm:$0x1]
  %v2306 = vld [vmem:[%s0 + $0x45] sm:$0x1]
  %v2307 = vld [vmem:[%s0 + $0x55] sm:$0x1]
  %v2308 = vld [vmem:[%s0 + $0x65] sm:$0x1]
  %v2309 = vld [vmem:[%s0 + $0x75] sm:$0x1]
  %v2311 = vrot.slane %v2298, 1
  %v2312 = vrot.slane %v2298, 2
  %v2313 = vrot.slane %v2298, 3
  %v2314 = vrot.slane %v2298, 4
  %v2315 = vrot.slane %v2298, 5
  %v2316 = vrot.slane %v2298, 6
  %v2317 = vrot.slane %v2298, 7
  %v2326 = vadd.f32 %v2302, %v2298
  %v2327 = vadd.f32 %v2303, %v2311
  %v2328 = vadd.f32 %v2304, %v2312
  %v2329 = vadd.f32 %v2305, %v2313
  %v2330 = vadd.f32 %v2306, %v2314
  %v2331 = vadd.f32 %v2307, %v2315
  %v2332 = vadd.f32 %v2308, %v2316
  %v2333 = vadd.f32 %v2309, %v2317
  %v2334 = vxor.u32 %v2326, 2147483648
  %v2335 = vxor.u32 %v2327, 2147483648
  %v2336 = vxor.u32 %v2328, 2147483648
  %v2337 = vxor.u32 %v2329, 2147483648
  %v2338 = vxor.u32 %v2330, 2147483648
  %v2339 = vxor.u32 %v2331, 2147483648
  %v2340 = vxor.u32 %v2332, 2147483648
  %v2341 = vxor.u32 %v2333, 2147483648
  %v2342 = vmul.f32 %v2334, 1.442695
  %v2343 = vpow.pop %v2342
  %v2344 = vmul.f32 %v2335, 1.442695
  %v2345 = vpow.pop %v2344
  %v2346 = vmul.f32 %v2336, 1.442695
  %v2347 = vpow.pop %v2346
  %v2348 = vmul.f32 %v2337, 1.442695
  %v2349 = vpow.pop %v2348
  %v2350 = vmul.f32 %v2338, 1.442695
  %v2351 = vpow.pop %v2350
  %v2352 = vmul.f32 %v2339, 1.442695
  %v2353 = vpow.pop %v2352
  %v2354 = vmul.f32 %v2340, 1.442695
  %v2355 = vpow.pop %v2354
  %v2356 = vmul.f32 %v2341, 1.442695
  %v2357 = vpow.pop %v2356
  %v2358 = vadd.f32 %v2343, 1.0
  %v2359 = vadd.f32 %v2345, 1.0
  %v2360 = vadd.f32 %v2347, 1.0
  %v2361 = vadd.f32 %v2349, 1.0
  %v2362 = vadd.f32 %v2351, 1.0
  %v2363 = vadd.f32 %v2353, 1.0
  %v2364 = vadd.f32 %v2355, 1.0
  %v2365 = vadd.f32 %v2357, 1.0
  %v2366 = vrcp.pop %v2358
  %v2367 = vmul.f32 1.0, %v2366
  %v2368 = vrcp.pop %v2359
  %v2369 = vmul.f32 1.0, %v2368
  %v2370 = vrcp.pop %v2360
  %v2371 = vmul.f32 1.0, %v2370
  %v2372 = vrcp.pop %v2361
  %v2373 = vmul.f32 1.0, %v2372
  %v2374 = vrcp.pop %v2362
  %v2375 = vmul.f32 1.0, %v2374
  %v2376 = vrcp.pop %v2363
  %v2377 = vmul.f32 1.0, %v2376
  %v2378 = vrcp.pop %v2364
  %v2379 = vmul.f32 1.0, %v2378
  %v2380 = vrcp.pop %v2365
  %v2381 = vmul.f32 1.0, %v2380
  %v2382 = vmul.f32 %v2367, %v2043
  %v2383 = vmul.f32 %v2369, %v2044
  %v2384 = vmul.f32 %v2371, %v2045
  %v2385 = vmul.f32 %v2373, %v2046
  %v2386 = vmul.f32 %v2375, %v2047
  %v2387 = vmul.f32 %v2377, %v2048
  %v2388 = vmul.f32 %v2379, %v2049
  %v2389 = vmul.f32 %v2381, %v2050
  %v2390 = vmul.f32 %v2367, 2.0
  %v2391 = vmul.f32 %v2369, 2.0
  %v2392 = vmul.f32 %v2371, 2.0
  %v2393 = vmul.f32 %v2373, 2.0
  %v2394 = vmul.f32 %v2375, 2.0
  %v2395 = vmul.f32 %v2377, 2.0
  %v2396 = vmul.f32 %v2379, 2.0
  %v2397 = vmul.f32 %v2381, 2.0
  %v2398 = vsub.f32 %v2390, 1.0
  %v2399 = vsub.f32 %v2391, 1.0
  %v2400 = vsub.f32 %v2392, 1.0
  %v2401 = vsub.f32 %v2393, 1.0
  %v2402 = vsub.f32 %v2394, 1.0
  %v2403 = vsub.f32 %v2395, 1.0
  %v2404 = vsub.f32 %v2396, 1.0
  %v2405 = vsub.f32 %v2397, 1.0
  %2414 = vrot.lane.b32.xlu0 %v2398, 64
  %v2415 = vpop.permute.xlu0 %2414
  %2416 = vrot.lane.b32.xlu0 %v2399, 64
  %v2417 = vpop.permute.xlu0 %2416
  %2418 = vrot.lane.b32.xlu0 %v2400, 64
  %v2419 = vpop.permute.xlu0 %2418
  %2420 = vrot.lane.b32.xlu0 %v2401, 64
  %v2421 = vpop.permute.xlu0 %2420
  %2422 = vrot.lane.b32.xlu0 %v2402, 64
  %v2423 = vpop.permute.xlu0 %2422
  %2424 = vrot.lane.b32.xlu0 %v2403, 64
  %v2425 = vpop.permute.xlu0 %2424
  %2426 = vrot.lane.b32.xlu0 %v2404, 64
  %v2427 = vpop.permute.xlu0 %2426
  %2428 = vrot.lane.b32.xlu0 %v2405, 64
  %v2429 = vpop.permute.xlu0 %2428
  %v2438 = vmul.f32 %v2367, %v2415
  %v2439 = vmul.f32 %v2369, %v2417
  %v2440 = vmul.f32 %v2371, %v2419
  %v2441 = vmul.f32 %v2373, %v2421
  %v2442 = vmul.f32 %v2375, %v2423
  %v2443 = vmul.f32 %v2377, %v2425
  %v2444 = vmul.f32 %v2379, %v2427
  %v2445 = vmul.f32 %v2381, %v2429
  %2454 = vrot.lane.b32.xlu0 %v2438, 32
  %v2455 = vpop.permute.xlu0 %2454
  %2456 = vrot.lane.b32.xlu0 %v2439, 32
  %v2457 = vpop.permute.xlu0 %2456
  %2458 = vrot.lane.b32.xlu0 %v2440, 32
  %v2459 = vpop.permute.xlu0 %2458
  %2460 = vrot.lane.b32.xlu0 %v2441, 32
  %v2461 = vpop.permute.xlu0 %2460
  %2462 = vrot.lane.b32.xlu0 %v2442, 32
  %v2463 = vpop.permute.xlu0 %2462
  %2464 = vrot.lane.b32.xlu0 %v2443, 32
  %v2465 = vpop.permute.xlu0 %2464
  %2466 = vrot.lane.b32.xlu0 %v2444, 32
  %v2467 = vpop.permute.xlu0 %2466
  %2468 = vrot.lane.b32.xlu0 %v2445, 32
  %v2469 = vpop.permute.xlu0 %2468
  %v2478 = vadd.f32 %v2382, %v2455
  %v2479 = vadd.f32 %v2383, %v2457
  %v2480 = vadd.f32 %v2384, %v2459
  %v2481 = vadd.f32 %v2385, %v2461
  %v2482 = vadd.f32 %v2386, %v2463
  %v2483 = vadd.f32 %v2387, %v2465
  %v2484 = vadd.f32 %v2388, %v2467
  %v2485 = vadd.f32 %v2389, %v2469
  %v2486 = vtanh.pop %v2478
  %v2487 = vtanh.pop %v2479
  %v2488 = vtanh.pop %v2480
  %v2489 = vtanh.pop %v2481
  %v2490 = vtanh.pop %v2482
  %v2491 = vtanh.pop %v2483
  %v2492 = vtanh.pop %v2484
  %v2493 = vtanh.pop %v2485
  %2502 = vrot.lane.b32.xlu0 %v2486, 64
  %v2503 = vpop.permute.xlu0 %2502
  %2504 = vrot.lane.b32.xlu0 %v2487, 64
  %v2505 = vpop.permute.xlu0 %2504
  %2506 = vrot.lane.b32.xlu0 %v2488, 64
  %v2507 = vpop.permute.xlu0 %2506
  %2508 = vrot.lane.b32.xlu0 %v2489, 64
  %v2509 = vpop.permute.xlu0 %2508
  %2510 = vrot.lane.b32.xlu0 %v2490, 64
  %v2511 = vpop.permute.xlu0 %2510
  %2512 = vrot.lane.b32.xlu0 %v2491, 64
  %v2513 = vpop.permute.xlu0 %2512
  %2514 = vrot.lane.b32.xlu0 %v2492, 64
  %v2515 = vpop.permute.xlu0 %2514
  %2516 = vrot.lane.b32.xlu0 %v2493, 64
  %v2517 = vpop.permute.xlu0 %2516
  %v2526 = vmul.f32 %v2367, %v2503
  %v2527 = vmul.f32 %v2369, %v2505
  %v2528 = vmul.f32 %v2371, %v2507
  %v2529 = vmul.f32 %v2373, %v2509
  %v2530 = vmul.f32 %v2375, %v2511
  %v2531 = vmul.f32 %v2377, %v2513
  %v2532 = vmul.f32 %v2379, %v2515
  %v2533 = vmul.f32 %v2381, %v2517
  %v2542 = vrot.slane %v2527, 7
  %v2543 = vsel %vm360, %v2542, %v2526
  %v2544 = vrot.slane %v2528, 6
  %v2545 = vsel %vm363, %v2544, %v2543
  %v2546 = vrot.slane %v2529, 5
  %v2547 = vsel %vm366, %v2546, %v2545
  %v2548 = vrot.slane %v2530, 4
  %v2549 = vsel %vm369, %v2548, %v2547
  %v2550 = vrot.slane %v2531, 3
  %v2551 = vsel %vm372, %v2550, %v2549
  %v2552 = vrot.slane %v2532, 2
  %v2553 = vsel %vm375, %v2552, %v2551
  %v2554 = vrot.slane %v2533, 1
  %v2555 = vsel %vm378, %v2554, %v2553
  %2556 = vrot.lane.b32.xlu0 %v2555, 32
  %v2557 = vpop.permute.xlu0 %2556
  %v2558 = vsel %vm382, %v2557, 0
  %2560 = vmatprep.subr.mxu0 0.0
  %2561 = vmatpush1.msra.mxu0 %v33
  %2562 = vmatprep.subr.mxu0 0.0
  %2563 = vmatpush1.msra.mxu0 %v34
  %2564 = vmatprep.subr.mxu0 0.0
  %2565 = vmatpush1.msra.mxu0 %v35
  %2566 = vmatprep.subr.mxu0 0.0
  %2567 = vmatpush1.msra.mxu0 %v36
  %2568 = vmatprep.subr.mxu0 0.0
  %2569 = vmatpush1.msra.mxu0 0.0
  %2570 = vmatprep.subr.mxu0 0.0
  %2571 = vmatpush1.msra.mxu0 0.0
  %2572 = vmatprep.subr.mxu0 0.0
  %2573 = vmatpush1.msra.mxu0 0.0
  %2574 = vmatprep.subr.mxu0 0.0
  %2575 = vmatpush1.msra.mxu0 0.0
  %2576 = vmatprep.subr.mxu0 0.0
  %2577 = vmatpush1.msra.mxu0 0.0
  %2578 = vmatprep.subr.mxu0 0.0
  %2579 = vmatpush1.msra.mxu0 0.0
  %2580 = vmatprep.subr.mxu0 0.0
  %2581 = vmatpush1.msra.mxu0 0.0
  %2582 = vmatprep.subr.mxu0 0.0
  %2583 = vmatpush1.msra.mxu0 0.0
  %2584 = vmatprep.subr.mxu0 0.0
  %2585 = vmatpush1.msra.mxu0 0.0
  %2586 = vmatprep.subr.mxu0 0.0
  %2587 = vmatpush1.msra.mxu0 0.0
  %2588 = vmatprep.subr.mxu0 0.0
  %2589 = vmatpush1.msra.mxu0 0.0
  %2590 = vmatprep.subr.mxu0 0.0
  %2591 = vmatpush1.msra.mxu0 0.0
  %2592 = vmatprep.subr.mxu0 0.0
  %2593 = vmatpush1.msra.mxu0 0.0
  %2594 = vmatprep.subr.mxu0 0.0
  %2595 = vmatpush1.msra.mxu0 0.0
  %2596 = vmatprep.subr.mxu0 0.0
  %2597 = vmatpush1.msra.mxu0 0.0
  %2598 = vmatprep.subr.mxu0 0.0
  %2599 = vmatpush1.msra.mxu0 0.0
  %2600 = vmatprep.subr.mxu0 0.0
  %2601 = vmatpush1.msra.mxu0 0.0
  %2602 = vmatprep.subr.mxu0 0.0
  %2603 = vmatpush1.msra.mxu0 0.0
  %2604 = vmatprep.subr.mxu0 0.0
  %2605 = vmatpush1.msra.mxu0 0.0
  %2606 = vmatprep.subr.mxu0 0.0
  %2607 = vmatpush1.msra.mxu0 0.0
  %2608 = vmatprep.subr.mxu0 0.0
  %2609 = vmatpush1.msra.mxu0 0.0
  %2610 = vmatprep.subr.mxu0 0.0
  %2611 = vmatpush1.msra.mxu0 0.0
  %2612 = vmatprep.subr.mxu0 0.0
  %2613 = vmatpush1.msra.mxu0 0.0
  %2614 = vmatprep.subr.mxu0 0.0
  %2615 = vmatpush1.msra.mxu0 0.0
  %2616 = vmatprep.subr.mxu0 0.0
  %2617 = vmatpush1.msra.mxu0 0.0
  %2618 = vmatprep.subr.mxu0 0.0
  %2619 = vmatpush1.msra.mxu0 0.0
  %2620 = vmatprep.subr.mxu0 0.0
  %2621 = vmatpush1.msra.mxu0 0.0
  %2622 = vmatprep.subr.mxu0 0.0
  %2623 = vmatpush1.msra.mxu0 0.0
  %2624 = vmatprep.mubr.f32.mxu0 0.0
  %2625 = vmatmul.mubr.f32.gmra.mrb[0].mxu0 %v2558
  %v2626 = vpop.f32.mrb[0].mxu0
  %v2627 = vadd.f32 0.0, %v2626
  %v2628 = vpop.f32.mrb[0].mxu0
  %2629 = vdwg.mxu0
  %v2630 = vadd.f32 %v2300, %v2627
  %v2631 = vadd.f32 %v2630, %v42
  %v2632 = vxor.u32 %v2631, 2147483648
  %v2633 = vmul.f32 %v2632, 1.442695
  %v2634 = vpow.pop %v2633
  %v2635 = vadd.f32 %v2634, 1.0
  %v2636 = vrcp.pop %v2635
  %v2637 = vmul.f32 1.0, %v2636
  %v2638 = vmul.f32 %v2637, %v2215
  %v2639 = vmul.f32 %v2637, 2.0
  %v2640 = vsub.f32 %v2639, 1.0
  %2642 = vrot.lane.b32.xlu0 %v2640, 64
  %v2643 = vpop.permute.xlu0 %2642
  %v2645 = vmul.f32 %v2637, %v2643
  %2647 = vrot.lane.b32.xlu0 %v2645, 32
  %v2648 = vpop.permute.xlu0 %2647
  %v2650 = vadd.f32 %v2638, %v2648
  %v2651 = vtanh.pop %v2650
  %2653 = vrot.lane.b32.xlu0 %v2651, 64
  %v2654 = vpop.permute.xlu0 %2653
  %v2656 = vmul.f32 %v2637, %v2654
  %2659 = vrot.lane.b32.xlu0 %v2656, 64
  %v2660 = vpop.permute.xlu0 %2659
  %v2662 = vsel %vm382, %v2557, %v2660
  %v2664 = vsel %vm44, %v2662, 0
  %2666 = vmatprep.subr.mxu0 %v18
  %2667 = vmatpush1.msra.mxu0 %v17
  %2668 = vmatprep.subr.mxu0 %v20
  %2669 = vmatpush1.msra.mxu0 %v19
  %2670 = vmatprep.subr.mxu0 %v22
  %2671 = vmatpush1.msra.mxu0 %v21
  %2672 = vmatprep.subr.mxu0 %v24
  %2673 = vmatpush1.msra.mxu0 %v23
  %2674 = vmatprep.subr.mxu0 %v26
  %2675 = vmatpush1.msra.mxu0 %v25
  %2676 = vmatprep.subr.mxu0 %v28
  %2677 = vmatpush1.msra.mxu0 %v27
  %2678 = vmatprep.subr.mxu0 %v30
  %2679 = vmatpush1.msra.mxu0 %v29
  %2680 = vmatprep.subr.mxu0 %v32
  %2681 = vmatpush1.msra.mxu0 %v31
  %2682 = vmatprep.subr.mxu0 0.0
  %2683 = vmatpush1.msra.mxu0 0.0
  %2684 = vmatprep.subr.mxu0 0.0
  %2685 = vmatpush1.msra.mxu0 0.0
  %2686 = vmatprep.subr.mxu0 0.0
  %2687 = vmatpush1.msra.mxu0 0.0
  %2688 = vmatprep.subr.mxu0 0.0
  %2689 = vmatpush1.msra.mxu0 0.0
  %2690 = vmatprep.subr.mxu0 0.0
  %2691 = vmatpush1.msra.mxu0 0.0
  %2692 = vmatprep.subr.mxu0 0.0
  %2693 = vmatpush1.msra.mxu0 0.0
  %2694 = vmatprep.subr.mxu0 0.0
  %2695 = vmatpush1.msra.mxu0 0.0
  %2696 = vmatprep.subr.mxu0 0.0
  %2697 = vmatpush1.msra.mxu0 0.0
  %2698 = vmatprep.subr.mxu0 0.0
  %2699 = vmatpush1.msra.mxu0 0.0
  %2700 = vmatprep.subr.mxu0 0.0
  %2701 = vmatpush1.msra.mxu0 0.0
  %2702 = vmatprep.subr.mxu0 0.0
  %2703 = vmatpush1.msra.mxu0 0.0
  %2704 = vmatprep.subr.mxu0 0.0
  %2705 = vmatpush1.msra.mxu0 0.0
  %2706 = vmatprep.subr.mxu0 0.0
  %2707 = vmatpush1.msra.mxu0 0.0
  %2708 = vmatprep.subr.mxu0 0.0
  %2709 = vmatpush1.msra.mxu0 0.0
  %2710 = vmatprep.subr.mxu0 0.0
  %2711 = vmatpush1.msra.mxu0 0.0
  %2712 = vmatprep.subr.mxu0 0.0
  %2713 = vmatpush1.msra.mxu0 0.0
  %2714 = vmatprep.subr.mxu0 0.0
  %2715 = vmatpush1.msra.mxu0 0.0
  %2716 = vmatprep.subr.mxu0 0.0
  %2717 = vmatpush1.msra.mxu0 0.0
  %2718 = vmatprep.subr.mxu0 0.0
  %2719 = vmatpush1.msra.mxu0 0.0
  %2720 = vmatprep.subr.mxu0 0.0
  %2721 = vmatpush1.msra.mxu0 0.0
  %2722 = vmatprep.subr.mxu0 0.0
  %2723 = vmatpush1.msra.mxu0 0.0
  %2724 = vmatprep.subr.mxu0 0.0
  %2725 = vmatpush1.msra.mxu0 0.0
  %2726 = vmatprep.subr.mxu0 0.0
  %2727 = vmatpush1.msra.mxu0 0.0
  %2728 = vmatprep.subr.mxu0 0.0
  %2729 = vmatpush1.msra.mxu0 0.0
  %2730 = vmatprep.mubr.f32.mxu0 0.0
  %2731 = vmatmul.mubr.f32.gmra.mrb[0].mxu0 %v2664
  %v2732 = vpop.f32.mrb[0].mxu0
  %v2733 = vadd.f32 0.0, %v2732
  %v2734 = vpop.f32.mrb[0].mxu0
  %v2735 = vadd.f32 0.0, %v2734
  %2736 = vdwg.mxu0
  %v2737 = vld [vmem:[%s0 + $0x6] sm:$0x1]
  %v2738 = vld [vmem:[%s0 + $0x16] sm:$0x1]
  %v2739 = vld [vmem:[%s0 + $0x26] sm:$0x1]
  %v2740 = vld [vmem:[%s0 + $0x36] sm:$0x1]
  %v2741 = vld [vmem:[%s0 + $0x46] sm:$0x1]
  %v2742 = vld [vmem:[%s0 + $0x56] sm:$0x1]
  %v2743 = vld [vmem:[%s0 + $0x66] sm:$0x1]
  %v2744 = vld [vmem:[%s0 + $0x76] sm:$0x1]
  %v2746 = vrot.slane %v2733, 1
  %v2747 = vrot.slane %v2733, 2
  %v2748 = vrot.slane %v2733, 3
  %v2749 = vrot.slane %v2733, 4
  %v2750 = vrot.slane %v2733, 5
  %v2751 = vrot.slane %v2733, 6
  %v2752 = vrot.slane %v2733, 7
  %v2761 = vadd.f32 %v2737, %v2733
  %v2762 = vadd.f32 %v2738, %v2746
  %v2763 = vadd.f32 %v2739, %v2747
  %v2764 = vadd.f32 %v2740, %v2748
  %v2765 = vadd.f32 %v2741, %v2749
  %v2766 = vadd.f32 %v2742, %v2750
  %v2767 = vadd.f32 %v2743, %v2751
  %v2768 = vadd.f32 %v2744, %v2752
  %v2769 = vxor.u32 %v2761, 2147483648
  %v2770 = vxor.u32 %v2762, 2147483648
  %v2771 = vxor.u32 %v2763, 2147483648
  %v2772 = vxor.u32 %v2764, 2147483648
  %v2773 = vxor.u32 %v2765, 2147483648
  %v2774 = vxor.u32 %v2766, 2147483648
  %v2775 = vxor.u32 %v2767, 2147483648
  %v2776 = vxor.u32 %v2768, 2147483648
  %v2777 = vmul.f32 %v2769, 1.442695
  %v2778 = vpow.pop %v2777
  %v2779 = vmul.f32 %v2770, 1.442695
  %v2780 = vpow.pop %v2779
  %v2781 = vmul.f32 %v2771, 1.442695
  %v2782 = vpow.pop %v2781
  %v2783 = vmul.f32 %v2772, 1.442695
  %v2784 = vpow.pop %v2783
  %v2785 = vmul.f32 %v2773, 1.442695
  %v2786 = vpow.pop %v2785
  %v2787 = vmul.f32 %v2774, 1.442695
  %v2788 = vpow.pop %v2787
  %v2789 = vmul.f32 %v2775, 1.442695
  %v2790 = vpow.pop %v2789
  %v2791 = vmul.f32 %v2776, 1.442695
  %v2792 = vpow.pop %v2791
  %v2793 = vadd.f32 %v2778, 1.0
  %v2794 = vadd.f32 %v2780, 1.0
  %v2795 = vadd.f32 %v2782, 1.0
  %v2796 = vadd.f32 %v2784, 1.0
  %v2797 = vadd.f32 %v2786, 1.0
  %v2798 = vadd.f32 %v2788, 1.0
  %v2799 = vadd.f32 %v2790, 1.0
  %v2800 = vadd.f32 %v2792, 1.0
  %v2801 = vrcp.pop %v2793
  %v2802 = vmul.f32 1.0, %v2801
  %v2803 = vrcp.pop %v2794
  %v2804 = vmul.f32 1.0, %v2803
  %v2805 = vrcp.pop %v2795
  %v2806 = vmul.f32 1.0, %v2805
  %v2807 = vrcp.pop %v2796
  %v2808 = vmul.f32 1.0, %v2807
  %v2809 = vrcp.pop %v2797
  %v2810 = vmul.f32 1.0, %v2809
  %v2811 = vrcp.pop %v2798
  %v2812 = vmul.f32 1.0, %v2811
  %v2813 = vrcp.pop %v2799
  %v2814 = vmul.f32 1.0, %v2813
  %v2815 = vrcp.pop %v2800
  %v2816 = vmul.f32 1.0, %v2815
  %v2817 = vmul.f32 %v2802, %v2478
  %v2818 = vmul.f32 %v2804, %v2479
  %v2819 = vmul.f32 %v2806, %v2480
  %v2820 = vmul.f32 %v2808, %v2481
  %v2821 = vmul.f32 %v2810, %v2482
  %v2822 = vmul.f32 %v2812, %v2483
  %v2823 = vmul.f32 %v2814, %v2484
  %v2824 = vmul.f32 %v2816, %v2485
  %v2825 = vmul.f32 %v2802, 2.0
  %v2826 = vmul.f32 %v2804, 2.0
  %v2827 = vmul.f32 %v2806, 2.0
  %v2828 = vmul.f32 %v2808, 2.0
  %v2829 = vmul.f32 %v2810, 2.0
  %v2830 = vmul.f32 %v2812, 2.0
  %v2831 = vmul.f32 %v2814, 2.0
  %v2832 = vmul.f32 %v2816, 2.0
  %v2833 = vsub.f32 %v2825, 1.0
  %v2834 = vsub.f32 %v2826, 1.0
  %v2835 = vsub.f32 %v2827, 1.0
  %v2836 = vsub.f32 %v2828, 1.0
  %v2837 = vsub.f32 %v2829, 1.0
  %v2838 = vsub.f32 %v2830, 1.0
  %v2839 = vsub.f32 %v2831, 1.0
  %v2840 = vsub.f32 %v2832, 1.0
  %2849 = vrot.lane.b32.xlu0 %v2833, 64
  %v2850 = vpop.permute.xlu0 %2849
  %2851 = vrot.lane.b32.xlu0 %v2834, 64
  %v2852 = vpop.permute.xlu0 %2851
  %2853 = vrot.lane.b32.xlu0 %v2835, 64
  %v2854 = vpop.permute.xlu0 %2853
  %2855 = vrot.lane.b32.xlu0 %v2836, 64
  %v2856 = vpop.permute.xlu0 %2855
  %2857 = vrot.lane.b32.xlu0 %v2837, 64
  %v2858 = vpop.permute.xlu0 %2857
  %2859 = vrot.lane.b32.xlu0 %v2838, 64
  %v2860 = vpop.permute.xlu0 %2859
  %2861 = vrot.lane.b32.xlu0 %v2839, 64
  %v2862 = vpop.permute.xlu0 %2861
  %2863 = vrot.lane.b32.xlu0 %v2840, 64
  %v2864 = vpop.permute.xlu0 %2863
  %v2873 = vmul.f32 %v2802, %v2850
  %v2874 = vmul.f32 %v2804, %v2852
  %v2875 = vmul.f32 %v2806, %v2854
  %v2876 = vmul.f32 %v2808, %v2856
  %v2877 = vmul.f32 %v2810, %v2858
  %v2878 = vmul.f32 %v2812, %v2860
  %v2879 = vmul.f32 %v2814, %v2862
  %v2880 = vmul.f32 %v2816, %v2864
  %2889 = vrot.lane.b32.xlu0 %v2873, 32
  %v2890 = vpop.permute.xlu0 %2889
  %2891 = vrot.lane.b32.xlu0 %v2874, 32
  %v2892 = vpop.permute.xlu0 %2891
  %2893 = vrot.lane.b32.xlu0 %v2875, 32
  %v2894 = vpop.permute.xlu0 %2893
  %2895 = vrot.lane.b32.xlu0 %v2876, 32
  %v2896 = vpop.permute.xlu0 %2895
  %2897 = vrot.lane.b32.xlu0 %v2877, 32
  %v2898 = vpop.permute.xlu0 %2897
  %2899 = vrot.lane.b32.xlu0 %v2878, 32
  %v2900 = vpop.permute.xlu0 %2899
  %2901 = vrot.lane.b32.xlu0 %v2879, 32
  %v2902 = vpop.permute.xlu0 %2901
  %2903 = vrot.lane.b32.xlu0 %v2880, 32
  %v2904 = vpop.permute.xlu0 %2903
  %v2913 = vadd.f32 %v2817, %v2890
  %v2914 = vadd.f32 %v2818, %v2892
  %v2915 = vadd.f32 %v2819, %v2894
  %v2916 = vadd.f32 %v2820, %v2896
  %v2917 = vadd.f32 %v2821, %v2898
  %v2918 = vadd.f32 %v2822, %v2900
  %v2919 = vadd.f32 %v2823, %v2902
  %v2920 = vadd.f32 %v2824, %v2904
  %v2921 = vtanh.pop %v2913
  %v2922 = vtanh.pop %v2914
  %v2923 = vtanh.pop %v2915
  %v2924 = vtanh.pop %v2916
  %v2925 = vtanh.pop %v2917
  %v2926 = vtanh.pop %v2918
  %v2927 = vtanh.pop %v2919
  %v2928 = vtanh.pop %v2920
  %2937 = vrot.lane.b32.xlu0 %v2921, 64
  %v2938 = vpop.permute.xlu0 %2937
  %2939 = vrot.lane.b32.xlu0 %v2922, 64
  %v2940 = vpop.permute.xlu0 %2939
  %2941 = vrot.lane.b32.xlu0 %v2923, 64
  %v2942 = vpop.permute.xlu0 %2941
  %2943 = vrot.lane.b32.xlu0 %v2924, 64
  %v2944 = vpop.permute.xlu0 %2943
  %2945 = vrot.lane.b32.xlu0 %v2925, 64
  %v2946 = vpop.permute.xlu0 %2945
  %2947 = vrot.lane.b32.xlu0 %v2926, 64
  %v2948 = vpop.permute.xlu0 %2947
  %2949 = vrot.lane.b32.xlu0 %v2927, 64
  %v2950 = vpop.permute.xlu0 %2949
  %2951 = vrot.lane.b32.xlu0 %v2928, 64
  %v2952 = vpop.permute.xlu0 %2951
  %v2961 = vmul.f32 %v2802, %v2938
  %v2962 = vmul.f32 %v2804, %v2940
  %v2963 = vmul.f32 %v2806, %v2942
  %v2964 = vmul.f32 %v2808, %v2944
  %v2965 = vmul.f32 %v2810, %v2946
  %v2966 = vmul.f32 %v2812, %v2948
  %v2967 = vmul.f32 %v2814, %v2950
  %v2968 = vmul.f32 %v2816, %v2952
  %v2977 = vrot.slane %v2962, 7
  %v2978 = vsel %vm360, %v2977, %v2961
  %v2979 = vrot.slane %v2963, 6
  %v2980 = vsel %vm363, %v2979, %v2978
  %v2981 = vrot.slane %v2964, 5
  %v2982 = vsel %vm366, %v2981, %v2980
  %v2983 = vrot.slane %v2965, 4
  %v2984 = vsel %vm369, %v2983, %v2982
  %v2985 = vrot.slane %v2966, 3
  %v2986 = vsel %vm372, %v2985, %v2984
  %v2987 = vrot.slane %v2967, 2
  %v2988 = vsel %vm375, %v2987, %v2986
  %v2989 = vrot.slane %v2968, 1
  %v2990 = vsel %vm378, %v2989, %v2988
  %2991 = vrot.lane.b32.xlu0 %v2990, 32
  %v2992 = vpop.permute.xlu0 %2991
  %v2993 = vsel %vm382, %v2992, 0
  %2995 = vmatprep.subr.mxu0 0.0
  %2996 = vmatpush1.msra.mxu0 %v33
  %2997 = vmatprep.subr.mxu0 0.0
  %2998 = vmatpush1.msra.mxu0 %v34
  %2999 = vmatprep.subr.mxu0 0.0
  %3000 = vmatpush1.msra.mxu0 %v35
  %3001 = vmatprep.subr.mxu0 0.0
  %3002 = vmatpush1.msra.mxu0 %v36
  %3003 = vmatprep.subr.mxu0 0.0
  %3004 = vmatpush1.msra.mxu0 0.0
  %3005 = vmatprep.subr.mxu0 0.0
  %3006 = vmatpush1.msra.mxu0 0.0
  %3007 = vmatprep.subr.mxu0 0.0
  %3008 = vmatpush1.msra.mxu0 0.0
  %3009 = vmatprep.subr.mxu0 0.0
  %3010 = vmatpush1.msra.mxu0 0.0
  %3011 = vmatprep.subr.mxu0 0.0
  %3012 = vmatpush1.msra.mxu0 0.0
  %3013 = vmatprep.subr.mxu0 0.0
  %3014 = vmatpush1.msra.mxu0 0.0
  %3015 = vmatprep.subr.mxu0 0.0
  %3016 = vmatpush1.msra.mxu0 0.0
  %3017 = vmatprep.subr.mxu0 0.0
  %3018 = vmatpush1.msra.mxu0 0.0
  %3019 = vmatprep.subr.mxu0 0.0
  %3020 = vmatpush1.msra.mxu0 0.0
  %3021 = vmatprep.subr.mxu0 0.0
  %3022 = vmatpush1.msra.mxu0 0.0
  %3023 = vmatprep.subr.mxu0 0.0
  %3024 = vmatpush1.msra.mxu0 0.0
  %3025 = vmatprep.subr.mxu0 0.0
  %3026 = vmatpush1.msra.mxu0 0.0
  %3027 = vmatprep.subr.mxu0 0.0
  %3028 = vmatpush1.msra.mxu0 0.0
  %3029 = vmatprep.subr.mxu0 0.0
  %3030 = vmatpush1.msra.mxu0 0.0
  %3031 = vmatprep.subr.mxu0 0.0
  %3032 = vmatpush1.msra.mxu0 0.0
  %3033 = vmatprep.subr.mxu0 0.0
  %3034 = vmatpush1.msra.mxu0 0.0
  %3035 = vmatprep.subr.mxu0 0.0
  %3036 = vmatpush1.msra.mxu0 0.0
  %3037 = vmatprep.subr.mxu0 0.0
  %3038 = vmatpush1.msra.mxu0 0.0
  %3039 = vmatprep.subr.mxu0 0.0
  %3040 = vmatpush1.msra.mxu0 0.0
  %3041 = vmatprep.subr.mxu0 0.0
  %3042 = vmatpush1.msra.mxu0 0.0
  %3043 = vmatprep.subr.mxu0 0.0
  %3044 = vmatpush1.msra.mxu0 0.0
  %3045 = vmatprep.subr.mxu0 0.0
  %3046 = vmatpush1.msra.mxu0 0.0
  %3047 = vmatprep.subr.mxu0 0.0
  %3048 = vmatpush1.msra.mxu0 0.0
  %3049 = vmatprep.subr.mxu0 0.0
  %3050 = vmatpush1.msra.mxu0 0.0
  %3051 = vmatprep.subr.mxu0 0.0
  %3052 = vmatpush1.msra.mxu0 0.0
  %3053 = vmatprep.subr.mxu0 0.0
  %3054 = vmatpush1.msra.mxu0 0.0
  %3055 = vmatprep.subr.mxu0 0.0
  %3056 = vmatpush1.msra.mxu0 0.0
  %3057 = vmatprep.subr.mxu0 0.0
  %3058 = vmatpush1.msra.mxu0 0.0
  %3059 = vmatprep.mubr.f32.mxu0 0.0
  %3060 = vmatmul.mubr.f32.gmra.mrb[0].mxu0 %v2993
  %v3061 = vpop.f32.mrb[0].mxu0
  %v3062 = vadd.f32 0.0, %v3061
  %v3063 = vpop.f32.mrb[0].mxu0
  %3064 = vdwg.mxu0
  %v3065 = vadd.f32 %v2735, %v3062
  %v3066 = vadd.f32 %v3065, %v42
  %v3067 = vxor.u32 %v3066, 2147483648
  %v3068 = vmul.f32 %v3067, 1.442695
  %v3069 = vpow.pop %v3068
  %v3070 = vadd.f32 %v3069, 1.0
  %v3071 = vrcp.pop %v3070
  %v3072 = vmul.f32 1.0, %v3071
  %v3073 = vmul.f32 %v3072, %v2650
  %v3074 = vmul.f32 %v3072, 2.0
  %v3075 = vsub.f32 %v3074, 1.0
  %3077 = vrot.lane.b32.xlu0 %v3075, 64
  %v3078 = vpop.permute.xlu0 %3077
  %v3080 = vmul.f32 %v3072, %v3078
  %3082 = vrot.lane.b32.xlu0 %v3080, 32
  %v3083 = vpop.permute.xlu0 %3082
  %v3085 = vadd.f32 %v3073, %v3083
  %v3086 = vtanh.pop %v3085
  %3088 = vrot.lane.b32.xlu0 %v3086, 64
  %v3089 = vpop.permute.xlu0 %3088
  %v3091 = vmul.f32 %v3072, %v3089
  %3094 = vrot.lane.b32.xlu0 %v3091, 64
  %v3095 = vpop.permute.xlu0 %3094
  %v3097 = vsel %vm382, %v2992, %v3095
  %v3099 = vsel %vm44, %v3097, 0
  %3101 = vmatprep.subr.mxu0 %v18
  %3102 = vmatpush1.msra.mxu0 %v17
  %3103 = vmatprep.subr.mxu0 %v20
  %3104 = vmatpush1.msra.mxu0 %v19
  %3105 = vmatprep.subr.mxu0 %v22
  %3106 = vmatpush1.msra.mxu0 %v21
  %3107 = vmatprep.subr.mxu0 %v24
  %3108 = vmatpush1.msra.mxu0 %v23
  %3109 = vmatprep.subr.mxu0 %v26
  %3110 = vmatpush1.msra.mxu0 %v25
  %3111 = vmatprep.subr.mxu0 %v28
  %3112 = vmatpush1.msra.mxu0 %v27
  %3113 = vmatprep.subr.mxu0 %v30
  %3114 = vmatpush1.msra.mxu0 %v29
  %3115 = vmatprep.subr.mxu0 %v32
  %3116 = vmatpush1.msra.mxu0 %v31
  %3117 = vmatprep.subr.mxu0 0.0
  %3118 = vmatpush1.msra.mxu0 0.0
  %3119 = vmatprep.subr.mxu0 0.0
  %3120 = vmatpush1.msra.mxu0 0.0
  %3121 = vmatprep.subr.mxu0 0.0
  %3122 = vmatpush1.msra.mxu0 0.0
  %3123 = vmatprep.subr.mxu0 0.0
  %3124 = vmatpush1.msra.mxu0 0.0
  %3125 = vmatprep.subr.mxu0 0.0
  %3126 = vmatpush1.msra.mxu0 0.0
  %3127 = vmatprep.subr.mxu0 0.0
  %3128 = vmatpush1.msra.mxu0 0.0
  %3129 = vmatprep.subr.mxu0 0.0
  %3130 = vmatpush1.msra.mxu0 0.0
  %3131 = vmatprep.subr.mxu0 0.0
  %3132 = vmatpush1.msra.mxu0 0.0
  %3133 = vmatprep.subr.mxu0 0.0
  %3134 = vmatpush1.msra.mxu0 0.0
  %3135 = vmatprep.subr.mxu0 0.0
  %3136 = vmatpush1.msra.mxu0 0.0
  %3137 = vmatprep.subr.mxu0 0.0
  %3138 = vmatpush1.msra.mxu0 0.0
  %3139 = vmatprep.subr.mxu0 0.0
  %3140 = vmatpush1.msra.mxu0 0.0
  %3141 = vmatprep.subr.mxu0 0.0
  %3142 = vmatpush1.msra.mxu0 0.0
  %3143 = vmatprep.subr.mxu0 0.0
  %3144 = vmatpush1.msra.mxu0 0.0
  %3145 = vmatprep.subr.mxu0 0.0
  %3146 = vmatpush1.msra.mxu0 0.0
  %3147 = vmatprep.subr.mxu0 0.0
  %3148 = vmatpush1.msra.mxu0 0.0
  %3149 = vmatprep.subr.mxu0 0.0
  %3150 = vmatpush1.msra.mxu0 0.0
  %3151 = vmatprep.subr.mxu0 0.0
  %3152 = vmatpush1.msra.mxu0 0.0
  %3153 = vmatprep.subr.mxu0 0.0
  %3154 = vmatpush1.msra.mxu0 0.0
  %3155 = vmatprep.subr.mxu0 0.0
  %3156 = vmatpush1.msra.mxu0 0.0
  %3157 = vmatprep.subr.mxu0 0.0
  %3158 = vmatpush1.msra.mxu0 0.0
  %3159 = vmatprep.subr.mxu0 0.0
  %3160 = vmatpush1.msra.mxu0 0.0
  %3161 = vmatprep.subr.mxu0 0.0
  %3162 = vmatpush1.msra.mxu0 0.0
  %3163 = vmatprep.subr.mxu0 0.0
  %3164 = vmatpush1.msra.mxu0 0.0
  %3165 = vmatprep.mubr.f32.mxu0 0.0
  %3166 = vmatmul.mubr.f32.gmra.mrb[0].mxu0 %v3099
  %v3167 = vpop.f32.mrb[0].mxu0
  %v3168 = vadd.f32 0.0, %v3167
  %v3169 = vpop.f32.mrb[0].mxu0
  %v3170 = vadd.f32 0.0, %v3169
  %3171 = vdwg.mxu0
  %v3172 = vld [vmem:[%s0 + $0x7] sm:$0x1]
  %v3173 = vld [vmem:[%s0 + $0x17] sm:$0x1]
  %v3174 = vld [vmem:[%s0 + $0x27] sm:$0x1]
  %v3175 = vld [vmem:[%s0 + $0x37] sm:$0x1]
  %v3176 = vld [vmem:[%s0 + $0x47] sm:$0x1]
  %v3177 = vld [vmem:[%s0 + $0x57] sm:$0x1]
  %v3178 = vld [vmem:[%s0 + $0x67] sm:$0x1]
  %v3179 = vld [vmem:[%s0 + $0x77] sm:$0x1]
  %v3181 = vrot.slane %v3168, 1
  %v3182 = vrot.slane %v3168, 2
  %v3183 = vrot.slane %v3168, 3
  %v3184 = vrot.slane %v3168, 4
  %v3185 = vrot.slane %v3168, 5
  %v3186 = vrot.slane %v3168, 6
  %v3187 = vrot.slane %v3168, 7
  %v3196 = vadd.f32 %v3172, %v3168
  %v3197 = vadd.f32 %v3173, %v3181
  %v3198 = vadd.f32 %v3174, %v3182
  %v3199 = vadd.f32 %v3175, %v3183
  %v3200 = vadd.f32 %v3176, %v3184
  %v3201 = vadd.f32 %v3177, %v3185
  %v3202 = vadd.f32 %v3178, %v3186
  %v3203 = vadd.f32 %v3179, %v3187
  %v3204 = vxor.u32 %v3196, 2147483648
  %v3205 = vxor.u32 %v3197, 2147483648
  %v3206 = vxor.u32 %v3198, 2147483648
  %v3207 = vxor.u32 %v3199, 2147483648
  %v3208 = vxor.u32 %v3200, 2147483648
  %v3209 = vxor.u32 %v3201, 2147483648
  %v3210 = vxor.u32 %v3202, 2147483648
  %v3211 = vxor.u32 %v3203, 2147483648
  %v3212 = vmul.f32 %v3204, 1.442695
  %v3213 = vpow.pop %v3212
  %v3214 = vmul.f32 %v3205, 1.442695
  %v3215 = vpow.pop %v3214
  %v3216 = vmul.f32 %v3206, 1.442695
  %v3217 = vpow.pop %v3216
  %v3218 = vmul.f32 %v3207, 1.442695
  %v3219 = vpow.pop %v3218
  %v3220 = vmul.f32 %v3208, 1.442695
  %v3221 = vpow.pop %v3220
  %v3222 = vmul.f32 %v3209, 1.442695
  %v3223 = vpow.pop %v3222
  %v3224 = vmul.f32 %v3210, 1.442695
  %v3225 = vpow.pop %v3224
  %v3226 = vmul.f32 %v3211, 1.442695
  %v3227 = vpow.pop %v3226
  %v3228 = vadd.f32 %v3213, 1.0
  %v3229 = vadd.f32 %v3215, 1.0
  %v3230 = vadd.f32 %v3217, 1.0
  %v3231 = vadd.f32 %v3219, 1.0
  %v3232 = vadd.f32 %v3221, 1.0
  %v3233 = vadd.f32 %v3223, 1.0
  %v3234 = vadd.f32 %v3225, 1.0
  %v3235 = vadd.f32 %v3227, 1.0
  %v3236 = vrcp.pop %v3228
  %v3237 = vmul.f32 1.0, %v3236
  %v3238 = vrcp.pop %v3229
  %v3239 = vmul.f32 1.0, %v3238
  %v3240 = vrcp.pop %v3230
  %v3241 = vmul.f32 1.0, %v3240
  %v3242 = vrcp.pop %v3231
  %v3243 = vmul.f32 1.0, %v3242
  %v3244 = vrcp.pop %v3232
  %v3245 = vmul.f32 1.0, %v3244
  %v3246 = vrcp.pop %v3233
  %v3247 = vmul.f32 1.0, %v3246
  %v3248 = vrcp.pop %v3234
  %v3249 = vmul.f32 1.0, %v3248
  %v3250 = vrcp.pop %v3235
  %v3251 = vmul.f32 1.0, %v3250
  %v3252 = vmul.f32 %v3237, %v2913
  %v3253 = vmul.f32 %v3239, %v2914
  %v3254 = vmul.f32 %v3241, %v2915
  %v3255 = vmul.f32 %v3243, %v2916
  %v3256 = vmul.f32 %v3245, %v2917
  %v3257 = vmul.f32 %v3247, %v2918
  %v3258 = vmul.f32 %v3249, %v2919
  %v3259 = vmul.f32 %v3251, %v2920
  %v3260 = vmul.f32 %v3237, 2.0
  %v3261 = vmul.f32 %v3239, 2.0
  %v3262 = vmul.f32 %v3241, 2.0
  %v3263 = vmul.f32 %v3243, 2.0
  %v3264 = vmul.f32 %v3245, 2.0
  %v3265 = vmul.f32 %v3247, 2.0
  %v3266 = vmul.f32 %v3249, 2.0
  %v3267 = vmul.f32 %v3251, 2.0
  %v3268 = vsub.f32 %v3260, 1.0
  %v3269 = vsub.f32 %v3261, 1.0
  %v3270 = vsub.f32 %v3262, 1.0
  %v3271 = vsub.f32 %v3263, 1.0
  %v3272 = vsub.f32 %v3264, 1.0
  %v3273 = vsub.f32 %v3265, 1.0
  %v3274 = vsub.f32 %v3266, 1.0
  %v3275 = vsub.f32 %v3267, 1.0
  %3284 = vrot.lane.b32.xlu0 %v3268, 64
  %v3285 = vpop.permute.xlu0 %3284
  %3286 = vrot.lane.b32.xlu0 %v3269, 64
  %v3287 = vpop.permute.xlu0 %3286
  %3288 = vrot.lane.b32.xlu0 %v3270, 64
  %v3289 = vpop.permute.xlu0 %3288
  %3290 = vrot.lane.b32.xlu0 %v3271, 64
  %v3291 = vpop.permute.xlu0 %3290
  %3292 = vrot.lane.b32.xlu0 %v3272, 64
  %v3293 = vpop.permute.xlu0 %3292
  %3294 = vrot.lane.b32.xlu0 %v3273, 64
  %v3295 = vpop.permute.xlu0 %3294
  %3296 = vrot.lane.b32.xlu0 %v3274, 64
  %v3297 = vpop.permute.xlu0 %3296
  %3298 = vrot.lane.b32.xlu0 %v3275, 64
  %v3299 = vpop.permute.xlu0 %3298
  %v3308 = vmul.f32 %v3237, %v3285
  %v3309 = vmul.f32 %v3239, %v3287
  %v3310 = vmul.f32 %v3241, %v3289
  %v3311 = vmul.f32 %v3243, %v3291
  %v3312 = vmul.f32 %v3245, %v3293
  %v3313 = vmul.f32 %v3247, %v3295
  %v3314 = vmul.f32 %v3249, %v3297
  %v3315 = vmul.f32 %v3251, %v3299
  %3324 = vrot.lane.b32.xlu0 %v3308, 32
  %v3325 = vpop.permute.xlu0 %3324
  %3326 = vrot.lane.b32.xlu0 %v3309, 32
  %v3327 = vpop.permute.xlu0 %3326
  %3328 = vrot.lane.b32.xlu0 %v3310, 32
  %v3329 = vpop.permute.xlu0 %3328
  %3330 = vrot.lane.b32.xlu0 %v3311, 32
  %v3331 = vpop.permute.xlu0 %3330
  %3332 = vrot.lane.b32.xlu0 %v3312, 32
  %v3333 = vpop.permute.xlu0 %3332
  %3334 = vrot.lane.b32.xlu0 %v3313, 32
  %v3335 = vpop.permute.xlu0 %3334
  %3336 = vrot.lane.b32.xlu0 %v3314, 32
  %v3337 = vpop.permute.xlu0 %3336
  %3338 = vrot.lane.b32.xlu0 %v3315, 32
  %v3339 = vpop.permute.xlu0 %3338
  %v3348 = vadd.f32 %v3252, %v3325
  %v3349 = vadd.f32 %v3253, %v3327
  %v3350 = vadd.f32 %v3254, %v3329
  %v3351 = vadd.f32 %v3255, %v3331
  %v3352 = vadd.f32 %v3256, %v3333
  %v3353 = vadd.f32 %v3257, %v3335
  %v3354 = vadd.f32 %v3258, %v3337
  %v3355 = vadd.f32 %v3259, %v3339
  %v3356 = vtanh.pop %v3348
  %v3357 = vtanh.pop %v3349
  %v3358 = vtanh.pop %v3350
  %v3359 = vtanh.pop %v3351
  %v3360 = vtanh.pop %v3352
  %v3361 = vtanh.pop %v3353
  %v3362 = vtanh.pop %v3354
  %v3363 = vtanh.pop %v3355
  %3372 = vrot.lane.b32.xlu0 %v3356, 64
  %v3373 = vpop.permute.xlu0 %3372
  %3374 = vrot.lane.b32.xlu0 %v3357, 64
  %v3375 = vpop.permute.xlu0 %3374
  %3376 = vrot.lane.b32.xlu0 %v3358, 64
  %v3377 = vpop.permute.xlu0 %3376
  %3378 = vrot.lane.b32.xlu0 %v3359, 64
  %v3379 = vpop.permute.xlu0 %3378
  %3380 = vrot.lane.b32.xlu0 %v3360, 64
  %v3381 = vpop.permute.xlu0 %3380
  %3382 = vrot.lane.b32.xlu0 %v3361, 64
  %v3383 = vpop.permute.xlu0 %3382
  %3384 = vrot.lane.b32.xlu0 %v3362, 64
  %v3385 = vpop.permute.xlu0 %3384
  %3386 = vrot.lane.b32.xlu0 %v3363, 64
  %v3387 = vpop.permute.xlu0 %3386
  %v3396 = vmul.f32 %v3237, %v3373
  %v3397 = vmul.f32 %v3239, %v3375
  %v3398 = vmul.f32 %v3241, %v3377
  %v3399 = vmul.f32 %v3243, %v3379
  %v3400 = vmul.f32 %v3245, %v3381
  %v3401 = vmul.f32 %v3247, %v3383
  %v3402 = vmul.f32 %v3249, %v3385
  %v3403 = vmul.f32 %v3251, %v3387
  %v3412 = vrot.slane %v3397, 7
  %v3413 = vsel %vm360, %v3412, %v3396
  %v3414 = vrot.slane %v3398, 6
  %v3415 = vsel %vm363, %v3414, %v3413
  %v3416 = vrot.slane %v3399, 5
  %v3417 = vsel %vm366, %v3416, %v3415
  %v3418 = vrot.slane %v3400, 4
  %v3419 = vsel %vm369, %v3418, %v3417
  %v3420 = vrot.slane %v3401, 3
  %v3421 = vsel %vm372, %v3420, %v3419
  %v3422 = vrot.slane %v3402, 2
  %v3423 = vsel %vm375, %v3422, %v3421
  %v3424 = vrot.slane %v3403, 1
  %v3425 = vsel %vm378, %v3424, %v3423
  %3426 = vrot.lane.b32.xlu0 %v3425, 32
  %v3427 = vpop.permute.xlu0 %3426
  %v3428 = vsel %vm382, %v3427, 0
  %3430 = vmatprep.subr.mxu0 0.0
  %3431 = vmatpush1.msra.mxu0 %v33
  %3432 = vmatprep.subr.mxu0 0.0
  %3433 = vmatpush1.msra.mxu0 %v34
  %3434 = vmatprep.subr.mxu0 0.0
  %3435 = vmatpush1.msra.mxu0 %v35
  %3436 = vmatprep.subr.mxu0 0.0
  %3437 = vmatpush1.msra.mxu0 %v36
  %3438 = vmatprep.subr.mxu0 0.0
  %3439 = vmatpush1.msra.mxu0 0.0
  %3440 = vmatprep.subr.mxu0 0.0
  %3441 = vmatpush1.msra.mxu0 0.0
  %3442 = vmatprep.subr.mxu0 0.0
  %3443 = vmatpush1.msra.mxu0 0.0
  %3444 = vmatprep.subr.mxu0 0.0
  %3445 = vmatpush1.msra.mxu0 0.0
  %3446 = vmatprep.subr.mxu0 0.0
  %3447 = vmatpush1.msra.mxu0 0.0
  %3448 = vmatprep.subr.mxu0 0.0
  %3449 = vmatpush1.msra.mxu0 0.0
  %3450 = vmatprep.subr.mxu0 0.0
  %3451 = vmatpush1.msra.mxu0 0.0
  %3452 = vmatprep.subr.mxu0 0.0
  %3453 = vmatpush1.msra.mxu0 0.0
  %3454 = vmatprep.subr.mxu0 0.0
  %3455 = vmatpush1.msra.mxu0 0.0
  %3456 = vmatprep.subr.mxu0 0.0
  %3457 = vmatpush1.msra.mxu0 0.0
  %3458 = vmatprep.subr.mxu0 0.0
  %3459 = vmatpush1.msra.mxu0 0.0
  %3460 = vmatprep.subr.mxu0 0.0
  %3461 = vmatpush1.msra.mxu0 0.0
  %3462 = vmatprep.subr.mxu0 0.0
  %3463 = vmatpush1.msra.mxu0 0.0
  %3464 = vmatprep.subr.mxu0 0.0
  %3465 = vmatpush1.msra.mxu0 0.0
  %3466 = vmatprep.subr.mxu0 0.0
  %3467 = vmatpush1.msra.mxu0 0.0
  %3468 = vmatprep.subr.mxu0 0.0
  %3469 = vmatpush1.msra.mxu0 0.0
  %3470 = vmatprep.subr.mxu0 0.0
  %3471 = vmatpush1.msra.mxu0 0.0
  %3472 = vmatprep.subr.mxu0 0.0
  %3473 = vmatpush1.msra.mxu0 0.0
  %3474 = vmatprep.subr.mxu0 0.0
  %3475 = vmatpush1.msra.mxu0 0.0
  %3476 = vmatprep.subr.mxu0 0.0
  %3477 = vmatpush1.msra.mxu0 0.0
  %3478 = vmatprep.subr.mxu0 0.0
  %3479 = vmatpush1.msra.mxu0 0.0
  %3480 = vmatprep.subr.mxu0 0.0
  %3481 = vmatpush1.msra.mxu0 0.0
  %3482 = vmatprep.subr.mxu0 0.0
  %3483 = vmatpush1.msra.mxu0 0.0
  %3484 = vmatprep.subr.mxu0 0.0
  %3485 = vmatpush1.msra.mxu0 0.0
  %3486 = vmatprep.subr.mxu0 0.0
  %3487 = vmatpush1.msra.mxu0 0.0
  %3488 = vmatprep.subr.mxu0 0.0
  %3489 = vmatpush1.msra.mxu0 0.0
  %3490 = vmatprep.subr.mxu0 0.0
  %3491 = vmatpush1.msra.mxu0 0.0
  %3492 = vmatprep.subr.mxu0 0.0
  %3493 = vmatpush1.msra.mxu0 0.0
  %3494 = vmatprep.mubr.f32.mxu0 0.0
  %3495 = vmatmul.mubr.f32.gmra.mrb[0].mxu0 %v3428
  %v3496 = vpop.f32.mrb[0].mxu0
  %v3497 = vadd.f32 0.0, %v3496
  %v3498 = vpop.f32.mrb[0].mxu0
  %3499 = vdwg.mxu0
  %v3500 = vadd.f32 %v3170, %v3497
  %v3501 = vadd.f32 %v3500, %v42
  %v3502 = vxor.u32 %v3501, 2147483648
  %v3503 = vmul.f32 %v3502, 1.442695
  %v3504 = vpow.pop %v3503
  %v3505 = vadd.f32 %v3504, 1.0
  %v3506 = vrcp.pop %v3505
  %v3507 = vmul.f32 1.0, %v3506
  %v3508 = vmul.f32 %v3507, %v3085
  %v3509 = vmul.f32 %v3507, 2.0
  %v3510 = vsub.f32 %v3509, 1.0
  %3512 = vrot.lane.b32.xlu0 %v3510, 64
  %v3513 = vpop.permute.xlu0 %3512
  %v3515 = vmul.f32 %v3507, %v3513
  %3517 = vrot.lane.b32.xlu0 %v3515, 32
  %v3518 = vpop.permute.xlu0 %3517
  %v3520 = vadd.f32 %v3508, %v3518
  %v3521 = vtanh.pop %v3520
  %3523 = vrot.lane.b32.xlu0 %v3521, 64
  %v3524 = vpop.permute.xlu0 %3523
  %v3526 = vmul.f32 %v3507, %v3524
  %3529 = vrot.lane.b32.xlu0 %v3526, 64
  %v3530 = vpop.permute.xlu0 %3529
  %v3532 = vsel %vm382, %v3427, %v3530
  %v3534 = vsel %vm44, %v3532, 0
  %3536 = vmatprep.subr.mxu0 %v18
  %3537 = vmatpush1.msra.mxu0 %v17
  %3538 = vmatprep.subr.mxu0 %v20
  %3539 = vmatpush1.msra.mxu0 %v19
  %3540 = vmatprep.subr.mxu0 %v22
  %3541 = vmatpush1.msra.mxu0 %v21
  %3542 = vmatprep.subr.mxu0 %v24
  %3543 = vmatpush1.msra.mxu0 %v23
  %3544 = vmatprep.subr.mxu0 %v26
  %3545 = vmatpush1.msra.mxu0 %v25
  %3546 = vmatprep.subr.mxu0 %v28
  %3547 = vmatpush1.msra.mxu0 %v27
  %3548 = vmatprep.subr.mxu0 %v30
  %3549 = vmatpush1.msra.mxu0 %v29
  %3550 = vmatprep.subr.mxu0 %v32
  %3551 = vmatpush1.msra.mxu0 %v31
  %3552 = vmatprep.subr.mxu0 0.0
  %3553 = vmatpush1.msra.mxu0 0.0
  %3554 = vmatprep.subr.mxu0 0.0
  %3555 = vmatpush1.msra.mxu0 0.0
  %3556 = vmatprep.subr.mxu0 0.0
  %3557 = vmatpush1.msra.mxu0 0.0
  %3558 = vmatprep.subr.mxu0 0.0
  %3559 = vmatpush1.msra.mxu0 0.0
  %3560 = vmatprep.subr.mxu0 0.0
  %3561 = vmatpush1.msra.mxu0 0.0
  %3562 = vmatprep.subr.mxu0 0.0
  %3563 = vmatpush1.msra.mxu0 0.0
  %3564 = vmatprep.subr.mxu0 0.0
  %3565 = vmatpush1.msra.mxu0 0.0
  %3566 = vmatprep.subr.mxu0 0.0
  %3567 = vmatpush1.msra.mxu0 0.0
  %3568 = vmatprep.subr.mxu0 0.0
  %3569 = vmatpush1.msra.mxu0 0.0
  %3570 = vmatprep.subr.mxu0 0.0
  %3571 = vmatpush1.msra.mxu0 0.0
  %3572 = vmatprep.subr.mxu0 0.0
  %3573 = vmatpush1.msra.mxu0 0.0
  %3574 = vmatprep.subr.mxu0 0.0
  %3575 = vmatpush1.msra.mxu0 0.0
  %3576 = vmatprep.subr.mxu0 0.0
  %3577 = vmatpush1.msra.mxu0 0.0
  %3578 = vmatprep.subr.mxu0 0.0
  %3579 = vmatpush1.msra.mxu0 0.0
  %3580 = vmatprep.subr.mxu0 0.0
  %3581 = vmatpush1.msra.mxu0 0.0
  %3582 = vmatprep.subr.mxu0 0.0
  %3583 = vmatpush1.msra.mxu0 0.0
  %3584 = vmatprep.subr.mxu0 0.0
  %3585 = vmatpush1.msra.mxu0 0.0
  %3586 = vmatprep.subr.mxu0 0.0
  %3587 = vmatpush1.msra.mxu0 0.0
  %3588 = vmatprep.subr.mxu0 0.0
  %3589 = vmatpush1.msra.mxu0 0.0
  %3590 = vmatprep.subr.mxu0 0.0
  %3591 = vmatpush1.msra.mxu0 0.0
  %3592 = vmatprep.subr.mxu0 0.0
  %3593 = vmatpush1.msra.mxu0 0.0
  %3594 = vmatprep.subr.mxu0 0.0
  %3595 = vmatpush1.msra.mxu0 0.0
  %3596 = vmatprep.subr.mxu0 0.0
  %3597 = vmatpush1.msra.mxu0 0.0
  %3598 = vmatprep.subr.mxu0 0.0
  %3599 = vmatpush1.msra.mxu0 0.0
  %3600 = vmatprep.mubr.f32.mxu0 0.0
  %3601 = vmatmul.mubr.f32.gmra.mrb[0].mxu0 %v3534
  %v3602 = vpop.f32.mrb[0].mxu0
  %v3603 = vadd.f32 0.0, %v3602
  %v3604 = vpop.f32.mrb[0].mxu0
  %v3605 = vadd.f32 0.0, %v3604
  %3606 = vdwg.mxu0
  %v3607 = vld [vmem:[%s0 + $0x8] sm:$0x1]
  %v3608 = vld [vmem:[%s0 + $0x18] sm:$0x1]
  %v3609 = vld [vmem:[%s0 + $0x28] sm:$0x1]
  %v3610 = vld [vmem:[%s0 + $0x38] sm:$0x1]
  %v3611 = vld [vmem:[%s0 + $0x48] sm:$0x1]
  %v3612 = vld [vmem:[%s0 + $0x58] sm:$0x1]
  %v3613 = vld [vmem:[%s0 + $0x68] sm:$0x1]
  %v3614 = vld [vmem:[%s0 + $0x78] sm:$0x1]
  %v3616 = vrot.slane %v3603, 1
  %v3617 = vrot.slane %v3603, 2
  %v3618 = vrot.slane %v3603, 3
  %v3619 = vrot.slane %v3603, 4
  %v3620 = vrot.slane %v3603, 5
  %v3621 = vrot.slane %v3603, 6
  %v3622 = vrot.slane %v3603, 7
  %v3631 = vadd.f32 %v3607, %v3603
  %v3632 = vadd.f32 %v3608, %v3616
  %v3633 = vadd.f32 %v3609, %v3617
  %v3634 = vadd.f32 %v3610, %v3618
  %v3635 = vadd.f32 %v3611, %v3619
  %v3636 = vadd.f32 %v3612, %v3620
  %v3637 = vadd.f32 %v3613, %v3621
  %v3638 = vadd.f32 %v3614, %v3622
  %v3639 = vxor.u32 %v3631, 2147483648
  %v3640 = vxor.u32 %v3632, 2147483648
  %v3641 = vxor.u32 %v3633, 2147483648
  %v3642 = vxor.u32 %v3634, 2147483648
  %v3643 = vxor.u32 %v3635, 2147483648
  %v3644 = vxor.u32 %v3636, 2147483648
  %v3645 = vxor.u32 %v3637, 2147483648
  %v3646 = vxor.u32 %v3638, 2147483648
  %v3647 = vmul.f32 %v3639, 1.442695
  %v3648 = vpow.pop %v3647
  %v3649 = vmul.f32 %v3640, 1.442695
  %v3650 = vpow.pop %v3649
  %v3651 = vmul.f32 %v3641, 1.442695
  %v3652 = vpow.pop %v3651
  %v3653 = vmul.f32 %v3642, 1.442695
  %v3654 = vpow.pop %v3653
  %v3655 = vmul.f32 %v3643, 1.442695
  %v3656 = vpow.pop %v3655
  %v3657 = vmul.f32 %v3644, 1.442695
  %v3658 = vpow.pop %v3657
  %v3659 = vmul.f32 %v3645, 1.442695
  %v3660 = vpow.pop %v3659
  %v3661 = vmul.f32 %v3646, 1.442695
  %v3662 = vpow.pop %v3661
  %v3663 = vadd.f32 %v3648, 1.0
  %v3664 = vadd.f32 %v3650, 1.0
  %v3665 = vadd.f32 %v3652, 1.0
  %v3666 = vadd.f32 %v3654, 1.0
  %v3667 = vadd.f32 %v3656, 1.0
  %v3668 = vadd.f32 %v3658, 1.0
  %v3669 = vadd.f32 %v3660, 1.0
  %v3670 = vadd.f32 %v3662, 1.0
  %v3671 = vrcp.pop %v3663
  %v3672 = vmul.f32 1.0, %v3671
  %v3673 = vrcp.pop %v3664
  %v3674 = vmul.f32 1.0, %v3673
  %v3675 = vrcp.pop %v3665
  %v3676 = vmul.f32 1.0, %v3675
  %v3677 = vrcp.pop %v3666
  %v3678 = vmul.f32 1.0, %v3677
  %v3679 = vrcp.pop %v3667
  %v3680 = vmul.f32 1.0, %v3679
  %v3681 = vrcp.pop %v3668
  %v3682 = vmul.f32 1.0, %v3681
  %v3683 = vrcp.pop %v3669
  %v3684 = vmul.f32 1.0, %v3683
  %v3685 = vrcp.pop %v3670
  %v3686 = vmul.f32 1.0, %v3685
  %v3687 = vmul.f32 %v3672, %v3348
  %v3688 = vmul.f32 %v3674, %v3349
  %v3689 = vmul.f32 %v3676, %v3350
  %v3690 = vmul.f32 %v3678, %v3351
  %v3691 = vmul.f32 %v3680, %v3352
  %v3692 = vmul.f32 %v3682, %v3353
  %v3693 = vmul.f32 %v3684, %v3354
  %v3694 = vmul.f32 %v3686, %v3355
  %v3695 = vmul.f32 %v3672, 2.0
  %v3696 = vmul.f32 %v3674, 2.0
  %v3697 = vmul.f32 %v3676, 2.0
  %v3698 = vmul.f32 %v3678, 2.0
  %v3699 = vmul.f32 %v3680, 2.0
  %v3700 = vmul.f32 %v3682, 2.0
  %v3701 = vmul.f32 %v3684, 2.0
  %v3702 = vmul.f32 %v3686, 2.0
  %v3703 = vsub.f32 %v3695, 1.0
  %v3704 = vsub.f32 %v3696, 1.0
  %v3705 = vsub.f32 %v3697, 1.0
  %v3706 = vsub.f32 %v3698, 1.0
  %v3707 = vsub.f32 %v3699, 1.0
  %v3708 = vsub.f32 %v3700, 1.0
  %v3709 = vsub.f32 %v3701, 1.0
  %v3710 = vsub.f32 %v3702, 1.0
  %3719 = vrot.lane.b32.xlu0 %v3703, 64
  %v3720 = vpop.permute.xlu0 %3719
  %3721 = vrot.lane.b32.xlu0 %v3704, 64
  %v3722 = vpop.permute.xlu0 %3721
  %3723 = vrot.lane.b32.xlu0 %v3705, 64
  %v3724 = vpop.permute.xlu0 %3723
  %3725 = vrot.lane.b32.xlu0 %v3706, 64
  %v3726 = vpop.permute.xlu0 %3725
  %3727 = vrot.lane.b32.xlu0 %v3707, 64
  %v3728 = vpop.permute.xlu0 %3727
  %3729 = vrot.lane.b32.xlu0 %v3708, 64
  %v3730 = vpop.permute.xlu0 %3729
  %3731 = vrot.lane.b32.xlu0 %v3709, 64
  %v3732 = vpop.permute.xlu0 %3731
  %3733 = vrot.lane.b32.xlu0 %v3710, 64
  %v3734 = vpop.permute.xlu0 %3733
  %v3743 = vmul.f32 %v3672, %v3720
  %v3744 = vmul.f32 %v3674, %v3722
  %v3745 = vmul.f32 %v3676, %v3724
  %v3746 = vmul.f32 %v3678, %v3726
  %v3747 = vmul.f32 %v3680, %v3728
  %v3748 = vmul.f32 %v3682, %v3730
  %v3749 = vmul.f32 %v3684, %v3732
  %v3750 = vmul.f32 %v3686, %v3734
  %3759 = vrot.lane.b32.xlu0 %v3743, 32
  %v3760 = vpop.permute.xlu0 %3759
  %3761 = vrot.lane.b32.xlu0 %v3744, 32
  %v3762 = vpop.permute.xlu0 %3761
  %3763 = vrot.lane.b32.xlu0 %v3745, 32
  %v3764 = vpop.permute.xlu0 %3763
  %3765 = vrot.lane.b32.xlu0 %v3746, 32
  %v3766 = vpop.permute.xlu0 %3765
  %3767 = vrot.lane.b32.xlu0 %v3747, 32
  %v3768 = vpop.permute.xlu0 %3767
  %3769 = vrot.lane.b32.xlu0 %v3748, 32
  %v3770 = vpop.permute.xlu0 %3769
  %3771 = vrot.lane.b32.xlu0 %v3749, 32
  %v3772 = vpop.permute.xlu0 %3771
  %3773 = vrot.lane.b32.xlu0 %v3750, 32
  %v3774 = vpop.permute.xlu0 %3773
  %v3783 = vadd.f32 %v3687, %v3760
  %v3784 = vadd.f32 %v3688, %v3762
  %v3785 = vadd.f32 %v3689, %v3764
  %v3786 = vadd.f32 %v3690, %v3766
  %v3787 = vadd.f32 %v3691, %v3768
  %v3788 = vadd.f32 %v3692, %v3770
  %v3789 = vadd.f32 %v3693, %v3772
  %v3790 = vadd.f32 %v3694, %v3774
  %v3791 = vtanh.pop %v3783
  %v3792 = vtanh.pop %v3784
  %v3793 = vtanh.pop %v3785
  %v3794 = vtanh.pop %v3786
  %v3795 = vtanh.pop %v3787
  %v3796 = vtanh.pop %v3788
  %v3797 = vtanh.pop %v3789
  %v3798 = vtanh.pop %v3790
  %3807 = vrot.lane.b32.xlu0 %v3791, 64
  %v3808 = vpop.permute.xlu0 %3807
  %3809 = vrot.lane.b32.xlu0 %v3792, 64
  %v3810 = vpop.permute.xlu0 %3809
  %3811 = vrot.lane.b32.xlu0 %v3793, 64
  %v3812 = vpop.permute.xlu0 %3811
  %3813 = vrot.lane.b32.xlu0 %v3794, 64
  %v3814 = vpop.permute.xlu0 %3813
  %3815 = vrot.lane.b32.xlu0 %v3795, 64
  %v3816 = vpop.permute.xlu0 %3815
  %3817 = vrot.lane.b32.xlu0 %v3796, 64
  %v3818 = vpop.permute.xlu0 %3817
  %3819 = vrot.lane.b32.xlu0 %v3797, 64
  %v3820 = vpop.permute.xlu0 %3819
  %3821 = vrot.lane.b32.xlu0 %v3798, 64
  %v3822 = vpop.permute.xlu0 %3821
  %v3831 = vmul.f32 %v3672, %v3808
  %v3832 = vmul.f32 %v3674, %v3810
  %v3833 = vmul.f32 %v3676, %v3812
  %v3834 = vmul.f32 %v3678, %v3814
  %v3835 = vmul.f32 %v3680, %v3816
  %v3836 = vmul.f32 %v3682, %v3818
  %v3837 = vmul.f32 %v3684, %v3820
  %v3838 = vmul.f32 %v3686, %v3822
  %v3847 = vrot.slane %v3832, 7
  %v3848 = vsel %vm360, %v3847, %v3831
  %v3849 = vrot.slane %v3833, 6
  %v3850 = vsel %vm363, %v3849, %v3848
  %v3851 = vrot.slane %v3834, 5
  %v3852 = vsel %vm366, %v3851, %v3850
  %v3853 = vrot.slane %v3835, 4
  %v3854 = vsel %vm369, %v3853, %v3852
  %v3855 = vrot.slane %v3836, 3
  %v3856 = vsel %vm372, %v3855, %v3854
  %v3857 = vrot.slane %v3837, 2
  %v3858 = vsel %vm375, %v3857, %v3856
  %v3859 = vrot.slane %v3838, 1
  %v3860 = vsel %vm378, %v3859, %v3858
  %3861 = vrot.lane.b32.xlu0 %v3860, 32
  %v3862 = vpop.permute.xlu0 %3861
  %v3863 = vsel %vm382, %v3862, 0
  %3865 = vmatprep.subr.mxu0 0.0
  %3866 = vmatpush1.msra.mxu0 %v33
  %3867 = vmatprep.subr.mxu0 0.0
  %3868 = vmatpush1.msra.mxu0 %v34
  %3869 = vmatprep.subr.mxu0 0.0
  %3870 = vmatpush1.msra.mxu0 %v35
  %3871 = vmatprep.subr.mxu0 0.0
  %3872 = vmatpush1.msra.mxu0 %v36
  %3873 = vmatprep.subr.mxu0 0.0
  %3874 = vmatpush1.msra.mxu0 0.0
  %3875 = vmatprep.subr.mxu0 0.0
  %3876 = vmatpush1.msra.mxu0 0.0
  %3877 = vmatprep.subr.mxu0 0.0
  %3878 = vmatpush1.msra.mxu0 0.0
  %3879 = vmatprep.subr.mxu0 0.0
  %3880 = vmatpush1.msra.mxu0 0.0
  %3881 = vmatprep.subr.mxu0 0.0
  %3882 = vmatpush1.msra.mxu0 0.0
  %3883 = vmatprep.subr.mxu0 0.0
  %3884 = vmatpush1.msra.mxu0 0.0
  %3885 = vmatprep.subr.mxu0 0.0
  %3886 = vmatpush1.msra.mxu0 0.0
  %3887 = vmatprep.subr.mxu0 0.0
  %3888 = vmatpush1.msra.mxu0 0.0
  %3889 = vmatprep.subr.mxu0 0.0
  %3890 = vmatpush1.msra.mxu0 0.0
  %3891 = vmatprep.subr.mxu0 0.0
  %3892 = vmatpush1.msra.mxu0 0.0
  %3893 = vmatprep.subr.mxu0 0.0
  %3894 = vmatpush1.msra.mxu0 0.0
  %3895 = vmatprep.subr.mxu0 0.0
  %3896 = vmatpush1.msra.mxu0 0.0
  %3897 = vmatprep.subr.mxu0 0.0
  %3898 = vmatpush1.msra.mxu0 0.0
  %3899 = vmatprep.subr.mxu0 0.0
  %3900 = vmatpush1.msra.mxu0 0.0
  %3901 = vmatprep.subr.mxu0 0.0
  %3902 = vmatpush1.msra.mxu0 0.0
  %3903 = vmatprep.subr.mxu0 0.0
  %3904 = vmatpush1.msra.mxu0 0.0
  %3905 = vmatprep.subr.mxu0 0.0
  %3906 = vmatpush1.msra.mxu0 0.0
  %3907 = vmatprep.subr.mxu0 0.0
  %3908 = vmatpush1.msra.mxu0 0.0
  %3909 = vmatprep.subr.mxu0 0.0
  %3910 = vmatpush1.msra.mxu0 0.0
  %3911 = vmatprep.subr.mxu0 0.0
  %3912 = vmatpush1.msra.mxu0 0.0
  %3913 = vmatprep.subr.mxu0 0.0
  %3914 = vmatpush1.msra.mxu0 0.0
  %3915 = vmatprep.subr.mxu0 0.0
  %3916 = vmatpush1.msra.mxu0 0.0
  %3917 = vmatprep.subr.mxu0 0.0
  %3918 = vmatpush1.msra.mxu0 0.0
  %3919 = vmatprep.subr.mxu0 0.0
  %3920 = vmatpush1.msra.mxu0 0.0
  %3921 = vmatprep.subr.mxu0 0.0
  %3922 = vmatpush1.msra.mxu0 0.0
  %3923 = vmatprep.subr.mxu0 0.0
  %3924 = vmatpush1.msra.mxu0 0.0
  %3925 = vmatprep.subr.mxu0 0.0
  %3926 = vmatpush1.msra.mxu0 0.0
  %3927 = vmatprep.subr.mxu0 0.0
  %3928 = vmatpush1.msra.mxu0 0.0
  %3929 = vmatprep.mubr.f32.mxu0 0.0
  %3930 = vmatmul.mubr.f32.gmra.mrb[0].mxu0 %v3863
  %v3931 = vpop.f32.mrb[0].mxu0
  %v3932 = vadd.f32 0.0, %v3931
  %v3933 = vpop.f32.mrb[0].mxu0
  %3934 = vdwg.mxu0
  %v3935 = vadd.f32 %v3605, %v3932
  %v3936 = vadd.f32 %v3935, %v42
  %v3937 = vxor.u32 %v3936, 2147483648
  %v3938 = vmul.f32 %v3937, 1.442695
  %v3939 = vpow.pop %v3938
  %v3940 = vadd.f32 %v3939, 1.0
  %v3941 = vrcp.pop %v3940
  %v3942 = vmul.f32 1.0, %v3941
  %v3943 = vmul.f32 %v3942, %v3520
  %v3944 = vmul.f32 %v3942, 2.0
  %v3945 = vsub.f32 %v3944, 1.0
  %3947 = vrot.lane.b32.xlu0 %v3945, 64
  %v3948 = vpop.permute.xlu0 %3947
  %v3950 = vmul.f32 %v3942, %v3948
  %3952 = vrot.lane.b32.xlu0 %v3950, 32
  %v3953 = vpop.permute.xlu0 %3952
  %v3955 = vadd.f32 %v3943, %v3953
  %v3956 = vtanh.pop %v3955
  %3958 = vrot.lane.b32.xlu0 %v3956, 64
  %v3959 = vpop.permute.xlu0 %3958
  %v3961 = vmul.f32 %v3942, %v3959
  %3964 = vrot.lane.b32.xlu0 %v3961, 64
  %v3965 = vpop.permute.xlu0 %3964
  %v3967 = vsel %vm382, %v3862, %v3965
  %v3969 = vsel %vm44, %v3967, 0
  %3971 = vmatprep.subr.mxu0 %v18
  %3972 = vmatpush1.msra.mxu0 %v17
  %3973 = vmatprep.subr.mxu0 %v20
  %3974 = vmatpush1.msra.mxu0 %v19
  %3975 = vmatprep.subr.mxu0 %v22
  %3976 = vmatpush1.msra.mxu0 %v21
  %3977 = vmatprep.subr.mxu0 %v24
  %3978 = vmatpush1.msra.mxu0 %v23
  %3979 = vmatprep.subr.mxu0 %v26
  %3980 = vmatpush1.msra.mxu0 %v25
  %3981 = vmatprep.subr.mxu0 %v28
  %3982 = vmatpush1.msra.mxu0 %v27
  %3983 = vmatprep.subr.mxu0 %v30
  %3984 = vmatpush1.msra.mxu0 %v29
  %3985 = vmatprep.subr.mxu0 %v32
  %3986 = vmatpush1.msra.mxu0 %v31
  %3987 = vmatprep.subr.mxu0 0.0
  %3988 = vmatpush1.msra.mxu0 0.0
  %3989 = vmatprep.subr.mxu0 0.0
  %3990 = vmatpush1.msra.mxu0 0.0
  %3991 = vmatprep.subr.mxu0 0.0
  %3992 = vmatpush1.msra.mxu0 0.0
  %3993 = vmatprep.subr.mxu0 0.0
  %3994 = vmatpush1.msra.mxu0 0.0
  %3995 = vmatprep.subr.mxu0 0.0
  %3996 = vmatpush1.msra.mxu0 0.0
  %3997 = vmatprep.subr.mxu0 0.0
  %3998 = vmatpush1.msra.mxu0 0.0
  %3999 = vmatprep.subr.mxu0 0.0
  %4000 = vmatpush1.msra.mxu0 0.0
  %4001 = vmatprep.subr.mxu0 0.0
  %4002 = vmatpush1.msra.mxu0 0.0
  %4003 = vmatprep.subr.mxu0 0.0
  %4004 = vmatpush1.msra.mxu0 0.0
  %4005 = vmatprep.subr.mxu0 0.0
  %4006 = vmatpush1.msra.mxu0 0.0
  %4007 = vmatprep.subr.mxu0 0.0
  %4008 = vmatpush1.msra.mxu0 0.0
  %4009 = vmatprep.subr.mxu0 0.0
  %4010 = vmatpush1.msra.mxu0 0.0
  %4011 = vmatprep.subr.mxu0 0.0
  %4012 = vmatpush1.msra.mxu0 0.0
  %4013 = vmatprep.subr.mxu0 0.0
  %4014 = vmatpush1.msra.mxu0 0.0
  %4015 = vmatprep.subr.mxu0 0.0
  %4016 = vmatpush1.msra.mxu0 0.0
  %4017 = vmatprep.subr.mxu0 0.0
  %4018 = vmatpush1.msra.mxu0 0.0
  %4019 = vmatprep.subr.mxu0 0.0
  %4020 = vmatpush1.msra.mxu0 0.0
  %4021 = vmatprep.subr.mxu0 0.0
  %4022 = vmatpush1.msra.mxu0 0.0
  %4023 = vmatprep.subr.mxu0 0.0
  %4024 = vmatpush1.msra.mxu0 0.0
  %4025 = vmatprep.subr.mxu0 0.0
  %4026 = vmatpush1.msra.mxu0 0.0
  %4027 = vmatprep.subr.mxu0 0.0
  %4028 = vmatpush1.msra.mxu0 0.0
  %4029 = vmatprep.subr.mxu0 0.0
  %4030 = vmatpush1.msra.mxu0 0.0
  %4031 = vmatprep.subr.mxu0 0.0
  %4032 = vmatpush1.msra.mxu0 0.0
  %4033 = vmatprep.subr.mxu0 0.0
  %4034 = vmatpush1.msra.mxu0 0.0
  %4035 = vmatprep.mubr.f32.mxu0 0.0
  %4036 = vmatmul.mubr.f32.gmra.mrb[0].mxu0 %v3969
  %v4037 = vpop.f32.mrb[0].mxu0
  %v4038 = vadd.f32 0.0, %v4037
  %v4039 = vpop.f32.mrb[0].mxu0
  %v4040 = vadd.f32 0.0, %v4039
  %4041 = vdwg.mxu0
  %v4042 = vld [vmem:[%s0 + $0x9] sm:$0x1]
  %v4043 = vld [vmem:[%s0 + $0x19] sm:$0x1]
  %v4044 = vld [vmem:[%s0 + $0x29] sm:$0x1]
  %v4045 = vld [vmem:[%s0 + $0x39] sm:$0x1]
  %v4046 = vld [vmem:[%s0 + $0x49] sm:$0x1]
  %v4047 = vld [vmem:[%s0 + $0x59] sm:$0x1]
  %v4048 = vld [vmem:[%s0 + $0x69] sm:$0x1]
  %v4049 = vld [vmem:[%s0 + $0x79] sm:$0x1]
  %v4051 = vrot.slane %v4038, 1
  %v4052 = vrot.slane %v4038, 2
  %v4053 = vrot.slane %v4038, 3
  %v4054 = vrot.slane %v4038, 4
  %v4055 = vrot.slane %v4038, 5
  %v4056 = vrot.slane %v4038, 6
  %v4057 = vrot.slane %v4038, 7
  %v4066 = vadd.f32 %v4042, %v4038
  %v4067 = vadd.f32 %v4043, %v4051
  %v4068 = vadd.f32 %v4044, %v4052
  %v4069 = vadd.f32 %v4045, %v4053
  %v4070 = vadd.f32 %v4046, %v4054
  %v4071 = vadd.f32 %v4047, %v4055
  %v4072 = vadd.f32 %v4048, %v4056
  %v4073 = vadd.f32 %v4049, %v4057
  %v4074 = vxor.u32 %v4066, 2147483648
  %v4075 = vxor.u32 %v4067, 2147483648
  %v4076 = vxor.u32 %v4068, 2147483648
  %v4077 = vxor.u32 %v4069, 2147483648
  %v4078 = vxor.u32 %v4070, 2147483648
  %v4079 = vxor.u32 %v4071, 2147483648
  %v4080 = vxor.u32 %v4072, 2147483648
  %v4081 = vxor.u32 %v4073, 2147483648
  %v4082 = vmul.f32 %v4074, 1.442695
  %v4083 = vpow.pop %v4082
  %v4084 = vmul.f32 %v4075, 1.442695
  %v4085 = vpow.pop %v4084
  %v4086 = vmul.f32 %v4076, 1.442695
  %v4087 = vpow.pop %v4086
  %v4088 = vmul.f32 %v4077, 1.442695
  %v4089 = vpow.pop %v4088
  %v4090 = vmul.f32 %v4078, 1.442695
  %v4091 = vpow.pop %v4090
  %v4092 = vmul.f32 %v4079, 1.442695
  %v4093 = vpow.pop %v4092
  %v4094 = vmul.f32 %v4080, 1.442695
  %v4095 = vpow.pop %v4094
  %v4096 = vmul.f32 %v4081, 1.442695
  %v4097 = vpow.pop %v4096
  %v4098 = vadd.f32 %v4083, 1.0
  %v4099 = vadd.f32 %v4085, 1.0
  %v4100 = vadd.f32 %v4087, 1.0
  %v4101 = vadd.f32 %v4089, 1.0
  %v4102 = vadd.f32 %v4091, 1.0
  %v4103 = vadd.f32 %v4093, 1.0
  %v4104 = vadd.f32 %v4095, 1.0
  %v4105 = vadd.f32 %v4097, 1.0
  %v4106 = vrcp.pop %v4098
  %v4107 = vmul.f32 1.0, %v4106
  %v4108 = vrcp.pop %v4099
  %v4109 = vmul.f32 1.0, %v4108
  %v4110 = vrcp.pop %v4100
  %v4111 = vmul.f32 1.0, %v4110
  %v4112 = vrcp.pop %v4101
  %v4113 = vmul.f32 1.0, %v4112
  %v4114 = vrcp.pop %v4102
  %v4115 = vmul.f32 1.0, %v4114
  %v4116 = vrcp.pop %v4103
  %v4117 = vmul.f32 1.0, %v4116
  %v4118 = vrcp.pop %v4104
  %v4119 = vmul.f32 1.0, %v4118
  %v4120 = vrcp.pop %v4105
  %v4121 = vmul.f32 1.0, %v4120
  %v4122 = vmul.f32 %v4107, %v3783
  %v4123 = vmul.f32 %v4109, %v3784
  %v4124 = vmul.f32 %v4111, %v3785
  %v4125 = vmul.f32 %v4113, %v3786
  %v4126 = vmul.f32 %v4115, %v3787
  %v4127 = vmul.f32 %v4117, %v3788
  %v4128 = vmul.f32 %v4119, %v3789
  %v4129 = vmul.f32 %v4121, %v3790
  %v4130 = vmul.f32 %v4107, 2.0
  %v4131 = vmul.f32 %v4109, 2.0
  %v4132 = vmul.f32 %v4111, 2.0
  %v4133 = vmul.f32 %v4113, 2.0
  %v4134 = vmul.f32 %v4115, 2.0
  %v4135 = vmul.f32 %v4117, 2.0
  %v4136 = vmul.f32 %v4119, 2.0
  %v4137 = vmul.f32 %v4121, 2.0
  %v4138 = vsub.f32 %v4130, 1.0
  %v4139 = vsub.f32 %v4131, 1.0
  %v4140 = vsub.f32 %v4132, 1.0
  %v4141 = vsub.f32 %v4133, 1.0
  %v4142 = vsub.f32 %v4134, 1.0
  %v4143 = vsub.f32 %v4135, 1.0
  %v4144 = vsub.f32 %v4136, 1.0
  %v4145 = vsub.f32 %v4137, 1.0
  %4154 = vrot.lane.b32.xlu0 %v4138, 64
  %v4155 = vpop.permute.xlu0 %4154
  %4156 = vrot.lane.b32.xlu0 %v4139, 64
  %v4157 = vpop.permute.xlu0 %4156
  %4158 = vrot.lane.b32.xlu0 %v4140, 64
  %v4159 = vpop.permute.xlu0 %4158
  %4160 = vrot.lane.b32.xlu0 %v4141, 64
  %v4161 = vpop.permute.xlu0 %4160
  %4162 = vrot.lane.b32.xlu0 %v4142, 64
  %v4163 = vpop.permute.xlu0 %4162
  %4164 = vrot.lane.b32.xlu0 %v4143, 64
  %v4165 = vpop.permute.xlu0 %4164
  %4166 = vrot.lane.b32.xlu0 %v4144, 64
  %v4167 = vpop.permute.xlu0 %4166
  %4168 = vrot.lane.b32.xlu0 %v4145, 64
  %v4169 = vpop.permute.xlu0 %4168
  %v4178 = vmul.f32 %v4107, %v4155
  %v4179 = vmul.f32 %v4109, %v4157
  %v4180 = vmul.f32 %v4111, %v4159
  %v4181 = vmul.f32 %v4113, %v4161
  %v4182 = vmul.f32 %v4115, %v4163
  %v4183 = vmul.f32 %v4117, %v4165
  %v4184 = vmul.f32 %v4119, %v4167
  %v4185 = vmul.f32 %v4121, %v4169
  %4194 = vrot.lane.b32.xlu0 %v4178, 32
  %v4195 = vpop.permute.xlu0 %4194
  %4196 = vrot.lane.b32.xlu0 %v4179, 32
  %v4197 = vpop.permute.xlu0 %4196
  %4198 = vrot.lane.b32.xlu0 %v4180, 32
  %v4199 = vpop.permute.xlu0 %4198
  %4200 = vrot.lane.b32.xlu0 %v4181, 32
  %v4201 = vpop.permute.xlu0 %4200
  %4202 = vrot.lane.b32.xlu0 %v4182, 32
  %v4203 = vpop.permute.xlu0 %4202
  %4204 = vrot.lane.b32.xlu0 %v4183, 32
  %v4205 = vpop.permute.xlu0 %4204
  %4206 = vrot.lane.b32.xlu0 %v4184, 32
  %v4207 = vpop.permute.xlu0 %4206
  %4208 = vrot.lane.b32.xlu0 %v4185, 32
  %v4209 = vpop.permute.xlu0 %4208
  %v4218 = vadd.f32 %v4122, %v4195
  %v4219 = vadd.f32 %v4123, %v4197
  %v4220 = vadd.f32 %v4124, %v4199
  %v4221 = vadd.f32 %v4125, %v4201
  %v4222 = vadd.f32 %v4126, %v4203
  %v4223 = vadd.f32 %v4127, %v4205
  %v4224 = vadd.f32 %v4128, %v4207
  %v4225 = vadd.f32 %v4129, %v4209
  %v4226 = vtanh.pop %v4218
  %v4227 = vtanh.pop %v4219
  %v4228 = vtanh.pop %v4220
  %v4229 = vtanh.pop %v4221
  %v4230 = vtanh.pop %v4222
  %v4231 = vtanh.pop %v4223
  %v4232 = vtanh.pop %v4224
  %v4233 = vtanh.pop %v4225
  %4242 = vrot.lane.b32.xlu0 %v4226, 64
  %v4243 = vpop.permute.xlu0 %4242
  %4244 = vrot.lane.b32.xlu0 %v4227, 64
  %v4245 = vpop.permute.xlu0 %4244
  %4246 = vrot.lane.b32.xlu0 %v4228, 64
  %v4247 = vpop.permute.xlu0 %4246
  %4248 = vrot.lane.b32.xlu0 %v4229, 64
  %v4249 = vpop.permute.xlu0 %4248
  %4250 = vrot.lane.b32.xlu0 %v4230, 64
  %v4251 = vpop.permute.xlu0 %4250
  %4252 = vrot.lane.b32.xlu0 %v4231, 64
  %v4253 = vpop.permute.xlu0 %4252
  %4254 = vrot.lane.b32.xlu0 %v4232, 64
  %v4255 = vpop.permute.xlu0 %4254
  %4256 = vrot.lane.b32.xlu0 %v4233, 64
  %v4257 = vpop.permute.xlu0 %4256
  %v4266 = vmul.f32 %v4107, %v4243
  %v4267 = vmul.f32 %v4109, %v4245
  %v4268 = vmul.f32 %v4111, %v4247
  %v4269 = vmul.f32 %v4113, %v4249
  %v4270 = vmul.f32 %v4115, %v4251
  %v4271 = vmul.f32 %v4117, %v4253
  %v4272 = vmul.f32 %v4119, %v4255
  %v4273 = vmul.f32 %v4121, %v4257
  %v4282 = vrot.slane %v4267, 7
  %v4283 = vsel %vm360, %v4282, %v4266
  %v4284 = vrot.slane %v4268, 6
  %v4285 = vsel %vm363, %v4284, %v4283
  %v4286 = vrot.slane %v4269, 5
  %v4287 = vsel %vm366, %v4286, %v4285
  %v4288 = vrot.slane %v4270, 4
  %v4289 = vsel %vm369, %v4288, %v4287
  %v4290 = vrot.slane %v4271, 3
  %v4291 = vsel %vm372, %v4290, %v4289
  %v4292 = vrot.slane %v4272, 2
  %v4293 = vsel %vm375, %v4292, %v4291
  %v4294 = vrot.slane %v4273, 1
  %v4295 = vsel %vm378, %v4294, %v4293
  %4296 = vrot.lane.b32.xlu0 %v4295, 32
  %v4297 = vpop.permute.xlu0 %4296
  %v4298 = vsel %vm382, %v4297, 0
  %4300 = vmatprep.subr.mxu0 0.0
  %4301 = vmatpush1.msra.mxu0 %v33
  %4302 = vmatprep.subr.mxu0 0.0
  %4303 = vmatpush1.msra.mxu0 %v34
  %4304 = vmatprep.subr.mxu0 0.0
  %4305 = vmatpush1.msra.mxu0 %v35
  %4306 = vmatprep.subr.mxu0 0.0
  %4307 = vmatpush1.msra.mxu0 %v36
  %4308 = vmatprep.subr.mxu0 0.0
  %4309 = vmatpush1.msra.mxu0 0.0
  %4310 = vmatprep.subr.mxu0 0.0
  %4311 = vmatpush1.msra.mxu0 0.0
  %4312 = vmatprep.subr.mxu0 0.0
  %4313 = vmatpush1.msra.mxu0 0.0
  %4314 = vmatprep.subr.mxu0 0.0
  %4315 = vmatpush1.msra.mxu0 0.0
  %4316 = vmatprep.subr.mxu0 0.0
  %4317 = vmatpush1.msra.mxu0 0.0
  %4318 = vmatprep.subr.mxu0 0.0
  %4319 = vmatpush1.msra.mxu0 0.0
  %4320 = vmatprep.subr.mxu0 0.0
  %4321 = vmatpush1.msra.mxu0 0.0
  %4322 = vmatprep.subr.mxu0 0.0
  %4323 = vmatpush1.msra.mxu0 0.0
  %4324 = vmatprep.subr.mxu0 0.0
  %4325 = vmatpush1.msra.mxu0 0.0
  %4326 = vmatprep.subr.mxu0 0.0
  %4327 = vmatpush1.msra.mxu0 0.0
  %4328 = vmatprep.subr.mxu0 0.0
  %4329 = vmatpush1.msra.mxu0 0.0
  %4330 = vmatprep.subr.mxu0 0.0
  %4331 = vmatpush1.msra.mxu0 0.0
  %4332 = vmatprep.subr.mxu0 0.0
  %4333 = vmatpush1.msra.mxu0 0.0
  %4334 = vmatprep.subr.mxu0 0.0
  %4335 = vmatpush1.msra.mxu0 0.0
  %4336 = vmatprep.subr.mxu0 0.0
  %4337 = vmatpush1.msra.mxu0 0.0
  %4338 = vmatprep.subr.mxu0 0.0
  %4339 = vmatpush1.msra.mxu0 0.0
  %4340 = vmatprep.subr.mxu0 0.0
  %4341 = vmatpush1.msra.mxu0 0.0
  %4342 = vmatprep.subr.mxu0 0.0
  %4343 = vmatpush1.msra.mxu0 0.0
  %4344 = vmatprep.subr.mxu0 0.0
  %4345 = vmatpush1.msra.mxu0 0.0
  %4346 = vmatprep.subr.mxu0 0.0
  %4347 = vmatpush1.msra.mxu0 0.0
  %4348 = vmatprep.subr.mxu0 0.0
  %4349 = vmatpush1.msra.mxu0 0.0
  %4350 = vmatprep.subr.mxu0 0.0
  %4351 = vmatpush1.msra.mxu0 0.0
  %4352 = vmatprep.subr.mxu0 0.0
  %4353 = vmatpush1.msra.mxu0 0.0
  %4354 = vmatprep.subr.mxu0 0.0
  %4355 = vmatpush1.msra.mxu0 0.0
  %4356 = vmatprep.subr.mxu0 0.0
  %4357 = vmatpush1.msra.mxu0 0.0
  %4358 = vmatprep.subr.mxu0 0.0
  %4359 = vmatpush1.msra.mxu0 0.0
  %4360 = vmatprep.subr.mxu0 0.0
  %4361 = vmatpush1.msra.mxu0 0.0
  %4362 = vmatprep.subr.mxu0 0.0
  %4363 = vmatpush1.msra.mxu0 0.0
  %4364 = vmatprep.mubr.f32.mxu0 0.0
  %4365 = vmatmul.mubr.f32.gmra.mrb[0].mxu0 %v4298
  %v4366 = vpop.f32.mrb[0].mxu0
  %v4367 = vadd.f32 0.0, %v4366
  %v4368 = vpop.f32.mrb[0].mxu0
  %4369 = vdwg.mxu0
  %v4370 = vadd.f32 %v4040, %v4367
  %v4371 = vadd.f32 %v4370, %v42
  %v4372 = vxor.u32 %v4371, 2147483648
  %v4373 = vmul.f32 %v4372, 1.442695
  %v4374 = vpow.pop %v4373
  %v4375 = vadd.f32 %v4374, 1.0
  %v4376 = vrcp.pop %v4375
  %v4377 = vmul.f32 1.0, %v4376
  %v4378 = vmul.f32 %v4377, %v3955
  %v4379 = vmul.f32 %v4377, 2.0
  %v4380 = vsub.f32 %v4379, 1.0
  %4382 = vrot.lane.b32.xlu0 %v4380, 64
  %v4383 = vpop.permute.xlu0 %4382
  %v4385 = vmul.f32 %v4377, %v4383
  %4387 = vrot.lane.b32.xlu0 %v4385, 32
  %v4388 = vpop.permute.xlu0 %4387
  %v4390 = vadd.f32 %v4378, %v4388
  %v4391 = vtanh.pop %v4390
  %4393 = vrot.lane.b32.xlu0 %v4391, 64
  %v4394 = vpop.permute.xlu0 %4393
  %v4396 = vmul.f32 %v4377, %v4394
  %4399 = vrot.lane.b32.xlu0 %v4396, 64
  %v4400 = vpop.permute.xlu0 %4399
  %v4402 = vsel %vm382, %v4297, %v4400
  %v4404 = vsel %vm44, %v4402, 0
  %4406 = vmatprep.subr.mxu0 %v18
  %4407 = vmatpush1.msra.mxu0 %v17
  %4408 = vmatprep.subr.mxu0 %v20
  %4409 = vmatpush1.msra.mxu0 %v19
  %4410 = vmatprep.subr.mxu0 %v22
  %4411 = vmatpush1.msra.mxu0 %v21
  %4412 = vmatprep.subr.mxu0 %v24
  %4413 = vmatpush1.msra.mxu0 %v23
  %4414 = vmatprep.subr.mxu0 %v26
  %4415 = vmatpush1.msra.mxu0 %v25
  %4416 = vmatprep.subr.mxu0 %v28
  %4417 = vmatpush1.msra.mxu0 %v27
  %4418 = vmatprep.subr.mxu0 %v30
  %4419 = vmatpush1.msra.mxu0 %v29
  %4420 = vmatprep.subr.mxu0 %v32
  %4421 = vmatpush1.msra.mxu0 %v31
  %4422 = vmatprep.subr.mxu0 0.0
  %4423 = vmatpush1.msra.mxu0 0.0
  %4424 = vmatprep.subr.mxu0 0.0
  %4425 = vmatpush1.msra.mxu0 0.0
  %4426 = vmatprep.subr.mxu0 0.0
  %4427 = vmatpush1.msra.mxu0 0.0
  %4428 = vmatprep.subr.mxu0 0.0
  %4429 = vmatpush1.msra.mxu0 0.0
  %4430 = vmatprep.subr.mxu0 0.0
  %4431 = vmatpush1.msra.mxu0 0.0
  %4432 = vmatprep.subr.mxu0 0.0
  %4433 = vmatpush1.msra.mxu0 0.0
  %4434 = vmatprep.subr.mxu0 0.0
  %4435 = vmatpush1.msra.mxu0 0.0
  %4436 = vmatprep.subr.mxu0 0.0
  %4437 = vmatpush1.msra.mxu0 0.0
  %4438 = vmatprep.subr.mxu0 0.0
  %4439 = vmatpush1.msra.mxu0 0.0
  %4440 = vmatprep.subr.mxu0 0.0
  %4441 = vmatpush1.msra.mxu0 0.0
  %4442 = vmatprep.subr.mxu0 0.0
  %4443 = vmatpush1.msra.mxu0 0.0
  %4444 = vmatprep.subr.mxu0 0.0
  %4445 = vmatpush1.msra.mxu0 0.0
  %4446 = vmatprep.subr.mxu0 0.0
  %4447 = vmatpush1.msra.mxu0 0.0
  %4448 = vmatprep.subr.mxu0 0.0
  %4449 = vmatpush1.msra.mxu0 0.0
  %4450 = vmatprep.subr.mxu0 0.0
  %4451 = vmatpush1.msra.mxu0 0.0
  %4452 = vmatprep.subr.mxu0 0.0
  %4453 = vmatpush1.msra.mxu0 0.0
  %4454 = vmatprep.subr.mxu0 0.0
  %4455 = vmatpush1.msra.mxu0 0.0
  %4456 = vmatprep.subr.mxu0 0.0
  %4457 = vmatpush1.msra.mxu0 0.0
  %4458 = vmatprep.subr.mxu0 0.0
  %4459 = vmatpush1.msra.mxu0 0.0
  %4460 = vmatprep.subr.mxu0 0.0
  %4461 = vmatpush1.msra.mxu0 0.0
  %4462 = vmatprep.subr.mxu0 0.0
  %4463 = vmatpush1.msra.mxu0 0.0
  %4464 = vmatprep.subr.mxu0 0.0
  %4465 = vmatpush1.msra.mxu0 0.0
  %4466 = vmatprep.subr.mxu0 0.0
  %4467 = vmatpush1.msra.mxu0 0.0
  %4468 = vmatprep.subr.mxu0 0.0
  %4469 = vmatpush1.msra.mxu0 0.0
  %4470 = vmatprep.mubr.f32.mxu0 0.0
  %4471 = vmatmul.mubr.f32.gmra.mrb[0].mxu0 %v4404
  %v4472 = vpop.f32.mrb[0].mxu0
  %v4473 = vadd.f32 0.0, %v4472
  %v4474 = vpop.f32.mrb[0].mxu0
  %v4475 = vadd.f32 0.0, %v4474
  %4476 = vdwg.mxu0
  %v4477 = vld [vmem:[%s0 + $0xa] sm:$0x1]
  %v4478 = vld [vmem:[%s0 + $0x1a] sm:$0x1]
  %v4479 = vld [vmem:[%s0 + $0x2a] sm:$0x1]
  %v4480 = vld [vmem:[%s0 + $0x3a] sm:$0x1]
  %v4481 = vld [vmem:[%s0 + $0x4a] sm:$0x1]
  %v4482 = vld [vmem:[%s0 + $0x5a] sm:$0x1]
  %v4483 = vld [vmem:[%s0 + $0x6a] sm:$0x1]
  %v4484 = vld [vmem:[%s0 + $0x7a] sm:$0x1]
  %v4486 = vrot.slane %v4473, 1
  %v4487 = vrot.slane %v4473, 2
  %v4488 = vrot.slane %v4473, 3
  %v4489 = vrot.slane %v4473, 4
  %v4490 = vrot.slane %v4473, 5
  %v4491 = vrot.slane %v4473, 6
  %v4492 = vrot.slane %v4473, 7
  %v4501 = vadd.f32 %v4477, %v4473
  %v4502 = vadd.f32 %v4478, %v4486
  %v4503 = vadd.f32 %v4479, %v4487
  %v4504 = vadd.f32 %v4480, %v4488
  %v4505 = vadd.f32 %v4481, %v4489
  %v4506 = vadd.f32 %v4482, %v4490
  %v4507 = vadd.f32 %v4483, %v4491
  %v4508 = vadd.f32 %v4484, %v4492
  %v4509 = vxor.u32 %v4501, 2147483648
  %v4510 = vxor.u32 %v4502, 2147483648
  %v4511 = vxor.u32 %v4503, 2147483648
  %v4512 = vxor.u32 %v4504, 2147483648
  %v4513 = vxor.u32 %v4505, 2147483648
  %v4514 = vxor.u32 %v4506, 2147483648
  %v4515 = vxor.u32 %v4507, 2147483648
  %v4516 = vxor.u32 %v4508, 2147483648
  %v4517 = vmul.f32 %v4509, 1.442695
  %v4518 = vpow.pop %v4517
  %v4519 = vmul.f32 %v4510, 1.442695
  %v4520 = vpow.pop %v4519
  %v4521 = vmul.f32 %v4511, 1.442695
  %v4522 = vpow.pop %v4521
  %v4523 = vmul.f32 %v4512, 1.442695
  %v4524 = vpow.pop %v4523
  %v4525 = vmul.f32 %v4513, 1.442695
  %v4526 = vpow.pop %v4525
  %v4527 = vmul.f32 %v4514, 1.442695
  %v4528 = vpow.pop %v4527
  %v4529 = vmul.f32 %v4515, 1.442695
  %v4530 = vpow.pop %v4529
  %v4531 = vmul.f32 %v4516, 1.442695
  %v4532 = vpow.pop %v4531
  %v4533 = vadd.f32 %v4518, 1.0
  %v4534 = vadd.f32 %v4520, 1.0
  %v4535 = vadd.f32 %v4522, 1.0
  %v4536 = vadd.f32 %v4524, 1.0
  %v4537 = vadd.f32 %v4526, 1.0
  %v4538 = vadd.f32 %v4528, 1.0
  %v4539 = vadd.f32 %v4530, 1.0
  %v4540 = vadd.f32 %v4532, 1.0
  %v4541 = vrcp.pop %v4533
  %v4542 = vmul.f32 1.0, %v4541
  %v4543 = vrcp.pop %v4534
  %v4544 = vmul.f32 1.0, %v4543
  %v4545 = vrcp.pop %v4535
  %v4546 = vmul.f32 1.0, %v4545
  %v4547 = vrcp.pop %v4536
  %v4548 = vmul.f32 1.0, %v4547
  %v4549 = vrcp.pop %v4537
  %v4550 = vmul.f32 1.0, %v4549
  %v4551 = vrcp.pop %v4538
  %v4552 = vmul.f32 1.0, %v4551
  %v4553 = vrcp.pop %v4539
  %v4554 = vmul.f32 1.0, %v4553
  %v4555 = vrcp.pop %v4540
  %v4556 = vmul.f32 1.0, %v4555
  %v4557 = vmul.f32 %v4542, %v4218
  %v4558 = vmul.f32 %v4544, %v4219
  %v4559 = vmul.f32 %v4546, %v4220
  %v4560 = vmul.f32 %v4548, %v4221
  %v4561 = vmul.f32 %v4550, %v4222
  %v4562 = vmul.f32 %v4552, %v4223
  %v4563 = vmul.f32 %v4554, %v4224
  %v4564 = vmul.f32 %v4556, %v4225
  %v4565 = vmul.f32 %v4542, 2.0
  %v4566 = vmul.f32 %v4544, 2.0
  %v4567 = vmul.f32 %v4546, 2.0
  %v4568 = vmul.f32 %v4548, 2.0
  %v4569 = vmul.f32 %v4550, 2.0
  %v4570 = vmul.f32 %v4552, 2.0
  %v4571 = vmul.f32 %v4554, 2.0
  %v4572 = vmul.f32 %v4556, 2.0
  %v4573 = vsub.f32 %v4565, 1.0
  %v4574 = vsub.f32 %v4566, 1.0
  %v4575 = vsub.f32 %v4567, 1.0
  %v4576 = vsub.f32 %v4568, 1.0
  %v4577 = vsub.f32 %v4569, 1.0
  %v4578 = vsub.f32 %v4570, 1.0
  %v4579 = vsub.f32 %v4571, 1.0
  %v4580 = vsub.f32 %v4572, 1.0
  %4589 = vrot.lane.b32.xlu0 %v4573, 64
  %v4590 = vpop.permute.xlu0 %4589
  %4591 = vrot.lane.b32.xlu0 %v4574, 64
  %v4592 = vpop.permute.xlu0 %4591
  %4593 = vrot.lane.b32.xlu0 %v4575, 64
  %v4594 = vpop.permute.xlu0 %4593
  %4595 = vrot.lane.b32.xlu0 %v4576, 64
  %v4596 = vpop.permute.xlu0 %4595
  %4597 = vrot.lane.b32.xlu0 %v4577, 64
  %v4598 = vpop.permute.xlu0 %4597
  %4599 = vrot.lane.b32.xlu0 %v4578, 64
  %v4600 = vpop.permute.xlu0 %4599
  %4601 = vrot.lane.b32.xlu0 %v4579, 64
  %v4602 = vpop.permute.xlu0 %4601
  %4603 = vrot.lane.b32.xlu0 %v4580, 64
  %v4604 = vpop.permute.xlu0 %4603
  %v4613 = vmul.f32 %v4542, %v4590
  %v4614 = vmul.f32 %v4544, %v4592
  %v4615 = vmul.f32 %v4546, %v4594
  %v4616 = vmul.f32 %v4548, %v4596
  %v4617 = vmul.f32 %v4550, %v4598
  %v4618 = vmul.f32 %v4552, %v4600
  %v4619 = vmul.f32 %v4554, %v4602
  %v4620 = vmul.f32 %v4556, %v4604
  %4629 = vrot.lane.b32.xlu0 %v4613, 32
  %v4630 = vpop.permute.xlu0 %4629
  %4631 = vrot.lane.b32.xlu0 %v4614, 32
  %v4632 = vpop.permute.xlu0 %4631
  %4633 = vrot.lane.b32.xlu0 %v4615, 32
  %v4634 = vpop.permute.xlu0 %4633
  %4635 = vrot.lane.b32.xlu0 %v4616, 32
  %v4636 = vpop.permute.xlu0 %4635
  %4637 = vrot.lane.b32.xlu0 %v4617, 32
  %v4638 = vpop.permute.xlu0 %4637
  %4639 = vrot.lane.b32.xlu0 %v4618, 32
  %v4640 = vpop.permute.xlu0 %4639
  %4641 = vrot.lane.b32.xlu0 %v4619, 32
  %v4642 = vpop.permute.xlu0 %4641
  %4643 = vrot.lane.b32.xlu0 %v4620, 32
  %v4644 = vpop.permute.xlu0 %4643
  %v4653 = vadd.f32 %v4557, %v4630
  %v4654 = vadd.f32 %v4558, %v4632
  %v4655 = vadd.f32 %v4559, %v4634
  %v4656 = vadd.f32 %v4560, %v4636
  %v4657 = vadd.f32 %v4561, %v4638
  %v4658 = vadd.f32 %v4562, %v4640
  %v4659 = vadd.f32 %v4563, %v4642
  %v4660 = vadd.f32 %v4564, %v4644
  %v4661 = vtanh.pop %v4653
  %v4662 = vtanh.pop %v4654
  %v4663 = vtanh.pop %v4655
  %v4664 = vtanh.pop %v4656
  %v4665 = vtanh.pop %v4657
  %v4666 = vtanh.pop %v4658
  %v4667 = vtanh.pop %v4659
  %v4668 = vtanh.pop %v4660
  %4677 = vrot.lane.b32.xlu0 %v4661, 64
  %v4678 = vpop.permute.xlu0 %4677
  %4679 = vrot.lane.b32.xlu0 %v4662, 64
  %v4680 = vpop.permute.xlu0 %4679
  %4681 = vrot.lane.b32.xlu0 %v4663, 64
  %v4682 = vpop.permute.xlu0 %4681
  %4683 = vrot.lane.b32.xlu0 %v4664, 64
  %v4684 = vpop.permute.xlu0 %4683
  %4685 = vrot.lane.b32.xlu0 %v4665, 64
  %v4686 = vpop.permute.xlu0 %4685
  %4687 = vrot.lane.b32.xlu0 %v4666, 64
  %v4688 = vpop.permute.xlu0 %4687
  %4689 = vrot.lane.b32.xlu0 %v4667, 64
  %v4690 = vpop.permute.xlu0 %4689
  %4691 = vrot.lane.b32.xlu0 %v4668, 64
  %v4692 = vpop.permute.xlu0 %4691
  %v4701 = vmul.f32 %v4542, %v4678
  %v4702 = vmul.f32 %v4544, %v4680
  %v4703 = vmul.f32 %v4546, %v4682
  %v4704 = vmul.f32 %v4548, %v4684
  %v4705 = vmul.f32 %v4550, %v4686
  %v4706 = vmul.f32 %v4552, %v4688
  %v4707 = vmul.f32 %v4554, %v4690
  %v4708 = vmul.f32 %v4556, %v4692
  %v4717 = vrot.slane %v4702, 7
  %v4718 = vsel %vm360, %v4717, %v4701
  %v4719 = vrot.slane %v4703, 6
  %v4720 = vsel %vm363, %v4719, %v4718
  %v4721 = vrot.slane %v4704, 5
  %v4722 = vsel %vm366, %v4721, %v4720
  %v4723 = vrot.slane %v4705, 4
  %v4724 = vsel %vm369, %v4723, %v4722
  %v4725 = vrot.slane %v4706, 3
  %v4726 = vsel %vm372, %v4725, %v4724
  %v4727 = vrot.slane %v4707, 2
  %v4728 = vsel %vm375, %v4727, %v4726
  %v4729 = vrot.slane %v4708, 1
  %v4730 = vsel %vm378, %v4729, %v4728
  %4731 = vrot.lane.b32.xlu0 %v4730, 32
  %v4732 = vpop.permute.xlu0 %4731
  %v4733 = vsel %vm382, %v4732, 0
  %4735 = vmatprep.subr.mxu0 0.0
  %4736 = vmatpush1.msra.mxu0 %v33
  %4737 = vmatprep.subr.mxu0 0.0
  %4738 = vmatpush1.msra.mxu0 %v34
  %4739 = vmatprep.subr.mxu0 0.0
  %4740 = vmatpush1.msra.mxu0 %v35
  %4741 = vmatprep.subr.mxu0 0.0
  %4742 = vmatpush1.msra.mxu0 %v36
  %4743 = vmatprep.subr.mxu0 0.0
  %4744 = vmatpush1.msra.mxu0 0.0
  %4745 = vmatprep.subr.mxu0 0.0
  %4746 = vmatpush1.msra.mxu0 0.0
  %4747 = vmatprep.subr.mxu0 0.0
  %4748 = vmatpush1.msra.mxu0 0.0
  %4749 = vmatprep.subr.mxu0 0.0
  %4750 = vmatpush1.msra.mxu0 0.0
  %4751 = vmatprep.subr.mxu0 0.0
  %4752 = vmatpush1.msra.mxu0 0.0
  %4753 = vmatprep.subr.mxu0 0.0
  %4754 = vmatpush1.msra.mxu0 0.0
  %4755 = vmatprep.subr.mxu0 0.0
  %4756 = vmatpush1.msra.mxu0 0.0
  %4757 = vmatprep.subr.mxu0 0.0
  %4758 = vmatpush1.msra.mxu0 0.0
  %4759 = vmatprep.subr.mxu0 0.0
  %4760 = vmatpush1.msra.mxu0 0.0
  %4761 = vmatprep.subr.mxu0 0.0
  %4762 = vmatpush1.msra.mxu0 0.0
  %4763 = vmatprep.subr.mxu0 0.0
  %4764 = vmatpush1.msra.mxu0 0.0
  %4765 = vmatprep.subr.mxu0 0.0
  %4766 = vmatpush1.msra.mxu0 0.0
  %4767 = vmatprep.subr.mxu0 0.0
  %4768 = vmatpush1.msra.mxu0 0.0
  %4769 = vmatprep.subr.mxu0 0.0
  %4770 = vmatpush1.msra.mxu0 0.0
  %4771 = vmatprep.subr.mxu0 0.0
  %4772 = vmatpush1.msra.mxu0 0.0
  %4773 = vmatprep.subr.mxu0 0.0
  %4774 = vmatpush1.msra.mxu0 0.0
  %4775 = vmatprep.subr.mxu0 0.0
  %4776 = vmatpush1.msra.mxu0 0.0
  %4777 = vmatprep.subr.mxu0 0.0
  %4778 = vmatpush1.msra.mxu0 0.0
  %4779 = vmatprep.subr.mxu0 0.0
  %4780 = vmatpush1.msra.mxu0 0.0
  %4781 = vmatprep.subr.mxu0 0.0
  %4782 = vmatpush1.msra.mxu0 0.0
  %4783 = vmatprep.subr.mxu0 0.0
  %4784 = vmatpush1.msra.mxu0 0.0
  %4785 = vmatprep.subr.mxu0 0.0
  %4786 = vmatpush1.msra.mxu0 0.0
  %4787 = vmatprep.subr.mxu0 0.0
  %4788 = vmatpush1.msra.mxu0 0.0
  %4789 = vmatprep.subr.mxu0 0.0
  %4790 = vmatpush1.msra.mxu0 0.0
  %4791 = vmatprep.subr.mxu0 0.0
  %4792 = vmatpush1.msra.mxu0 0.0
  %4793 = vmatprep.subr.mxu0 0.0
  %4794 = vmatpush1.msra.mxu0 0.0
  %4795 = vmatprep.subr.mxu0 0.0
  %4796 = vmatpush1.msra.mxu0 0.0
  %4797 = vmatprep.subr.mxu0 0.0
  %4798 = vmatpush1.msra.mxu0 0.0
  %4799 = vmatprep.mubr.f32.mxu0 0.0
  %4800 = vmatmul.mubr.f32.gmra.mrb[0].mxu0 %v4733
  %v4801 = vpop.f32.mrb[0].mxu0
  %v4802 = vadd.f32 0.0, %v4801
  %v4803 = vpop.f32.mrb[0].mxu0
  %4804 = vdwg.mxu0
  %v4805 = vadd.f32 %v4475, %v4802
  %v4806 = vadd.f32 %v4805, %v42
  %v4807 = vxor.u32 %v4806, 2147483648
  %v4808 = vmul.f32 %v4807, 1.442695
  %v4809 = vpow.pop %v4808
  %v4810 = vadd.f32 %v4809, 1.0
  %v4811 = vrcp.pop %v4810
  %v4812 = vmul.f32 1.0, %v4811
  %v4813 = vmul.f32 %v4812, %v4390
  %v4814 = vmul.f32 %v4812, 2.0
  %v4815 = vsub.f32 %v4814, 1.0
  %4817 = vrot.lane.b32.xlu0 %v4815, 64
  %v4818 = vpop.permute.xlu0 %4817
  %v4820 = vmul.f32 %v4812, %v4818
  %4822 = vrot.lane.b32.xlu0 %v4820, 32
  %v4823 = vpop.permute.xlu0 %4822
  %v4825 = vadd.f32 %v4813, %v4823
  %v4826 = vtanh.pop %v4825
  %4828 = vrot.lane.b32.xlu0 %v4826, 64
  %v4829 = vpop.permute.xlu0 %4828
  %v4831 = vmul.f32 %v4812, %v4829
  %4834 = vrot.lane.b32.xlu0 %v4831, 64
  %v4835 = vpop.permute.xlu0 %4834
  %v4837 = vsel %vm382, %v4732, %v4835
  %v4839 = vsel %vm44, %v4837, 0
  %4841 = vmatprep.subr.mxu0 %v18
  %4842 = vmatpush1.msra.mxu0 %v17
  %4843 = vmatprep.subr.mxu0 %v20
  %4844 = vmatpush1.msra.mxu0 %v19
  %4845 = vmatprep.subr.mxu0 %v22
  %4846 = vmatpush1.msra.mxu0 %v21
  %4847 = vmatprep.subr.mxu0 %v24
  %4848 = vmatpush1.msra.mxu0 %v23
  %4849 = vmatprep.subr.mxu0 %v26
  %4850 = vmatpush1.msra.mxu0 %v25
  %4851 = vmatprep.subr.mxu0 %v28
  %4852 = vmatpush1.msra.mxu0 %v27
  %4853 = vmatprep.subr.mxu0 %v30
  %4854 = vmatpush1.msra.mxu0 %v29
  %4855 = vmatprep.subr.mxu0 %v32
  %4856 = vmatpush1.msra.mxu0 %v31
  %4857 = vmatprep.subr.mxu0 0.0
  %4858 = vmatpush1.msra.mxu0 0.0
  %4859 = vmatprep.subr.mxu0 0.0
  %4860 = vmatpush1.msra.mxu0 0.0
  %4861 = vmatprep.subr.mxu0 0.0
  %4862 = vmatpush1.msra.mxu0 0.0
  %4863 = vmatprep.subr.mxu0 0.0
  %4864 = vmatpush1.msra.mxu0 0.0
  %4865 = vmatprep.subr.mxu0 0.0
  %4866 = vmatpush1.msra.mxu0 0.0
  %4867 = vmatprep.subr.mxu0 0.0
  %4868 = vmatpush1.msra.mxu0 0.0
  %4869 = vmatprep.subr.mxu0 0.0
  %4870 = vmatpush1.msra.mxu0 0.0
  %4871 = vmatprep.subr.mxu0 0.0
  %4872 = vmatpush1.msra.mxu0 0.0
  %4873 = vmatprep.subr.mxu0 0.0
  %4874 = vmatpush1.msra.mxu0 0.0
  %4875 = vmatprep.subr.mxu0 0.0
  %4876 = vmatpush1.msra.mxu0 0.0
  %4877 = vmatprep.subr.mxu0 0.0
  %4878 = vmatpush1.msra.mxu0 0.0
  %4879 = vmatprep.subr.mxu0 0.0
  %4880 = vmatpush1.msra.mxu0 0.0
  %4881 = vmatprep.subr.mxu0 0.0
  %4882 = vmatpush1.msra.mxu0 0.0
  %4883 = vmatprep.subr.mxu0 0.0
  %4884 = vmatpush1.msra.mxu0 0.0
  %4885 = vmatprep.subr.mxu0 0.0
  %4886 = vmatpush1.msra.mxu0 0.0
  %4887 = vmatprep.subr.mxu0 0.0
  %4888 = vmatpush1.msra.mxu0 0.0
  %4889 = vmatprep.subr.mxu0 0.0
  %4890 = vmatpush1.msra.mxu0 0.0
  %4891 = vmatprep.subr.mxu0 0.0
  %4892 = vmatpush1.msra.mxu0 0.0
  %4893 = vmatprep.subr.mxu0 0.0
  %4894 = vmatpush1.msra.mxu0 0.0
  %4895 = vmatprep.subr.mxu0 0.0
  %4896 = vmatpush1.msra.mxu0 0.0
  %4897 = vmatprep.subr.mxu0 0.0
  %4898 = vmatpush1.msra.mxu0 0.0
  %4899 = vmatprep.subr.mxu0 0.0
  %4900 = vmatpush1.msra.mxu0 0.0
  %4901 = vmatprep.subr.mxu0 0.0
  %4902 = vmatpush1.msra.mxu0 0.0
  %4903 = vmatprep.subr.mxu0 0.0
  %4904 = vmatpush1.msra.mxu0 0.0
  %4905 = vmatprep.mubr.f32.mxu0 0.0
  %4906 = vmatmul.mubr.f32.gmra.mrb[0].mxu0 %v4839
  %v4907 = vpop.f32.mrb[0].mxu0
  %v4908 = vadd.f32 0.0, %v4907
  %v4909 = vpop.f32.mrb[0].mxu0
  %v4910 = vadd.f32 0.0, %v4909
  %4911 = vdwg.mxu0
  %v4912 = vld [vmem:[%s0 + $0xb] sm:$0x1]
  %v4913 = vld [vmem:[%s0 + $0x1b] sm:$0x1]
  %v4914 = vld [vmem:[%s0 + $0x2b] sm:$0x1]
  %v4915 = vld [vmem:[%s0 + $0x3b] sm:$0x1]
  %v4916 = vld [vmem:[%s0 + $0x4b] sm:$0x1]
  %v4917 = vld [vmem:[%s0 + $0x5b] sm:$0x1]
  %v4918 = vld [vmem:[%s0 + $0x6b] sm:$0x1]
  %v4919 = vld [vmem:[%s0 + $0x7b] sm:$0x1]
  %v4921 = vrot.slane %v4908, 1
  %v4922 = vrot.slane %v4908, 2
  %v4923 = vrot.slane %v4908, 3
  %v4924 = vrot.slane %v4908, 4
  %v4925 = vrot.slane %v4908, 5
  %v4926 = vrot.slane %v4908, 6
  %v4927 = vrot.slane %v4908, 7
  %v4936 = vadd.f32 %v4912, %v4908
  %v4937 = vadd.f32 %v4913, %v4921
  %v4938 = vadd.f32 %v4914, %v4922
  %v4939 = vadd.f32 %v4915, %v4923
  %v4940 = vadd.f32 %v4916, %v4924
  %v4941 = vadd.f32 %v4917, %v4925
  %v4942 = vadd.f32 %v4918, %v4926
  %v4943 = vadd.f32 %v4919, %v4927
  %v4944 = vxor.u32 %v4936, 2147483648
  %v4945 = vxor.u32 %v4937, 2147483648
  %v4946 = vxor.u32 %v4938, 2147483648
  %v4947 = vxor.u32 %v4939, 2147483648
  %v4948 = vxor.u32 %v4940, 2147483648
  %v4949 = vxor.u32 %v4941, 2147483648
  %v4950 = vxor.u32 %v4942, 2147483648
  %v4951 = vxor.u32 %v4943, 2147483648
  %v4952 = vmul.f32 %v4944, 1.442695
  %v4953 = vpow.pop %v4952
  %v4954 = vmul.f32 %v4945, 1.442695
  %v4955 = vpow.pop %v4954
  %v4956 = vmul.f32 %v4946, 1.442695
  %v4957 = vpow.pop %v4956
  %v4958 = vmul.f32 %v4947, 1.442695
  %v4959 = vpow.pop %v4958
  %v4960 = vmul.f32 %v4948, 1.442695
  %v4961 = vpow.pop %v4960
  %v4962 = vmul.f32 %v4949, 1.442695
  %v4963 = vpow.pop %v4962
  %v4964 = vmul.f32 %v4950, 1.442695
  %v4965 = vpow.pop %v4964
  %v4966 = vmul.f32 %v4951, 1.442695
  %v4967 = vpow.pop %v4966
  %v4968 = vadd.f32 %v4953, 1.0
  %v4969 = vadd.f32 %v4955, 1.0
  %v4970 = vadd.f32 %v4957, 1.0
  %v4971 = vadd.f32 %v4959, 1.0
  %v4972 = vadd.f32 %v4961, 1.0
  %v4973 = vadd.f32 %v4963, 1.0
  %v4974 = vadd.f32 %v4965, 1.0
  %v4975 = vadd.f32 %v4967, 1.0
  %v4976 = vrcp.pop %v4968
  %v4977 = vmul.f32 1.0, %v4976
  %v4978 = vrcp.pop %v4969
  %v4979 = vmul.f32 1.0, %v4978
  %v4980 = vrcp.pop %v4970
  %v4981 = vmul.f32 1.0, %v4980
  %v4982 = vrcp.pop %v4971
  %v4983 = vmul.f32 1.0, %v4982
  %v4984 = vrcp.pop %v4972
  %v4985 = vmul.f32 1.0, %v4984
  %v4986 = vrcp.pop %v4973
  %v4987 = vmul.f32 1.0, %v4986
  %v4988 = vrcp.pop %v4974
  %v4989 = vmul.f32 1.0, %v4988
  %v4990 = vrcp.pop %v4975
  %v4991 = vmul.f32 1.0, %v4990
  %v4992 = vmul.f32 %v4977, %v4653
  %v4993 = vmul.f32 %v4979, %v4654
  %v4994 = vmul.f32 %v4981, %v4655
  %v4995 = vmul.f32 %v4983, %v4656
  %v4996 = vmul.f32 %v4985, %v4657
  %v4997 = vmul.f32 %v4987, %v4658
  %v4998 = vmul.f32 %v4989, %v4659
  %v4999 = vmul.f32 %v4991, %v4660
  %v5000 = vmul.f32 %v4977, 2.0
  %v5001 = vmul.f32 %v4979, 2.0
  %v5002 = vmul.f32 %v4981, 2.0
  %v5003 = vmul.f32 %v4983, 2.0
  %v5004 = vmul.f32 %v4985, 2.0
  %v5005 = vmul.f32 %v4987, 2.0
  %v5006 = vmul.f32 %v4989, 2.0
  %v5007 = vmul.f32 %v4991, 2.0
  %v5008 = vsub.f32 %v5000, 1.0
  %v5009 = vsub.f32 %v5001, 1.0
  %v5010 = vsub.f32 %v5002, 1.0
  %v5011 = vsub.f32 %v5003, 1.0
  %v5012 = vsub.f32 %v5004, 1.0
  %v5013 = vsub.f32 %v5005, 1.0
  %v5014 = vsub.f32 %v5006, 1.0
  %v5015 = vsub.f32 %v5007, 1.0
  %5024 = vrot.lane.b32.xlu0 %v5008, 64
  %v5025 = vpop.permute.xlu0 %5024
  %5026 = vrot.lane.b32.xlu0 %v5009, 64
  %v5027 = vpop.permute.xlu0 %5026
  %5028 = vrot.lane.b32.xlu0 %v5010, 64
  %v5029 = vpop.permute.xlu0 %5028
  %5030 = vrot.lane.b32.xlu0 %v5011, 64
  %v5031 = vpop.permute.xlu0 %5030
  %5032 = vrot.lane.b32.xlu0 %v5012, 64
  %v5033 = vpop.permute.xlu0 %5032
  %5034 = vrot.lane.b32.xlu0 %v5013, 64
  %v5035 = vpop.permute.xlu0 %5034
  %5036 = vrot.lane.b32.xlu0 %v5014, 64
  %v5037 = vpop.permute.xlu0 %5036
  %5038 = vrot.lane.b32.xlu0 %v5015, 64
  %v5039 = vpop.permute.xlu0 %5038
  %v5048 = vmul.f32 %v4977, %v5025
  %v5049 = vmul.f32 %v4979, %v5027
  %v5050 = vmul.f32 %v4981, %v5029
  %v5051 = vmul.f32 %v4983, %v5031
  %v5052 = vmul.f32 %v4985, %v5033
  %v5053 = vmul.f32 %v4987, %v5035
  %v5054 = vmul.f32 %v4989, %v5037
  %v5055 = vmul.f32 %v4991, %v5039
  %5064 = vrot.lane.b32.xlu0 %v5048, 32
  %v5065 = vpop.permute.xlu0 %5064
  %5066 = vrot.lane.b32.xlu0 %v5049, 32
  %v5067 = vpop.permute.xlu0 %5066
  %5068 = vrot.lane.b32.xlu0 %v5050, 32
  %v5069 = vpop.permute.xlu0 %5068
  %5070 = vrot.lane.b32.xlu0 %v5051, 32
  %v5071 = vpop.permute.xlu0 %5070
  %5072 = vrot.lane.b32.xlu0 %v5052, 32
  %v5073 = vpop.permute.xlu0 %5072
  %5074 = vrot.lane.b32.xlu0 %v5053, 32
  %v5075 = vpop.permute.xlu0 %5074
  %5076 = vrot.lane.b32.xlu0 %v5054, 32
  %v5077 = vpop.permute.xlu0 %5076
  %5078 = vrot.lane.b32.xlu0 %v5055, 32
  %v5079 = vpop.permute.xlu0 %5078
  %v5088 = vadd.f32 %v4992, %v5065
  %v5089 = vadd.f32 %v4993, %v5067
  %v5090 = vadd.f32 %v4994, %v5069
  %v5091 = vadd.f32 %v4995, %v5071
  %v5092 = vadd.f32 %v4996, %v5073
  %v5093 = vadd.f32 %v4997, %v5075
  %v5094 = vadd.f32 %v4998, %v5077
  %v5095 = vadd.f32 %v4999, %v5079
  %v5096 = vtanh.pop %v5088
  %v5097 = vtanh.pop %v5089
  %v5098 = vtanh.pop %v5090
  %v5099 = vtanh.pop %v5091
  %v5100 = vtanh.pop %v5092
  %v5101 = vtanh.pop %v5093
  %v5102 = vtanh.pop %v5094
  %v5103 = vtanh.pop %v5095
  %5112 = vrot.lane.b32.xlu0 %v5096, 64
  %v5113 = vpop.permute.xlu0 %5112
  %5114 = vrot.lane.b32.xlu0 %v5097, 64
  %v5115 = vpop.permute.xlu0 %5114
  %5116 = vrot.lane.b32.xlu0 %v5098, 64
  %v5117 = vpop.permute.xlu0 %5116
  %5118 = vrot.lane.b32.xlu0 %v5099, 64
  %v5119 = vpop.permute.xlu0 %5118
  %5120 = vrot.lane.b32.xlu0 %v5100, 64
  %v5121 = vpop.permute.xlu0 %5120
  %5122 = vrot.lane.b32.xlu0 %v5101, 64
  %v5123 = vpop.permute.xlu0 %5122
  %5124 = vrot.lane.b32.xlu0 %v5102, 64
  %v5125 = vpop.permute.xlu0 %5124
  %5126 = vrot.lane.b32.xlu0 %v5103, 64
  %v5127 = vpop.permute.xlu0 %5126
  %v5136 = vmul.f32 %v4977, %v5113
  %v5137 = vmul.f32 %v4979, %v5115
  %v5138 = vmul.f32 %v4981, %v5117
  %v5139 = vmul.f32 %v4983, %v5119
  %v5140 = vmul.f32 %v4985, %v5121
  %v5141 = vmul.f32 %v4987, %v5123
  %v5142 = vmul.f32 %v4989, %v5125
  %v5143 = vmul.f32 %v4991, %v5127
  %v5152 = vrot.slane %v5137, 7
  %v5153 = vsel %vm360, %v5152, %v5136
  %v5154 = vrot.slane %v5138, 6
  %v5155 = vsel %vm363, %v5154, %v5153
  %v5156 = vrot.slane %v5139, 5
  %v5157 = vsel %vm366, %v5156, %v5155
  %v5158 = vrot.slane %v5140, 4
  %v5159 = vsel %vm369, %v5158, %v5157
  %v5160 = vrot.slane %v5141, 3
  %v5161 = vsel %vm372, %v5160, %v5159
  %v5162 = vrot.slane %v5142, 2
  %v5163 = vsel %vm375, %v5162, %v5161
  %v5164 = vrot.slane %v5143, 1
  %v5165 = vsel %vm378, %v5164, %v5163
  %5166 = vrot.lane.b32.xlu0 %v5165, 32
  %v5167 = vpop.permute.xlu0 %5166
  %v5168 = vsel %vm382, %v5167, 0
  %5170 = vmatprep.subr.mxu0 0.0
  %5171 = vmatpush1.msra.mxu0 %v33
  %5172 = vmatprep.subr.mxu0 0.0
  %5173 = vmatpush1.msra.mxu0 %v34
  %5174 = vmatprep.subr.mxu0 0.0
  %5175 = vmatpush1.msra.mxu0 %v35
  %5176 = vmatprep.subr.mxu0 0.0
  %5177 = vmatpush1.msra.mxu0 %v36
  %5178 = vmatprep.subr.mxu0 0.0
  %5179 = vmatpush1.msra.mxu0 0.0
  %5180 = vmatprep.subr.mxu0 0.0
  %5181 = vmatpush1.msra.mxu0 0.0
  %5182 = vmatprep.subr.mxu0 0.0
  %5183 = vmatpush1.msra.mxu0 0.0
  %5184 = vmatprep.subr.mxu0 0.0
  %5185 = vmatpush1.msra.mxu0 0.0
  %5186 = vmatprep.subr.mxu0 0.0
  %5187 = vmatpush1.msra.mxu0 0.0
  %5188 = vmatprep.subr.mxu0 0.0
  %5189 = vmatpush1.msra.mxu0 0.0
  %5190 = vmatprep.subr.mxu0 0.0
  %5191 = vmatpush1.msra.mxu0 0.0
  %5192 = vmatprep.subr.mxu0 0.0
  %5193 = vmatpush1.msra.mxu0 0.0
  %5194 = vmatprep.subr.mxu0 0.0
  %5195 = vmatpush1.msra.mxu0 0.0
  %5196 = vmatprep.subr.mxu0 0.0
  %5197 = vmatpush1.msra.mxu0 0.0
  %5198 = vmatprep.subr.mxu0 0.0
  %5199 = vmatpush1.msra.mxu0 0.0
  %5200 = vmatprep.subr.mxu0 0.0
  %5201 = vmatpush1.msra.mxu0 0.0
  %5202 = vmatprep.subr.mxu0 0.0
  %5203 = vmatpush1.msra.mxu0 0.0
  %5204 = vmatprep.subr.mxu0 0.0
  %5205 = vmatpush1.msra.mxu0 0.0
  %5206 = vmatprep.subr.mxu0 0.0
  %5207 = vmatpush1.msra.mxu0 0.0
  %5208 = vmatprep.subr.mxu0 0.0
  %5209 = vmatpush1.msra.mxu0 0.0
  %5210 = vmatprep.subr.mxu0 0.0
  %5211 = vmatpush1.msra.mxu0 0.0
  %5212 = vmatprep.subr.mxu0 0.0
  %5213 = vmatpush1.msra.mxu0 0.0
  %5214 = vmatprep.subr.mxu0 0.0
  %5215 = vmatpush1.msra.mxu0 0.0
  %5216 = vmatprep.subr.mxu0 0.0
  %5217 = vmatpush1.msra.mxu0 0.0
  %5218 = vmatprep.subr.mxu0 0.0
  %5219 = vmatpush1.msra.mxu0 0.0
  %5220 = vmatprep.subr.mxu0 0.0
  %5221 = vmatpush1.msra.mxu0 0.0
  %5222 = vmatprep.subr.mxu0 0.0
  %5223 = vmatpush1.msra.mxu0 0.0
  %5224 = vmatprep.subr.mxu0 0.0
  %5225 = vmatpush1.msra.mxu0 0.0
  %5226 = vmatprep.subr.mxu0 0.0
  %5227 = vmatpush1.msra.mxu0 0.0
  %5228 = vmatprep.subr.mxu0 0.0
  %5229 = vmatpush1.msra.mxu0 0.0
  %5230 = vmatprep.subr.mxu0 0.0
  %5231 = vmatpush1.msra.mxu0 0.0
  %5232 = vmatprep.subr.mxu0 0.0
  %5233 = vmatpush1.msra.mxu0 0.0
  %5234 = vmatprep.mubr.f32.mxu0 0.0
  %5235 = vmatmul.mubr.f32.gmra.mrb[0].mxu0 %v5168
  %v5236 = vpop.f32.mrb[0].mxu0
  %v5237 = vadd.f32 0.0, %v5236
  %v5238 = vpop.f32.mrb[0].mxu0
  %5239 = vdwg.mxu0
  %v5240 = vadd.f32 %v4910, %v5237
  %v5241 = vadd.f32 %v5240, %v42
  %v5242 = vxor.u32 %v5241, 2147483648
  %v5243 = vmul.f32 %v5242, 1.442695
  %v5244 = vpow.pop %v5243
  %v5245 = vadd.f32 %v5244, 1.0
  %v5246 = vrcp.pop %v5245
  %v5247 = vmul.f32 1.0, %v5246
  %v5248 = vmul.f32 %v5247, %v4825
  %v5249 = vmul.f32 %v5247, 2.0
  %v5250 = vsub.f32 %v5249, 1.0
  %5252 = vrot.lane.b32.xlu0 %v5250, 64
  %v5253 = vpop.permute.xlu0 %5252
  %v5255 = vmul.f32 %v5247, %v5253
  %5257 = vrot.lane.b32.xlu0 %v5255, 32
  %v5258 = vpop.permute.xlu0 %5257
  %v5260 = vadd.f32 %v5248, %v5258
  %v5261 = vtanh.pop %v5260
  %5263 = vrot.lane.b32.xlu0 %v5261, 64
  %v5264 = vpop.permute.xlu0 %5263
  %v5266 = vmul.f32 %v5247, %v5264
  %5267 = vrot.lane.b32.xlu0 %v481, 32
  %v5268 = vpop.permute.xlu0 %5267
  %5270 = vrot.lane.b32.xlu0 %v1351, 96
  %v5271 = vpop.permute.xlu0 %5270
  %5273 = vrot.lane.b32.xlu0 %v2221, 32
  %v5274 = vpop.permute.xlu0 %5273
  %5276 = vrot.lane.b32.xlu0 %v3091, 96
  %v5277 = vpop.permute.xlu0 %5276
  %5279 = vrot.lane.b32.xlu0 %v3961, 32
  %v5280 = vpop.permute.xlu0 %5279
  %5282 = vrot.lane.b32.xlu0 %v4831, 96
  %v5283 = vpop.permute.xlu0 %5282
  %v5285 = vsel %vm382, %v5268, %v920
  %v5286 = vsel %vm44, %v5285, %v5271
  %vm5287 = vcmask 785408
  %v5288 = vsel %vm5287, %v5286, %v1786
  %v5289 = vsel %vm382, %v5274, %v2660
  %v5290 = vsel %vm44, %v5289, %v5277
  %v5291 = vsel %vm5287, %v5290, %v3526
  %v5292 = vsel %vm382, %v5280, %v4400
  %v5293 = vsel %vm44, %v5292, %v5283
  %v5294 = vsel %vm5287, %v5293, %v5266
  %5295 = vst [vmem:[%s4] sm:$0xff] %v5288
  %5296 = vst [vmem:[%s4 + $0x8] sm:$0xff] %v5291
  %5297 = vst [vmem:[%s4 + $0x10] sm:$0xff] %v5294
  // Predicated region
  $region18: #{blackbox_lstm_forward.1} parent=0 // pred_check
    _
  $region19: #{blackbox_lstm_forward.1} parent=0 // pred_check_branch
    %5299 = sbr.rel (0) target = $region21
  $region20: #{blackbox_lstm_forward.1} parent=0 // pred_region
    _
  $region21: #{blackbox_lstm_forward.1} parent=0 // pred_fallthru
    _
  // Predicated region
  $region22: #{blackbox_lstm_forward.1} parent=0 // pred_check
    _
  $region23: #{blackbox_lstm_forward.1} parent=0 // pred_check_branch
    %5301 = sbr.rel (0) target = $region25
  $region24: #{blackbox_lstm_forward.1} parent=0 // pred_region
    _
  $region25: #{blackbox_lstm_forward.1} parent=0 // pred_fallthru
    _

</llo_original>
